<compile_context>
chip_gen: v7x
topology: tpu7x:2x2x1
jax: 0.10.0
libtpu: 0.0.40
codegen_flags: <defaults>
</compile_context>

<pallas_src>
import math

import jax
import jax.numpy as jnp
import numpy as np
from jax.experimental import pallas as pl
from jax.experimental.pallas import tpu as pltpu

_MXU_DTYPE = jnp.bfloat16          # MXU operand dtype (f32 accumulation)
_LAMDA, _ALPHA = 1.5, 0.2          # GCNII constants from the reference module
_BN_EPS = 1e-5

# per-stage kernel-argument order (must match wrapper and kernel unpacking)
_STAGE_KEYS = ("att1", "w1", "b1", "att2", "wmix2", "b2",
               "bn_scale", "bn_shift", "fuse_w", "fuse_b",
               "fuse_scale", "fuse_shift")


def _mx(x):
    return x.astype(_MXU_DTYPE)


# ------------------------------ fused kernel --------------------------------

def _make_gcn_kernel(num_stage):
    """Whole-network forward for ONE batch element (grid axis = batch)."""

    def kernel(*refs):
        it = iter(refs)
        x_ref = next(it)
        g1_att, g1_w, g1_b = next(it), next(it), next(it)
        bn1_sc, bn1_sh = next(it), next(it)
        stages = [{k: next(it) for k in _STAGE_KEYS} for _ in range(num_stage)]
        g7_att, g7_w, g7_b = next(it), next(it), next(it)
        o_ref = next(it)

        Fh = g1_b.shape[-1]
        alpha = _ALPHA

        x0 = x_ref[0]                                           # (N, Fin) f32

        # ---- gc1 + bn1 + tanh (reference order: x @ W, then att @ ·) ----
        t = jnp.dot(_mx(x0), g1_w[...], preferred_element_type=jnp.float32)
        y = jnp.dot(g1_att[...], _mx(t),
                    preferred_element_type=jnp.float32) + g1_b[...]
        y = jnp.tanh(y * bn1_sc[...] + bn1_sh[...])             # (N, Fh) f32

        stream0 = None          # block-0 layer-1 [node, abs] outputs (GCNII y0)
        for i in range(num_stage):
            p = stages[i]
            L = 2 * i                                           # layer_nums
            sc, sh = p["bn_scale"][...], p["bn_shift"][...]

            if L < 3:
                # layer 1: plain GC per stream; shared LHS -> one wide matmul
                hw = jnp.dot(_mx(y), p["w1"][...],
                             preferred_element_type=jnp.float32)   # (N, 2*Fh)
                s1 = []
                for s in range(2):                               # 0=node, 1=abs
                    pre = jnp.dot(p["att1"][s],
                                  _mx(hw[:, s * Fh:(s + 1) * Fh]),
                                  preferred_element_type=jnp.float32)
                    s1.append(jnp.tanh((pre + p["b1"][s]) * sc + sh))
                if i == 0:
                    stream0 = s1
                y0 = s1                                          # GCNII y0 = s1
            else:
                # layer 1: GCNII with y0 = block-0 stream inits
                s1 = []
                for s in range(2):
                    sup = (1.0 - alpha) * jnp.dot(
                        p["att1"][s], _mx(y), preferred_element_type=jnp.float32)
                    sup = sup + alpha * stream0[s]
                    pre = jnp.dot(_mx(sup), p["w1"][s],
                                  preferred_element_type=jnp.float32)
                    s1.append(jnp.tanh((pre + p["b1"][s]) * sc + sh))
                y0 = stream0

            # layer 2: GCNII (beta*W + (1-beta)*I precomputed on host)
            s2 = []
            for s in range(2):
                sup = (1.0 - alpha) * jnp.dot(
                    p["att2"][s], _mx(s1[s]), preferred_element_type=jnp.float32)
                sup = sup + alpha * y0[s]
                pre = jnp.dot(_mx(sup), p["wmix2"][s],
                              preferred_element_type=jnp.float32)
                s2.append(jnp.tanh((pre + p["b2"][s]) * sc + sh))

            # fuse Conv1d(k=3, s=3) over interleaved [node, abs, graph] taps,
            # written as two matmuls, + fuse-BN (eval) + block residual.
            # TODO(synk): the third tap multiplies the IntegrationGraph stream
            # (LocalPart / MultiGlobalPart / adj undefined in the source), which
            # is treated as identically zero, so its matmul is omitted.
            f = jnp.dot(_mx(s2[0]), p["fuse_w"][0],
                        preferred_element_type=jnp.float32)
            f = f + jnp.dot(_mx(s2[1]), p["fuse_w"][1],
                            preferred_element_type=jnp.float32)
            f = (f + p["fuse_b"][...]) * p["fuse_scale"][...] + p["fuse_shift"][...]
            y = f + y                                            # block residual

        # ---- gc7 + network-level residual ----
        t = jnp.dot(_mx(y), g7_w[...], preferred_element_type=jnp.float32)
        out = jnp.dot(g7_att[...], _mx(t),
                      preferred_element_type=jnp.float32) + g7_b[...]
        o_ref[0] = out + x0

    return kernel


# ------------------------------ wrapper --------------------------------------

def gcn_forward(params, x, *, num_stage):
    """GCN.forward (eval mode).  x: (B, node_n, input_feature) f32."""
    B, N, Fin = x.shape

    args = [x]
    in_specs = [pl.BlockSpec((1, N, Fin), lambda b: (b, 0, 0))]

    def add(arr):
        args.append(arr)
        in_specs.append(pl.BlockSpec(arr.shape, lambda b, _n=arr.ndim: (0,) * _n))

    g1 = params["gc1"]
    add(g1["att"]); add(g1["weight"]); add(g1["bias"])
    add(params["bn1_scale"]); add(params["bn1_shift"])
    for i in range(num_stage):
        p = params["gcbs"][i]
        for k in _STAGE_KEYS:
            add(p[k])
    g7 = params["gc7"]
    add(g7["att"]); add(g7["weight"]); add(g7["bias"])

    return pl.pallas_call(
        _make_gcn_kernel(num_stage),
        out_shape=jax.ShapeDtypeStruct((B, N, Fin), jnp.float32),
        grid=(B,),
        in_specs=in_specs,
        out_specs=pl.BlockSpec((1, N, Fin), lambda b: (b, 0, 0)),
        compiler_params=pltpu.CompilerParams(
            dimension_semantics=("parallel",)),
    )(*args)


# ------------------------------ parameters -----------------------------------

_ABS_ROOT = {54: 5, 66: 8}    # parents_abs root per node_n (see GC_Block.forward)


def _abs_fold_mat(node_n):
    """(N, N) operator M with abs_pos = M @ x  (abs_pos = x - x[root] per part)."""
    root = _ABS_ROOT[node_n]
    v = node_n // 3
    m = np.eye(node_n, dtype=np.float32)
    for c in range(3):
        for vi in range(v):
            m[c * v + vi, c * v + root] -= 1.0
    return jnp.asarray(m)


def _uniform(key, shape, bound):
    return jax.random.uniform(key, shape, jnp.float32, -bound, bound)


def init_graph_conv(key, in_f, out_f, node_n):
    stdv = 1.0 / math.sqrt(out_f)
    k1, k2, k3 = jax.random.split(key, 3)
    return {"weight": _uniform(k1, (in_f, out_f), stdv),
            "att": _uniform(k2, (node_n, node_n), stdv),
            "bias": _uniform(k3, (out_f,), stdv)}


def bn_eval_scale_shift(shape, eps=_BN_EPS):
    # eval-mode BatchNorm1d with default stats: gamma=1, beta=0, mean=0, var=1.
    gamma = jnp.ones(shape, jnp.float32)
    beta = jnp.zeros(shape, jnp.float32)
    run_mean = jnp.zeros(shape, jnp.float32)
    run_var = jnp.ones(shape, jnp.float32)
    scale = gamma / jnp.sqrt(run_var + eps)
    return scale, beta - run_mean * scale


def init_gc_block(key, hidden, node_n, layer_nums):
    """GC_Block params in kernel-ready (stacked / folded / bf16) form.

    The `edge` stream params of the torch module are omitted: their outputs never
    reach the GCN output (fusion conv uses node/abs/graph only; edge0 only feeds
    dead edge paths), so dropping them preserves forward semantics."""
    keys = jax.random.split(key, 5)
    node1 = init_graph_conv(keys[0], hidden, hidden, node_n)
    abs1 = init_graph_conv(keys[1], hidden, hidden, node_n)
    node2 = init_graph_conv(keys[2], hidden, hidden, node_n)
    abs2 = init_graph_conv(keys[3], hidden, hidden, node_n)

    m_abs = _abs_fold_mat(node_n)
    eye = jnp.eye(hidden, dtype=jnp.float32)
    p = {}

    # layer-1: fold the abs difference operator into att (att_eff = att @ M_abs)
    p["att1"] = _mx(jnp.stack([node1["att"], abs1["att"] @ m_abs]))
    if layer_nums < 3:
        # plain GC: shared LHS -> concatenate stream weights along the out dim
        p["w1"] = _mx(jnp.concatenate([node1["weight"], abs1["weight"]], axis=1))
    else:
        beta1 = math.log(_LAMDA / layer_nums + 1.0)
        p["w1"] = _mx(jnp.stack([beta1 * node1["weight"] + (1.0 - beta1) * eye,
                                 beta1 * abs1["weight"] + (1.0 - beta1) * eye]))
    p["b1"] = jnp.stack([node1["bias"].reshape(1, hidden),
                         abs1["bias"].reshape(1, hidden)])

    # layer-2 (GCNII): precompute beta*W + (1-beta)*I
    beta2 = math.log(_LAMDA / (layer_nums + 1) + 1.0)
    p["att2"] = _mx(jnp.stack([node2["att"], abs2["att"]]))
    p["wmix2"] = _mx(jnp.stack([beta2 * node2["weight"] + (1.0 - beta2) * eye,
                                beta2 * abs2["weight"] + (1.0 - beta2) * eye]))
    p["b2"] = jnp.stack([node2["bias"].reshape(1, hidden),
                         abs2["bias"].reshape(1, hidden)])

    # shared eval-BN scale/shift for the stream BNs (identical under default stats)
    p["bn_scale"], p["bn_shift"] = bn_eval_scale_shift((node_n, hidden))

    # fuse Conv1d(k=3, s=3): taps k=0 (node) and k=1 (abs), transposed so that
    # out = stream @ W_k^T ; tap k=2 multiplies the zero IntegrationGraph stream.
    kf_w, kf_b = jax.random.split(keys[4])
    bound = 1.0 / math.sqrt(hidden * 3)
    fuse_w = _uniform(kf_w, (hidden, hidden, 3), bound)     # (Cout, Cin, K) torch layout
    p["fuse_w"] = _mx(jnp.stack([fuse_w[:, :, 0].T, fuse_w[:, :, 1].T]))
    p["fuse_b"] = _uniform(kf_b, (hidden,), bound).reshape(1, hidden)
    # fuse_bn acts on the (feature, node)-flattened conv output; transpose to (N, F)
    fs, fsh = bn_eval_scale_shift((hidden, node_n))
    p["fuse_scale"], p["fuse_shift"] = fs.T, fsh.T
    return p


def init_gcn(key, in_f, hidden, node_n, num_stage):
    kg1, kg7, kb = jax.random.split(key, 3)
    g1 = init_graph_conv(kg1, in_f, hidden, node_n)
    g7 = init_graph_conv(kg7, hidden, in_f, node_n)
    params = {
        "gc1": {"att": _mx(g1["att"]), "weight": _mx(g1["weight"]),
                "bias": g1["bias"].reshape(1, hidden)},
        "gc7": {"att": _mx(g7["att"]), "weight": _mx(g7["weight"]),
                "bias": g7["bias"].reshape(1, in_f)},
        "gcbs": [init_gc_block(k, hidden, node_n, 2 * i)
                 for i, k in enumerate(jax.random.split(kb, num_stage))],
    }
    params["bn1_scale"], params["bn1_shift"] = bn_eval_scale_shift((node_n, hidden))
    return params


# ---------------------------------- main --------------------------------------

if __name__ == "__main__":
    # node_n must be 54 (or 66) for GC_Block's skeleton logic; pick 54 = 3*18.
    B, NODE_N, IN_F, HID_F, NUM_STAGE = 2, 54, 16, 32, 2

    key = jax.random.PRNGKey(0)
    kx, kp = jax.random.split(key)
    x = jax.random.normal(kx, (B, NODE_N, IN_F), jnp.float32)
    params = init_gcn(kp, IN_F, HID_F, NODE_N, NUM_STAGE)

    fwd = jax.jit(gcn_forward, static_argnames=("num_stage",))
    out = fwd(params, x, num_stage=NUM_STAGE)
    jax.block_until_ready(out)

    assert out.shape == (B, NODE_N, IN_F) and out.dtype == jnp.float32
    assert bool(jnp.all(jnp.isfinite(out)))
    print("KERNEL_OK")
</pallas_src>

<mosaic_0001>
module attributes {stable_mosaic.version = 11 : i64} {
  func.func @kernel(%arg0: i32, %arg1: memref<1x54x16xf32, #tpu.memory_space<vmem>>, %arg2: memref<54x54xbf16, #tpu.memory_space<vmem>>, %arg3: memref<16x32xbf16, #tpu.memory_space<vmem>>, %arg4: memref<1x32xf32, #tpu.memory_space<vmem>>, %arg5: memref<54x32xf32, #tpu.memory_space<vmem>>, %arg6: memref<54x32xf32, #tpu.memory_space<vmem>>, %arg7: memref<2x54x54xbf16, #tpu.memory_space<vmem>>, %arg8: memref<32x64xbf16, #tpu.memory_space<vmem>>, %arg9: memref<2x1x32xf32, #tpu.memory_space<vmem>>, %arg10: memref<2x54x54xbf16, #tpu.memory_space<vmem>>, %arg11: memref<2x32x32xbf16, #tpu.memory_space<vmem>>, %arg12: memref<2x1x32xf32, #tpu.memory_space<vmem>>, %arg13: memref<54x32xf32, #tpu.memory_space<vmem>>, %arg14: memref<54x32xf32, #tpu.memory_space<vmem>>, %arg15: memref<2x32x32xbf16, #tpu.memory_space<vmem>>, %arg16: memref<1x32xf32, #tpu.memory_space<vmem>>, %arg17: memref<54x32xf32, #tpu.memory_space<vmem>>, %arg18: memref<54x32xf32, #tpu.memory_space<vmem>>, %arg19: memref<2x54x54xbf16, #tpu.memory_space<vmem>>, %arg20: memref<32x64xbf16, #tpu.memory_space<vmem>>, %arg21: memref<2x1x32xf32, #tpu.memory_space<vmem>>, %arg22: memref<2x54x54xbf16, #tpu.memory_space<vmem>>, %arg23: memref<2x32x32xbf16, #tpu.memory_space<vmem>>, %arg24: memref<2x1x32xf32, #tpu.memory_space<vmem>>, %arg25: memref<54x32xf32, #tpu.memory_space<vmem>>, %arg26: memref<54x32xf32, #tpu.memory_space<vmem>>, %arg27: memref<2x32x32xbf16, #tpu.memory_space<vmem>>, %arg28: memref<1x32xf32, #tpu.memory_space<vmem>>, %arg29: memref<54x32xf32, #tpu.memory_space<vmem>>, %arg30: memref<54x32xf32, #tpu.memory_space<vmem>>, %arg31: memref<54x54xbf16, #tpu.memory_space<vmem>>, %arg32: memref<32x16xbf16, #tpu.memory_space<vmem>>, %arg33: memref<1x16xf32, #tpu.memory_space<vmem>>, %arg34: memref<1x54x16xf32, #tpu.memory_space<vmem>>) attributes {dimension_semantics = [#tpu.dimension_semantics<parallel>], iteration_bounds = array<i64: 2>, scalar_prefetch = 0 : i64, scratch_operands = 0 : i64, tpu.core_type = #tpu.core_type<tc>, window_params = [{transform_indices = @transform_0, window_bounds = array<i64: 1, 54, 16>}, {pipeline_mode = #tpu.pipeline_mode<synchronous>, transform_indices = @transform_1, window_bounds = array<i64: 54, 54>}, {pipeline_mode = #tpu.pipeline_mode<synchronous>, transform_indices = @transform_2, window_bounds = array<i64: 16, 32>}, {pipeline_mode = #tpu.pipeline_mode<synchronous>, transform_indices = @transform_3, window_bounds = array<i64: 1, 32>}, {pipeline_mode = #tpu.pipeline_mode<synchronous>, transform_indices = @transform_4, window_bounds = array<i64: 54, 32>}, {pipeline_mode = #tpu.pipeline_mode<synchronous>, transform_indices = @transform_5, window_bounds = array<i64: 54, 32>}, {pipeline_mode = #tpu.pipeline_mode<synchronous>, transform_indices = @transform_6, window_bounds = array<i64: 2, 54, 54>}, {pipeline_mode = #tpu.pipeline_mode<synchronous>, transform_indices = @transform_7, window_bounds = array<i64: 32, 64>}, {pipeline_mode = #tpu.pipeline_mode<synchronous>, transform_indices = @transform_8, window_bounds = array<i64: 2, 1, 32>}, {pipeline_mode = #tpu.pipeline_mode<synchronous>, transform_indices = @transform_9, window_bounds = array<i64: 2, 54, 54>}, {pipeline_mode = #tpu.pipeline_mode<synchronous>, transform_indices = @transform_10, window_bounds = array<i64: 2, 32, 32>}, {pipeline_mode = #tpu.pipeline_mode<synchronous>, transform_indices = @transform_11, window_bounds = array<i64: 2, 1, 32>}, {pipeline_mode = #tpu.pipeline_mode<synchronous>, transform_indices = @transform_12, window_bounds = array<i64: 54, 32>}, {pipeline_mode = #tpu.pipeline_mode<synchronous>, transform_indices = @transform_13, window_bounds = array<i64: 54, 32>}, {pipeline_mode = #tpu.pipeline_mode<synchronous>, transform_indices = @transform_14, window_bounds = array<i64: 2, 32, 32>}, {pipeline_mode = #tpu.pipeline_mode<synchronous>, transform_indices = @transform_15, window_bounds = array<i64: 1, 32>}, {pipeline_mode = #tpu.pipeline_mode<synchronous>, transform_indices = @transform_16, window_bounds = array<i64: 54, 32>}, {pipeline_mode = #tpu.pipeline_mode<synchronous>, transform_indices = @transform_17, window_bounds = array<i64: 54, 32>}, {pipeline_mode = #tpu.pipeline_mode<synchronous>, transform_indices = @transform_18, window_bounds = array<i64: 2, 54, 54>}, {pipeline_mode = #tpu.pipeline_mode<synchronous>, transform_indices = @transform_19, window_bounds = array<i64: 32, 64>}, {pipeline_mode = #tpu.pipeline_mode<synchronous>, transform_indices = @transform_20, window_bounds = array<i64: 2, 1, 32>}, {pipeline_mode = #tpu.pipeline_mode<synchronous>, transform_indices = @transform_21, window_bounds = array<i64: 2, 54, 54>}, {pipeline_mode = #tpu.pipeline_mode<synchronous>, transform_indices = @transform_22, window_bounds = array<i64: 2, 32, 32>}, {pipeline_mode = #tpu.pipeline_mode<synchronous>, transform_indices = @transform_23, window_bounds = array<i64: 2, 1, 32>}, {pipeline_mode = #tpu.pipeline_mode<synchronous>, transform_indices = @transform_24, window_bounds = array<i64: 54, 32>}, {pipeline_mode = #tpu.pipeline_mode<synchronous>, transform_indices = @transform_25, window_bounds = array<i64: 54, 32>}, {pipeline_mode = #tpu.pipeline_mode<synchronous>, transform_indices = @transform_26, window_bounds = array<i64: 2, 32, 32>}, {pipeline_mode = #tpu.pipeline_mode<synchronous>, transform_indices = @transform_27, window_bounds = array<i64: 1, 32>}, {pipeline_mode = #tpu.pipeline_mode<synchronous>, transform_indices = @transform_28, window_bounds = array<i64: 54, 32>}, {pipeline_mode = #tpu.pipeline_mode<synchronous>, transform_indices = @transform_29, window_bounds = array<i64: 54, 32>}, {pipeline_mode = #tpu.pipeline_mode<synchronous>, transform_indices = @transform_30, window_bounds = array<i64: 54, 54>}, {pipeline_mode = #tpu.pipeline_mode<synchronous>, transform_indices = @transform_31, window_bounds = array<i64: 32, 16>}, {pipeline_mode = #tpu.pipeline_mode<synchronous>, transform_indices = @transform_32, window_bounds = array<i64: 1, 16>}, {transform_indices = @transform_33, window_bounds = array<i64: 1, 54, 16>}]} {
    %c0 = arith.constant 0 : index
    %c0_0 = arith.constant 0 : index
    %c0_1 = arith.constant 0 : index
    %0 = vector.load %arg1[%c0, %c0_0, %c0_1] : memref<1x54x16xf32, #tpu.memory_space<vmem>>, vector<1x54x16xf32>
    %1 = vector.shape_cast %0 : vector<1x54x16xf32> to vector<54x16xf32>
    %2 = arith.truncf %1 : vector<54x16xf32> to vector<54x16xbf16>
    %c0_2 = arith.constant 0 : index
    %c0_3 = arith.constant 0 : index
    %3 = vector.load %arg3[%c0_2, %c0_3] : memref<16x32xbf16, #tpu.memory_space<vmem>>, vector<16x32xbf16>
    %cst = arith.constant dense<0.000000e+00> : vector<54x32xf32>
    %4 = tpu.matmul %2, %3, %cst {dimension_numbers = #tpu.dot_dimension_numbers<[1], [0], [0], [1], [0, 0, 1, 1], [], []>} : vector<54x16xbf16>, vector<16x32xbf16>, vector<54x32xf32> -> vector<54x32xf32>
    %c0_4 = arith.constant 0 : index
    %c0_5 = arith.constant 0 : index
    %5 = vector.load %arg2[%c0_4, %c0_5] : memref<54x54xbf16, #tpu.memory_space<vmem>>, vector<54x54xbf16>
    %6 = arith.truncf %4 : vector<54x32xf32> to vector<54x32xbf16>
    %cst_6 = arith.constant dense<0.000000e+00> : vector<54x32xf32>
    %7 = tpu.matmul %5, %6, %cst_6 {dimension_numbers = #tpu.dot_dimension_numbers<[1], [0], [0], [1], [0, 0, 1, 1], [], []>} : vector<54x54xbf16>, vector<54x32xbf16>, vector<54x32xf32> -> vector<54x32xf32>
    %c0_7 = arith.constant 0 : index
    %c0_8 = arith.constant 0 : index
    %8 = vector.load %arg4[%c0_7, %c0_8] : memref<1x32xf32, #tpu.memory_space<vmem>>, vector<1x32xf32>
    %9 = vector.broadcast %8 : vector<1x32xf32> to vector<54x32xf32>
    %10 = arith.addf %7, %9 : vector<54x32xf32>
    %c0_9 = arith.constant 0 : index
    %c0_10 = arith.constant 0 : index
    %11 = vector.load %arg5[%c0_9, %c0_10] : memref<54x32xf32, #tpu.memory_space<vmem>>, vector<54x32xf32>
    %12 = arith.mulf %10, %11 : vector<54x32xf32>
    %c0_11 = arith.constant 0 : index
    %c0_12 = arith.constant 0 : index
    %13 = vector.load %arg6[%c0_11, %c0_12] : memref<54x32xf32, #tpu.memory_space<vmem>>, vector<54x32xf32>
    %14 = arith.addf %12, %13 : vector<54x32xf32>
    %15 = math.tanh %14 : vector<54x32xf32>
    %c0_13 = arith.constant 0 : index
    %c0_14 = arith.constant 0 : index
    %16 = vector.load %arg13[%c0_13, %c0_14] : memref<54x32xf32, #tpu.memory_space<vmem>>, vector<54x32xf32>
    %c0_15 = arith.constant 0 : index
    %c0_16 = arith.constant 0 : index
    %17 = vector.load %arg14[%c0_15, %c0_16] : memref<54x32xf32, #tpu.memory_space<vmem>>, vector<54x32xf32>
    %18 = arith.truncf %15 : vector<54x32xf32> to vector<54x32xbf16>
    %c0_17 = arith.constant 0 : index
    %c0_18 = arith.constant 0 : index
    %19 = vector.load %arg8[%c0_17, %c0_18] : memref<32x64xbf16, #tpu.memory_space<vmem>>, vector<32x64xbf16>
    %cst_19 = arith.constant dense<0.000000e+00> : vector<54x64xf32>
    %20 = tpu.matmul %18, %19, %cst_19 {dimension_numbers = #tpu.dot_dimension_numbers<[1], [0], [0], [1], [0, 0, 1, 1], [], []>} : vector<54x32xbf16>, vector<32x64xbf16>, vector<54x64xf32> -> vector<54x64xf32>
    %c0_20 = arith.constant 0 : index
    %c0_21 = arith.constant 0 : index
    %c0_22 = arith.constant 0 : index
    %21 = vector.load %arg7[%c0_20, %c0_21, %c0_22] : memref<2x54x54xbf16, #tpu.memory_space<vmem>>, vector<1x54x54xbf16>
    %22 = vector.shape_cast %21 : vector<1x54x54xbf16> to vector<54x54xbf16>
    %23 = vector.extract_strided_slice %20 {offsets = [0, 0], sizes = [54, 32], strides = [1, 1]} : vector<54x64xf32> to vector<54x32xf32>
    %24 = arith.truncf %23 : vector<54x32xf32> to vector<54x32xbf16>
    %cst_23 = arith.constant dense<0.000000e+00> : vector<54x32xf32>
    %25 = tpu.matmul %22, %24, %cst_23 {dimension_numbers = #tpu.dot_dimension_numbers<[1], [0], [0], [1], [0, 0, 1, 1], [], []>} : vector<54x54xbf16>, vector<54x32xbf16>, vector<54x32xf32> -> vector<54x32xf32>
    %c0_24 = arith.constant 0 : index
    %c0_25 = arith.constant 0 : index
    %c0_26 = arith.constant 0 : index
    %26 = vector.load %arg9[%c0_24, %c0_25, %c0_26] : memref<2x1x32xf32, #tpu.memory_space<vmem>>, vector<1x1x32xf32>
    %27 = vector.shape_cast %26 : vector<1x1x32xf32> to vector<1x32xf32>
    %28 = vector.broadcast %27 : vector<1x32xf32> to vector<54x32xf32>
    %29 = arith.addf %25, %28 : vector<54x32xf32>
    %30 = arith.mulf %29, %16 : vector<54x32xf32>
    %31 = arith.addf %30, %17 : vector<54x32xf32>
    %32 = math.tanh %31 : vector<54x32xf32>
    %c1 = arith.constant 1 : index
    %c0_27 = arith.constant 0 : index
    %c0_28 = arith.constant 0 : index
    %33 = vector.load %arg7[%c1, %c0_27, %c0_28] : memref<2x54x54xbf16, #tpu.memory_space<vmem>>, vector<1x54x54xbf16>
    %34 = vector.shape_cast %33 : vector<1x54x54xbf16> to vector<54x54xbf16>
    %35 = vector.extract_strided_slice %20 {offsets = [0, 32], sizes = [54, 32], strides = [1, 1]} : vector<54x64xf32> to vector<54x32xf32>
    %36 = arith.truncf %35 : vector<54x32xf32> to vector<54x32xbf16>
    %cst_29 = arith.constant dense<0.000000e+00> : vector<54x32xf32>
    %37 = tpu.matmul %34, %36, %cst_29 {dimension_numbers = #tpu.dot_dimension_numbers<[1], [0], [0], [1], [0, 0, 1, 1], [], []>} : vector<54x54xbf16>, vector<54x32xbf16>, vector<54x32xf32> -> vector<54x32xf32>
    %c1_30 = arith.constant 1 : index
    %c0_31 = arith.constant 0 : index
    %c0_32 = arith.constant 0 : index
    %38 = vector.load %arg9[%c1_30, %c0_31, %c0_32] : memref<2x1x32xf32, #tpu.memory_space<vmem>>, vector<1x1x32xf32>
    %39 = vector.shape_cast %38 : vector<1x1x32xf32> to vector<1x32xf32>
    %40 = vector.broadcast %39 : vector<1x32xf32> to vector<54x32xf32>
    %41 = arith.addf %37, %40 : vector<54x32xf32>
    %42 = arith.mulf %41, %16 : vector<54x32xf32>
    %43 = arith.addf %42, %17 : vector<54x32xf32>
    %44 = math.tanh %43 : vector<54x32xf32>
    %c0_33 = arith.constant 0 : index
    %c0_34 = arith.constant 0 : index
    %c0_35 = arith.constant 0 : index
    %45 = vector.load %arg10[%c0_33, %c0_34, %c0_35] : memref<2x54x54xbf16, #tpu.memory_space<vmem>>, vector<1x54x54xbf16>
    %46 = vector.shape_cast %45 : vector<1x54x54xbf16> to vector<54x54xbf16>
    %47 = arith.truncf %32 : vector<54x32xf32> to vector<54x32xbf16>
    %cst_36 = arith.constant dense<0.000000e+00> : vector<54x32xf32>
    %48 = tpu.matmul %46, %47, %cst_36 {dimension_numbers = #tpu.dot_dimension_numbers<[1], [0], [0], [1], [0, 0, 1, 1], [], []>} : vector<54x54xbf16>, vector<54x32xbf16>, vector<54x32xf32> -> vector<54x32xf32>
    %cst_37 = arith.constant 8.000000e-01 : f32
    %49 = vector.broadcast %cst_37 : f32 to vector<54x32xf32>
    %50 = arith.mulf %49, %48 : vector<54x32xf32>
    %cst_38 = arith.constant 2.000000e-01 : f32
    %51 = vector.broadcast %cst_38 : f32 to vector<54x32xf32>
    %52 = arith.mulf %51, %32 : vector<54x32xf32>
    %53 = arith.addf %50, %52 : vector<54x32xf32>
    %54 = arith.truncf %53 : vector<54x32xf32> to vector<54x32xbf16>
    %c0_39 = arith.constant 0 : index
    %c0_40 = arith.constant 0 : index
    %c0_41 = arith.constant 0 : index
    %55 = vector.load %arg11[%c0_39, %c0_40, %c0_41] : memref<2x32x32xbf16, #tpu.memory_space<vmem>>, vector<1x32x32xbf16>
    %56 = vector.shape_cast %55 : vector<1x32x32xbf16> to vector<32x32xbf16>
    %cst_42 = arith.constant dense<0.000000e+00> : vector<54x32xf32>
    %57 = tpu.matmul %54, %56, %cst_42 {dimension_numbers = #tpu.dot_dimension_numbers<[1], [0], [0], [1], [0, 0, 1, 1], [], []>} : vector<54x32xbf16>, vector<32x32xbf16>, vector<54x32xf32> -> vector<54x32xf32>
    %c0_43 = arith.constant 0 : index
    %c0_44 = arith.constant 0 : index
    %c0_45 = arith.constant 0 : index
    %58 = vector.load %arg12[%c0_43, %c0_44, %c0_45] : memref<2x1x32xf32, #tpu.memory_space<vmem>>, vector<1x1x32xf32>
    %59 = vector.shape_cast %58 : vector<1x1x32xf32> to vector<1x32xf32>
    %60 = vector.broadcast %59 : vector<1x32xf32> to vector<54x32xf32>
    %61 = arith.addf %57, %60 : vector<54x32xf32>
    %62 = arith.mulf %61, %16 : vector<54x32xf32>
    %63 = arith.addf %62, %17 : vector<54x32xf32>
    %64 = math.tanh %63 : vector<54x32xf32>
    %c1_46 = arith.constant 1 : index
    %c0_47 = arith.constant 0 : index
    %c0_48 = arith.constant 0 : index
    %65 = vector.load %arg10[%c1_46, %c0_47, %c0_48] : memref<2x54x54xbf16, #tpu.memory_space<vmem>>, vector<1x54x54xbf16>
    %66 = vector.shape_cast %65 : vector<1x54x54xbf16> to vector<54x54xbf16>
    %67 = arith.truncf %44 : vector<54x32xf32> to vector<54x32xbf16>
    %cst_49 = arith.constant dense<0.000000e+00> : vector<54x32xf32>
    %68 = tpu.matmul %66, %67, %cst_49 {dimension_numbers = #tpu.dot_dimension_numbers<[1], [0], [0], [1], [0, 0, 1, 1], [], []>} : vector<54x54xbf16>, vector<54x32xbf16>, vector<54x32xf32> -> vector<54x32xf32>
    %cst_50 = arith.constant 8.000000e-01 : f32
    %69 = vector.broadcast %cst_50 : f32 to vector<54x32xf32>
    %70 = arith.mulf %69, %68 : vector<54x32xf32>
    %cst_51 = arith.constant 2.000000e-01 : f32
    %71 = vector.broadcast %cst_51 : f32 to vector<54x32xf32>
    %72 = arith.mulf %71, %44 : vector<54x32xf32>
    %73 = arith.addf %70, %72 : vector<54x32xf32>
    %74 = arith.truncf %73 : vector<54x32xf32> to vector<54x32xbf16>
    %c1_52 = arith.constant 1 : index
    %c0_53 = arith.constant 0 : index
    %c0_54 = arith.constant 0 : index
    %75 = vector.load %arg11[%c1_52, %c0_53, %c0_54] : memref<2x32x32xbf16, #tpu.memory_space<vmem>>, vector<1x32x32xbf16>
    %76 = vector.shape_cast %75 : vector<1x32x32xbf16> to vector<32x32xbf16>
    %cst_55 = arith.constant dense<0.000000e+00> : vector<54x32xf32>
    %77 = tpu.matmul %74, %76, %cst_55 {dimension_numbers = #tpu.dot_dimension_numbers<[1], [0], [0], [1], [0, 0, 1, 1], [], []>} : vector<54x32xbf16>, vector<32x32xbf16>, vector<54x32xf32> -> vector<54x32xf32>
    %c1_56 = arith.constant 1 : index
    %c0_57 = arith.constant 0 : index
    %c0_58 = arith.constant 0 : index
    %78 = vector.load %arg12[%c1_56, %c0_57, %c0_58] : memref<2x1x32xf32, #tpu.memory_space<vmem>>, vector<1x1x32xf32>
    %79 = vector.shape_cast %78 : vector<1x1x32xf32> to vector<1x32xf32>
    %80 = vector.broadcast %79 : vector<1x32xf32> to vector<54x32xf32>
    %81 = arith.addf %77, %80 : vector<54x32xf32>
    %82 = arith.mulf %81, %16 : vector<54x32xf32>
    %83 = arith.addf %82, %17 : vector<54x32xf32>
    %84 = math.tanh %83 : vector<54x32xf32>
    %85 = arith.truncf %64 : vector<54x32xf32> to vector<54x32xbf16>
    %c0_59 = arith.constant 0 : index
    %c0_60 = arith.constant 0 : index
    %c0_61 = arith.constant 0 : index
    %86 = vector.load %arg15[%c0_59, %c0_60, %c0_61] : memref<2x32x32xbf16, #tpu.memory_space<vmem>>, vector<1x32x32xbf16>
    %87 = vector.shape_cast %86 : vector<1x32x32xbf16> to vector<32x32xbf16>
    %cst_62 = arith.constant dense<0.000000e+00> : vector<54x32xf32>
    %88 = tpu.matmul %85, %87, %cst_62 {dimension_numbers = #tpu.dot_dimension_numbers<[1], [0], [0], [1], [0, 0, 1, 1], [], []>} : vector<54x32xbf16>, vector<32x32xbf16>, vector<54x32xf32> -> vector<54x32xf32>
    %89 = arith.truncf %84 : vector<54x32xf32> to vector<54x32xbf16>
    %c1_63 = arith.constant 1 : index
    %c0_64 = arith.constant 0 : index
    %c0_65 = arith.constant 0 : index
    %90 = vector.load %arg15[%c1_63, %c0_64, %c0_65] : memref<2x32x32xbf16, #tpu.memory_space<vmem>>, vector<1x32x32xbf16>
    %91 = vector.shape_cast %90 : vector<1x32x32xbf16> to vector<32x32xbf16>
    %cst_66 = arith.constant dense<0.000000e+00> : vector<54x32xf32>
    %92 = tpu.matmul %89, %91, %cst_66 {dimension_numbers = #tpu.dot_dimension_numbers<[1], [0], [0], [1], [0, 0, 1, 1], [], []>} : vector<54x32xbf16>, vector<32x32xbf16>, vector<54x32xf32> -> vector<54x32xf32>
    %93 = arith.addf %88, %92 : vector<54x32xf32>
    %c0_67 = arith.constant 0 : index
    %c0_68 = arith.constant 0 : index
    %94 = vector.load %arg16[%c0_67, %c0_68] : memref<1x32xf32, #tpu.memory_space<vmem>>, vector<1x32xf32>
    %95 = vector.broadcast %94 : vector<1x32xf32> to vector<54x32xf32>
    %96 = arith.addf %93, %95 : vector<54x32xf32>
    %c0_69 = arith.constant 0 : index
    %c0_70 = arith.constant 0 : index
    %97 = vector.load %arg17[%c0_69, %c0_70] : memref<54x32xf32, #tpu.memory_space<vmem>>, vector<54x32xf32>
    %98 = arith.mulf %96, %97 : vector<54x32xf32>
    %c0_71 = arith.constant 0 : index
    %c0_72 = arith.constant 0 : index
    %99 = vector.load %arg18[%c0_71, %c0_72] : memref<54x32xf32, #tpu.memory_space<vmem>>, vector<54x32xf32>
    %100 = arith.addf %98, %99 : vector<54x32xf32>
    %101 = arith.addf %100, %15 : vector<54x32xf32>
    %c0_73 = arith.constant 0 : index
    %c0_74 = arith.constant 0 : index
    %102 = vector.load %arg25[%c0_73, %c0_74] : memref<54x32xf32, #tpu.memory_space<vmem>>, vector<54x32xf32>
    %c0_75 = arith.constant 0 : index
    %c0_76 = arith.constant 0 : index
    %103 = vector.load %arg26[%c0_75, %c0_76] : memref<54x32xf32, #tpu.memory_space<vmem>>, vector<54x32xf32>
    %104 = arith.truncf %101 : vector<54x32xf32> to vector<54x32xbf16>
    %c0_77 = arith.constant 0 : index
    %c0_78 = arith.constant 0 : index
    %105 = vector.load %arg20[%c0_77, %c0_78] : memref<32x64xbf16, #tpu.memory_space<vmem>>, vector<32x64xbf16>
    %cst_79 = arith.constant dense<0.000000e+00> : vector<54x64xf32>
    %106 = tpu.matmul %104, %105, %cst_79 {dimension_numbers = #tpu.dot_dimension_numbers<[1], [0], [0], [1], [0, 0, 1, 1], [], []>} : vector<54x32xbf16>, vector<32x64xbf16>, vector<54x64xf32> -> vector<54x64xf32>
    %c0_80 = arith.constant 0 : index
    %c0_81 = arith.constant 0 : index
    %c0_82 = arith.constant 0 : index
    %107 = vector.load %arg19[%c0_80, %c0_81, %c0_82] : memref<2x54x54xbf16, #tpu.memory_space<vmem>>, vector<1x54x54xbf16>
    %108 = vector.shape_cast %107 : vector<1x54x54xbf16> to vector<54x54xbf16>
    %109 = vector.extract_strided_slice %106 {offsets = [0, 0], sizes = [54, 32], strides = [1, 1]} : vector<54x64xf32> to vector<54x32xf32>
    %110 = arith.truncf %109 : vector<54x32xf32> to vector<54x32xbf16>
    %cst_83 = arith.constant dense<0.000000e+00> : vector<54x32xf32>
    %111 = tpu.matmul %108, %110, %cst_83 {dimension_numbers = #tpu.dot_dimension_numbers<[1], [0], [0], [1], [0, 0, 1, 1], [], []>} : vector<54x54xbf16>, vector<54x32xbf16>, vector<54x32xf32> -> vector<54x32xf32>
    %c0_84 = arith.constant 0 : index
    %c0_85 = arith.constant 0 : index
    %c0_86 = arith.constant 0 : index
    %112 = vector.load %arg21[%c0_84, %c0_85, %c0_86] : memref<2x1x32xf32, #tpu.memory_space<vmem>>, vector<1x1x32xf32>
    %113 = vector.shape_cast %112 : vector<1x1x32xf32> to vector<1x32xf32>
    %114 = vector.broadcast %113 : vector<1x32xf32> to vector<54x32xf32>
    %115 = arith.addf %111, %114 : vector<54x32xf32>
    %116 = arith.mulf %115, %102 : vector<54x32xf32>
    %117 = arith.addf %116, %103 : vector<54x32xf32>
    %118 = math.tanh %117 : vector<54x32xf32>
    %c1_87 = arith.constant 1 : index
    %c0_88 = arith.constant 0 : index
    %c0_89 = arith.constant 0 : index
    %119 = vector.load %arg19[%c1_87, %c0_88, %c0_89] : memref<2x54x54xbf16, #tpu.memory_space<vmem>>, vector<1x54x54xbf16>
    %120 = vector.shape_cast %119 : vector<1x54x54xbf16> to vector<54x54xbf16>
    %121 = vector.extract_strided_slice %106 {offsets = [0, 32], sizes = [54, 32], strides = [1, 1]} : vector<54x64xf32> to vector<54x32xf32>
    %122 = arith.truncf %121 : vector<54x32xf32> to vector<54x32xbf16>
    %cst_90 = arith.constant dense<0.000000e+00> : vector<54x32xf32>
    %123 = tpu.matmul %120, %122, %cst_90 {dimension_numbers = #tpu.dot_dimension_numbers<[1], [0], [0], [1], [0, 0, 1, 1], [], []>} : vector<54x54xbf16>, vector<54x32xbf16>, vector<54x32xf32> -> vector<54x32xf32>
    %c1_91 = arith.constant 1 : index
    %c0_92 = arith.constant 0 : index
    %c0_93 = arith.constant 0 : index
    %124 = vector.load %arg21[%c1_91, %c0_92, %c0_93] : memref<2x1x32xf32, #tpu.memory_space<vmem>>, vector<1x1x32xf32>
    %125 = vector.shape_cast %124 : vector<1x1x32xf32> to vector<1x32xf32>
    %126 = vector.broadcast %125 : vector<1x32xf32> to vector<54x32xf32>
    %127 = arith.addf %123, %126 : vector<54x32xf32>
    %128 = arith.mulf %127, %102 : vector<54x32xf32>
    %129 = arith.addf %128, %103 : vector<54x32xf32>
    %130 = math.tanh %129 : vector<54x32xf32>
    %c0_94 = arith.constant 0 : index
    %c0_95 = arith.constant 0 : index
    %c0_96 = arith.constant 0 : index
    %131 = vector.load %arg22[%c0_94, %c0_95, %c0_96] : memref<2x54x54xbf16, #tpu.memory_space<vmem>>, vector<1x54x54xbf16>
    %132 = vector.shape_cast %131 : vector<1x54x54xbf16> to vector<54x54xbf16>
    %133 = arith.truncf %118 : vector<54x32xf32> to vector<54x32xbf16>
    %cst_97 = arith.constant dense<0.000000e+00> : vector<54x32xf32>
    %134 = tpu.matmul %132, %133, %cst_97 {dimension_numbers = #tpu.dot_dimension_numbers<[1], [0], [0], [1], [0, 0, 1, 1], [], []>} : vector<54x54xbf16>, vector<54x32xbf16>, vector<54x32xf32> -> vector<54x32xf32>
    %cst_98 = arith.constant 8.000000e-01 : f32
    %135 = vector.broadcast %cst_98 : f32 to vector<54x32xf32>
    %136 = arith.mulf %135, %134 : vector<54x32xf32>
    %cst_99 = arith.constant 2.000000e-01 : f32
    %137 = vector.broadcast %cst_99 : f32 to vector<54x32xf32>
    %138 = arith.mulf %137, %118 : vector<54x32xf32>
    %139 = arith.addf %136, %138 : vector<54x32xf32>
    %140 = arith.truncf %139 : vector<54x32xf32> to vector<54x32xbf16>
    %c0_100 = arith.constant 0 : index
    %c0_101 = arith.constant 0 : index
    %c0_102 = arith.constant 0 : index
    %141 = vector.load %arg23[%c0_100, %c0_101, %c0_102] : memref<2x32x32xbf16, #tpu.memory_space<vmem>>, vector<1x32x32xbf16>
    %142 = vector.shape_cast %141 : vector<1x32x32xbf16> to vector<32x32xbf16>
    %cst_103 = arith.constant dense<0.000000e+00> : vector<54x32xf32>
    %143 = tpu.matmul %140, %142, %cst_103 {dimension_numbers = #tpu.dot_dimension_numbers<[1], [0], [0], [1], [0, 0, 1, 1], [], []>} : vector<54x32xbf16>, vector<32x32xbf16>, vector<54x32xf32> -> vector<54x32xf32>
    %c0_104 = arith.constant 0 : index
    %c0_105 = arith.constant 0 : index
    %c0_106 = arith.constant 0 : index
    %144 = vector.load %arg24[%c0_104, %c0_105, %c0_106] : memref<2x1x32xf32, #tpu.memory_space<vmem>>, vector<1x1x32xf32>
    %145 = vector.shape_cast %144 : vector<1x1x32xf32> to vector<1x32xf32>
    %146 = vector.broadcast %145 : vector<1x32xf32> to vector<54x32xf32>
    %147 = arith.addf %143, %146 : vector<54x32xf32>
    %148 = arith.mulf %147, %102 : vector<54x32xf32>
    %149 = arith.addf %148, %103 : vector<54x32xf32>
    %150 = math.tanh %149 : vector<54x32xf32>
    %c1_107 = arith.constant 1 : index
    %c0_108 = arith.constant 0 : index
    %c0_109 = arith.constant 0 : index
    %151 = vector.load %arg22[%c1_107, %c0_108, %c0_109] : memref<2x54x54xbf16, #tpu.memory_space<vmem>>, vector<1x54x54xbf16>
    %152 = vector.shape_cast %151 : vector<1x54x54xbf16> to vector<54x54xbf16>
    %153 = arith.truncf %130 : vector<54x32xf32> to vector<54x32xbf16>
    %cst_110 = arith.constant dense<0.000000e+00> : vector<54x32xf32>
    %154 = tpu.matmul %152, %153, %cst_110 {dimension_numbers = #tpu.dot_dimension_numbers<[1], [0], [0], [1], [0, 0, 1, 1], [], []>} : vector<54x54xbf16>, vector<54x32xbf16>, vector<54x32xf32> -> vector<54x32xf32>
    %cst_111 = arith.constant 8.000000e-01 : f32
    %155 = vector.broadcast %cst_111 : f32 to vector<54x32xf32>
    %156 = arith.mulf %155, %154 : vector<54x32xf32>
    %cst_112 = arith.constant 2.000000e-01 : f32
    %157 = vector.broadcast %cst_112 : f32 to vector<54x32xf32>
    %158 = arith.mulf %157, %130 : vector<54x32xf32>
    %159 = arith.addf %156, %158 : vector<54x32xf32>
    %160 = arith.truncf %159 : vector<54x32xf32> to vector<54x32xbf16>
    %c1_113 = arith.constant 1 : index
    %c0_114 = arith.constant 0 : index
    %c0_115 = arith.constant 0 : index
    %161 = vector.load %arg23[%c1_113, %c0_114, %c0_115] : memref<2x32x32xbf16, #tpu.memory_space<vmem>>, vector<1x32x32xbf16>
    %162 = vector.shape_cast %161 : vector<1x32x32xbf16> to vector<32x32xbf16>
    %cst_116 = arith.constant dense<0.000000e+00> : vector<54x32xf32>
    %163 = tpu.matmul %160, %162, %cst_116 {dimension_numbers = #tpu.dot_dimension_numbers<[1], [0], [0], [1], [0, 0, 1, 1], [], []>} : vector<54x32xbf16>, vector<32x32xbf16>, vector<54x32xf32> -> vector<54x32xf32>
    %c1_117 = arith.constant 1 : index
    %c0_118 = arith.constant 0 : index
    %c0_119 = arith.constant 0 : index
    %164 = vector.load %arg24[%c1_117, %c0_118, %c0_119] : memref<2x1x32xf32, #tpu.memory_space<vmem>>, vector<1x1x32xf32>
    %165 = vector.shape_cast %164 : vector<1x1x32xf32> to vector<1x32xf32>
    %166 = vector.broadcast %165 : vector<1x32xf32> to vector<54x32xf32>
    %167 = arith.addf %163, %166 : vector<54x32xf32>
    %168 = arith.mulf %167, %102 : vector<54x32xf32>
    %169 = arith.addf %168, %103 : vector<54x32xf32>
    %170 = math.tanh %169 : vector<54x32xf32>
    %171 = arith.truncf %150 : vector<54x32xf32> to vector<54x32xbf16>
    %c0_120 = arith.constant 0 : index
    %c0_121 = arith.constant 0 : index
    %c0_122 = arith.constant 0 : index
    %172 = vector.load %arg27[%c0_120, %c0_121, %c0_122] : memref<2x32x32xbf16, #tpu.memory_space<vmem>>, vector<1x32x32xbf16>
    %173 = vector.shape_cast %172 : vector<1x32x32xbf16> to vector<32x32xbf16>
    %cst_123 = arith.constant dense<0.000000e+00> : vector<54x32xf32>
    %174 = tpu.matmul %171, %173, %cst_123 {dimension_numbers = #tpu.dot_dimension_numbers<[1], [0], [0], [1], [0, 0, 1, 1], [], []>} : vector<54x32xbf16>, vector<32x32xbf16>, vector<54x32xf32> -> vector<54x32xf32>
    %175 = arith.truncf %170 : vector<54x32xf32> to vector<54x32xbf16>
    %c1_124 = arith.constant 1 : index
    %c0_125 = arith.constant 0 : index
    %c0_126 = arith.constant 0 : index
    %176 = vector.load %arg27[%c1_124, %c0_125, %c0_126] : memref<2x32x32xbf16, #tpu.memory_space<vmem>>, vector<1x32x32xbf16>
    %177 = vector.shape_cast %176 : vector<1x32x32xbf16> to vector<32x32xbf16>
    %cst_127 = arith.constant dense<0.000000e+00> : vector<54x32xf32>
    %178 = tpu.matmul %175, %177, %cst_127 {dimension_numbers = #tpu.dot_dimension_numbers<[1], [0], [0], [1], [0, 0, 1, 1], [], []>} : vector<54x32xbf16>, vector<32x32xbf16>, vector<54x32xf32> -> vector<54x32xf32>
    %179 = arith.addf %174, %178 : vector<54x32xf32>
    %c0_128 = arith.constant 0 : index
    %c0_129 = arith.constant 0 : index
    %180 = vector.load %arg28[%c0_128, %c0_129] : memref<1x32xf32, #tpu.memory_space<vmem>>, vector<1x32xf32>
    %181 = vector.broadcast %180 : vector<1x32xf32> to vector<54x32xf32>
    %182 = arith.addf %179, %181 : vector<54x32xf32>
    %c0_130 = arith.constant 0 : index
    %c0_131 = arith.constant 0 : index
    %183 = vector.load %arg29[%c0_130, %c0_131] : memref<54x32xf32, #tpu.memory_space<vmem>>, vector<54x32xf32>
    %184 = arith.mulf %182, %183 : vector<54x32xf32>
    %c0_132 = arith.constant 0 : index
    %c0_133 = arith.constant 0 : index
    %185 = vector.load %arg30[%c0_132, %c0_133] : memref<54x32xf32, #tpu.memory_space<vmem>>, vector<54x32xf32>
    %186 = arith.addf %184, %185 : vector<54x32xf32>
    %187 = arith.addf %186, %101 : vector<54x32xf32>
    %188 = arith.truncf %187 : vector<54x32xf32> to vector<54x32xbf16>
    %c0_134 = arith.constant 0 : index
    %c0_135 = arith.constant 0 : index
    %189 = vector.load %arg32[%c0_134, %c0_135] : memref<32x16xbf16, #tpu.memory_space<vmem>>, vector<32x16xbf16>
    %cst_136 = arith.constant dense<0.000000e+00> : vector<54x16xf32>
    %190 = tpu.matmul %188, %189, %cst_136 {dimension_numbers = #tpu.dot_dimension_numbers<[1], [0], [0], [1], [0, 0, 1, 1], [], []>} : vector<54x32xbf16>, vector<32x16xbf16>, vector<54x16xf32> -> vector<54x16xf32>
    %c0_137 = arith.constant 0 : index
    %c0_138 = arith.constant 0 : index
    %191 = vector.load %arg31[%c0_137, %c0_138] : memref<54x54xbf16, #tpu.memory_space<vmem>>, vector<54x54xbf16>
    %192 = arith.truncf %190 : vector<54x16xf32> to vector<54x16xbf16>
    %cst_139 = arith.constant dense<0.000000e+00> : vector<54x16xf32>
    %193 = tpu.matmul %191, %192, %cst_139 {dimension_numbers = #tpu.dot_dimension_numbers<[1], [0], [0], [1], [0, 0, 1, 1], [], []>} : vector<54x54xbf16>, vector<54x16xbf16>, vector<54x16xf32> -> vector<54x16xf32>
    %c0_140 = arith.constant 0 : index
    %c0_141 = arith.constant 0 : index
    %194 = vector.load %arg33[%c0_140, %c0_141] : memref<1x16xf32, #tpu.memory_space<vmem>>, vector<1x16xf32>
    %195 = vector.broadcast %194 : vector<1x16xf32> to vector<54x16xf32>
    %196 = arith.addf %193, %195 : vector<54x16xf32>
    %197 = arith.addf %196, %1 : vector<54x16xf32>
    %c0_142 = arith.constant 0 : index
    %c0_143 = arith.constant 0 : index
    %c0_144 = arith.constant 0 : index
    %198 = vector.load %arg34[%c0_142, %c0_143, %c0_144] : memref<1x54x16xf32, #tpu.memory_space<vmem>>, vector<1x54x16xf32>
    %199 = vector.shape_cast %198 : vector<1x54x16xf32> to vector<54x16xf32>
    %200 = vector.shape_cast %197 : vector<54x16xf32> to vector<1x54x16xf32>
    tpu.vector_store %arg34[%c0_142, %c0_143, %c0_144], %200 {strides = array<i32>} : memref<1x54x16xf32, #tpu.memory_space<vmem>>, vector<1x54x16xf32>,
    return
  }
  func.func @transform_0(%arg0: i32) -> (i32, i32, i32) {
    %c0_i32 = arith.constant 0 : i32
    %c0_i32_0 = arith.constant 0 : i32
    %c0_i32_1 = arith.constant 0 : i32
    return %arg0, %c0_i32, %c0_i32_0 : i32, i32, i32
  }
  func.func @transform_1(%arg0: i32) -> (i32, i32) {
    %c0_i32 = arith.constant 0 : i32
    %c0_i32_0 = arith.constant 0 : i32
    %c0_i32_1 = arith.constant 0 : i32
    return %c0_i32, %c0_i32_0 : i32, i32
  }
  func.func @transform_2(%arg0: i32) -> (i32, i32) {
    %c0_i32 = arith.constant 0 : i32
    %c0_i32_0 = arith.constant 0 : i32
    %c0_i32_1 = arith.constant 0 : i32
    return %c0_i32, %c0_i32_0 : i32, i32
  }
  func.func @transform_3(%arg0: i32) -> (i32, i32) {
    %c0_i32 = arith.constant 0 : i32
    %c0_i32_0 = arith.constant 0 : i32
    %c0_i32_1 = arith.constant 0 : i32
    return %c0_i32, %c0_i32_0 : i32, i32
  }
  func.func @transform_4(%arg0: i32) -> (i32, i32) {
    %c0_i32 = arith.constant 0 : i32
    %c0_i32_0 = arith.constant 0 : i32
    %c0_i32_1 = arith.constant 0 : i32
    return %c0_i32, %c0_i32_0 : i32, i32
  }
  func.func @transform_5(%arg0: i32) -> (i32, i32) {
    %c0_i32 = arith.constant 0 : i32
    %c0_i32_0 = arith.constant 0 : i32
    %c0_i32_1 = arith.constant 0 : i32
    return %c0_i32, %c0_i32_0 : i32, i32
  }
  func.func @transform_6(%arg0: i32) -> (i32, i32, i32) {
    %c0_i32 = arith.constant 0 : i32
    %c0_i32_0 = arith.constant 0 : i32
    %c0_i32_1 = arith.constant 0 : i32
    %c0_i32_2 = arith.constant 0 : i32
    return %c0_i32, %c0_i32_0, %c0_i32_1 : i32, i32, i32
  }
  func.func @transform_7(%arg0: i32) -> (i32, i32) {
    %c0_i32 = arith.constant 0 : i32
    %c0_i32_0 = arith.constant 0 : i32
    %c0_i32_1 = arith.constant 0 : i32
    return %c0_i32, %c0_i32_0 : i32, i32
  }
  func.func @transform_8(%arg0: i32) -> (i32, i32, i32) {
    %c0_i32 = arith.constant 0 : i32
    %c0_i32_0 = arith.constant 0 : i32
    %c0_i32_1 = arith.constant 0 : i32
    %c0_i32_2 = arith.constant 0 : i32
    return %c0_i32, %c0_i32_0, %c0_i32_1 : i32, i32, i32
  }
  func.func @transform_9(%arg0: i32) -> (i32, i32, i32) {
    %c0_i32 = arith.constant 0 : i32
    %c0_i32_0 = arith.constant 0 : i32
    %c0_i32_1 = arith.constant 0 : i32
    %c0_i32_2 = arith.constant 0 : i32
    return %c0_i32, %c0_i32_0, %c0_i32_1 : i32, i32, i32
  }
  func.func @transform_10(%arg0: i32) -> (i32, i32, i32) {
    %c0_i32 = arith.constant 0 : i32
    %c0_i32_0 = arith.constant 0 : i32
    %c0_i32_1 = arith.constant 0 : i32
    %c0_i32_2 = arith.constant 0 : i32
    return %c0_i32, %c0_i32_0, %c0_i32_1 : i32, i32, i32
  }
  func.func @transform_11(%arg0: i32) -> (i32, i32, i32) {
    %c0_i32 = arith.constant 0 : i32
    %c0_i32_0 = arith.constant 0 : i32
    %c0_i32_1 = arith.constant 0 : i32
    %c0_i32_2 = arith.constant 0 : i32
    return %c0_i32, %c0_i32_0, %c0_i32_1 : i32, i32, i32
  }
  func.func @transform_12(%arg0: i32) -> (i32, i32) {
    %c0_i32 = arith.constant 0 : i32
    %c0_i32_0 = arith.constant 0 : i32
    %c0_i32_1 = arith.constant 0 : i32
    return %c0_i32, %c0_i32_0 : i32, i32
  }
  func.func @transform_13(%arg0: i32) -> (i32, i32) {
    %c0_i32 = arith.constant 0 : i32
    %c0_i32_0 = arith.constant 0 : i32
    %c0_i32_1 = arith.constant 0 : i32
    return %c0_i32, %c0_i32_0 : i32, i32
  }
  func.func @transform_14(%arg0: i32) -> (i32, i32, i32) {
    %c0_i32 = arith.constant 0 : i32
    %c0_i32_0 = arith.constant 0 : i32
    %c0_i32_1 = arith.constant 0 : i32
    %c0_i32_2 = arith.constant 0 : i32
    return %c0_i32, %c0_i32_0, %c0_i32_1 : i32, i32, i32
  }
  func.func @transform_15(%arg0: i32) -> (i32, i32) {
    %c0_i32 = arith.constant 0 : i32
    %c0_i32_0 = arith.constant 0 : i32
    %c0_i32_1 = arith.constant 0 : i32
    return %c0_i32, %c0_i32_0 : i32, i32
  }
  func.func @transform_16(%arg0: i32) -> (i32, i32) {
    %c0_i32 = arith.constant 0 : i32
    %c0_i32_0 = arith.constant 0 : i32
    %c0_i32_1 = arith.constant 0 : i32
    return %c0_i32, %c0_i32_0 : i32, i32
  }
  func.func @transform_17(%arg0: i32) -> (i32, i32) {
    %c0_i32 = arith.constant 0 : i32
    %c0_i32_0 = arith.constant 0 : i32
    %c0_i32_1 = arith.constant 0 : i32
    return %c0_i32, %c0_i32_0 : i32, i32
  }
  func.func @transform_18(%arg0: i32) -> (i32, i32, i32) {
    %c0_i32 = arith.constant 0 : i32
    %c0_i32_0 = arith.constant 0 : i32
    %c0_i32_1 = arith.constant 0 : i32
    %c0_i32_2 = arith.constant 0 : i32
    return %c0_i32, %c0_i32_0, %c0_i32_1 : i32, i32, i32
  }
  func.func @transform_19(%arg0: i32) -> (i32, i32) {
    %c0_i32 = arith.constant 0 : i32
    %c0_i32_0 = arith.constant 0 : i32
    %c0_i32_1 = arith.constant 0 : i32
    return %c0_i32, %c0_i32_0 : i32, i32
  }
  func.func @transform_20(%arg0: i32) -> (i32, i32, i32) {
    %c0_i32 = arith.constant 0 : i32
    %c0_i32_0 = arith.constant 0 : i32
    %c0_i32_1 = arith.constant 0 : i32
    %c0_i32_2 = arith.constant 0 : i32
    return %c0_i32, %c0_i32_0, %c0_i32_1 : i32, i32, i32
  }
  func.func @transform_21(%arg0: i32) -> (i32, i32, i32) {
    %c0_i32 = arith.constant 0 : i32
    %c0_i32_0 = arith.constant 0 : i32
    %c0_i32_1 = arith.constant 0 : i32
    %c0_i32_2 = arith.constant 0 : i32
    return %c0_i32, %c0_i32_0, %c0_i32_1 : i32, i32, i32
  }
  func.func @transform_22(%arg0: i32) -> (i32, i32, i32) {
    %c0_i32 = arith.constant 0 : i32
    %c0_i32_0 = arith.constant 0 : i32
    %c0_i32_1 = arith.constant 0 : i32
    %c0_i32_2 = arith.constant 0 : i32
    return %c0_i32, %c0_i32_0, %c0_i32_1 : i32, i32, i32
  }
  func.func @transform_23(%arg0: i32) -> (i32, i32, i32) {
    %c0_i32 = arith.constant 0 : i32
    %c0_i32_0 = arith.constant 0 : i32
    %c0_i32_1 = arith.constant 0 : i32
    %c0_i32_2 = arith.constant 0 : i32
    return %c0_i32, %c0_i32_0, %c0_i32_1 : i32, i32, i32
  }
  func.func @transform_24(%arg0: i32) -> (i32, i32) {
    %c0_i32 = arith.constant 0 : i32
    %c0_i32_0 = arith.constant 0 : i32
    %c0_i32_1 = arith.constant 0 : i32
    return %c0_i32, %c0_i32_0 : i32, i32
  }
  func.func @transform_25(%arg0: i32) -> (i32, i32) {
    %c0_i32 = arith.constant 0 : i32
    %c0_i32_0 = arith.constant 0 : i32
    %c0_i32_1 = arith.constant 0 : i32
    return %c0_i32, %c0_i32_0 : i32, i32
  }
  func.func @transform_26(%arg0: i32) -> (i32, i32, i32) {
    %c0_i32 = arith.constant 0 : i32
    %c0_i32_0 = arith.constant 0 : i32
    %c0_i32_1 = arith.constant 0 : i32
    %c0_i32_2 = arith.constant 0 : i32
    return %c0_i32, %c0_i32_0, %c0_i32_1 : i32, i32, i32
  }
  func.func @transform_27(%arg0: i32) -> (i32, i32) {
    %c0_i32 = arith.constant 0 : i32
    %c0_i32_0 = arith.constant 0 : i32
    %c0_i32_1 = arith.constant 0 : i32
    return %c0_i32, %c0_i32_0 : i32, i32
  }
  func.func @transform_28(%arg0: i32) -> (i32, i32) {
    %c0_i32 = arith.constant 0 : i32
    %c0_i32_0 = arith.constant 0 : i32
    %c0_i32_1 = arith.constant 0 : i32
    return %c0_i32, %c0_i32_0 : i32, i32
  }
  func.func @transform_29(%arg0: i32) -> (i32, i32) {
    %c0_i32 = arith.constant 0 : i32
    %c0_i32_0 = arith.constant 0 : i32
    %c0_i32_1 = arith.constant 0 : i32
    return %c0_i32, %c0_i32_0 : i32, i32
  }
  func.func @transform_30(%arg0: i32) -> (i32, i32) {
    %c0_i32 = arith.constant 0 : i32
    %c0_i32_0 = arith.constant 0 : i32
    %c0_i32_1 = arith.constant 0 : i32
    return %c0_i32, %c0_i32_0 : i32, i32
  }
  func.func @transform_31(%arg0: i32) -> (i32, i32) {
    %c0_i32 = arith.constant 0 : i32
    %c0_i32_0 = arith.constant 0 : i32
    %c0_i32_1 = arith.constant 0 : i32
    return %c0_i32, %c0_i32_0 : i32, i32
  }
  func.func @transform_32(%arg0: i32) -> (i32, i32) {
    %c0_i32 = arith.constant 0 : i32
    %c0_i32_0 = arith.constant 0 : i32
    %c0_i32_1 = arith.constant 0 : i32
    return %c0_i32, %c0_i32_0 : i32, i32
  }
  func.func @transform_33(%arg0: i32) -> (i32, i32, i32) {
    %c0_i32 = arith.constant 0 : i32
    %c0_i32_0 = arith.constant 0 : i32
    %c0_i32_1 = arith.constant 0 : i32
    return %arg0, %c0_i32, %c0_i32_0 : i32, i32, i32
  }
}

</mosaic_0001>

<llo_original>
// kernel: gcn_forward.1
$region0: #{gcn_forward.1}
  #allocation0 [shape = 'u32[]', space=smem, size = 0x4, offset = 0x4, fixed_abs, tag = 'smem constant byte address 0x4 - core index']
  #allocation1 [shape = 'u32[144,128]{1,0:T(1,128)}', space=vmem, size = 0x12000, scoped, tag = 'internal scratch']
  %s0 = inlined_call_operand.smem [shape: u32[34], index: -1, kind: input, shape index: {}]
  %s1 = sld [smem:[%s0]]
  %s2 = scalar_lea.smem %s0, 1
  %s3 = sld [smem:[%s2]]
  %s4 = scalar_lea.smem %s0, 2
  %s5 = sld [smem:[%s4]]
  %s6 = scalar_lea.smem %s0, 3
  %s7 = sld [smem:[%s6]]
  %s8 = scalar_lea.smem %s0, 4
  %s9 = sld [smem:[%s8]]
  %s10 = scalar_lea.smem %s0, 5
  %s11 = sld [smem:[%s10]]
  %s12 = scalar_lea.smem %s0, 6
  %s13 = sld [smem:[%s12]]
  %s14 = scalar_lea.smem %s0, 7
  %s15 = sld [smem:[%s14]]
  %s16 = scalar_lea.smem %s0, 8
  %s17 = sld [smem:[%s16]]
  %s18 = scalar_lea.smem %s0, 9
  %s19 = sld [smem:[%s18]]
  %s20 = scalar_lea.smem %s0, 10
  %s21 = sld [smem:[%s20]]
  %s22 = scalar_lea.smem %s0, 11
  %s23 = sld [smem:[%s22]]
  %s24 = scalar_lea.smem %s0, 12
  %s25 = sld [smem:[%s24]]
  %s26 = scalar_lea.smem %s0, 13
  %s27 = sld [smem:[%s26]]
  %s28 = scalar_lea.smem %s0, 14
  %s29 = sld [smem:[%s28]]
  %s30 = scalar_lea.smem %s0, 15
  %s31 = sld [smem:[%s30]]
  %s32 = scalar_lea.smem %s0, 16
  %s33 = sld [smem:[%s32]]
  %s34 = scalar_lea.smem %s0, 17
  %s35 = sld [smem:[%s34]]
  %s36 = scalar_lea.smem %s0, 18
  %s37 = sld [smem:[%s36]]
  %s38 = scalar_lea.smem %s0, 19
  %s39 = sld [smem:[%s38]]
  %s40 = scalar_lea.smem %s0, 20
  %s41 = sld [smem:[%s40]]
  %s42 = scalar_lea.smem %s0, 21
  %s43 = sld [smem:[%s42]]
  %s44 = scalar_lea.smem %s0, 22
  %s45 = sld [smem:[%s44]]
  %s46 = scalar_lea.smem %s0, 23
  %s47 = sld [smem:[%s46]]
  %s48 = scalar_lea.smem %s0, 24
  %s49 = sld [smem:[%s48]]
  %s50 = scalar_lea.smem %s0, 25
  %s51 = sld [smem:[%s50]]
  %s52 = scalar_lea.smem %s0, 26
  %s53 = sld [smem:[%s52]]
  %s54 = scalar_lea.smem %s0, 27
  %s55 = sld [smem:[%s54]]
  %s56 = scalar_lea.smem %s0, 28
  %s57 = sld [smem:[%s56]]
  %s58 = scalar_lea.smem %s0, 29
  %s59 = sld [smem:[%s58]]
  %s60 = scalar_lea.smem %s0, 30
  %s61 = sld [smem:[%s60]]
  %s62 = scalar_lea.smem %s0, 31
  %s63 = sld [smem:[%s62]]
  %s64 = scalar_lea.smem %s0, 32
  %s65 = sld [smem:[%s64]]
  %s66 = scalar_lea.smem %s0, 33
  %s67 = sld [smem:[%s66]]
  %s68 = sld [smem:[#allocation0]]
  $region165: #{gcn_forward.1} parent=0
    _
  %s70 = ssub.s32 1, %s68
  %s71 = scalar_select 0, %s70, %s68
  loop: start=0, step=1, limit=4
  $region2: #{gcn_forward.1} parent=0 // loop_pre_header
    _
  $region3: #{gcn_forward.1} parent=0 // loop_header
    %s73 = sphi 0, %s77
    %p74 = scmp.ge.s32.totalorder %s73, 4
    %s83 = sphi 0, %s85
    %s86 = sphi 0, %s83
    %s87 = sphi 0, %s86
    %s103 = sphi 0, %s87
    %s107 = sphi 0, %s107
    %s109 = sphi 0, %s107
    %s110 = sphi 0, %s109
    %s124 = sphi 0, %s110
    %s128 = sphi 0, %s128
    %s130 = sphi 0, %s128
    %s131 = sphi 0, %s130
    %s145 = sphi 0, %s131
    %s149 = sphi 0, %s149
    %s151 = sphi 0, %s149
    %s152 = sphi 0, %s151
    %s166 = sphi 0, %s152
    %s170 = sphi 0, %s170
    %s172 = sphi 0, %s170
    %s173 = sphi 0, %s172
    %s187 = sphi 0, %s173
    %s191 = sphi 0, %s191
    %s193 = sphi 0, %s191
    %s194 = sphi 0, %s193
    %s208 = sphi 0, %s194
    %s212 = sphi 0, %s212
    %s214 = sphi 0, %s212
    %s215 = sphi 0, %s214
    %s229 = sphi 0, %s215
    %s233 = sphi 0, %s233
    %s235 = sphi 0, %s233
    %s236 = sphi 0, %s235
    %s250 = sphi 0, %s236
    %s254 = sphi 0, %s254
    %s256 = sphi 0, %s254
    %s257 = sphi 0, %s256
    %s271 = sphi 0, %s257
    %s275 = sphi 0, %s275
    %s277 = sphi 0, %s275
    %s278 = sphi 0, %s277
    %s292 = sphi 0, %s278
    %s296 = sphi 0, %s296
    %s298 = sphi 0, %s296
    %s299 = sphi 0, %s298
    %s313 = sphi 0, %s299
    %s317 = sphi 0, %s317
    %s319 = sphi 0, %s317
    %s320 = sphi 0, %s319
    %s334 = sphi 0, %s320
    %s338 = sphi 0, %s338
    %s340 = sphi 0, %s338
    %s341 = sphi 0, %s340
    %s355 = sphi 0, %s341
    %s359 = sphi 0, %s359
    %s361 = sphi 0, %s359
    %s362 = sphi 0, %s361
    %s376 = sphi 0, %s362
    %s380 = sphi 0, %s380
    %s382 = sphi 0, %s380
    %s383 = sphi 0, %s382
    %s397 = sphi 0, %s383
    %s401 = sphi 0, %s401
    %s403 = sphi 0, %s401
    %s404 = sphi 0, %s403
    %s418 = sphi 0, %s404
    %s422 = sphi 0, %s422
    %s424 = sphi 0, %s422
    %s425 = sphi 0, %s424
    %s439 = sphi 0, %s425
    %s443 = sphi 0, %s443
    %s445 = sphi 0, %s443
    %s446 = sphi 0, %s445
    %s460 = sphi 0, %s446
    %s464 = sphi 0, %s464
    %s466 = sphi 0, %s464
    %s467 = sphi 0, %s466
    %s481 = sphi 0, %s467
    %s485 = sphi 0, %s485
    %s487 = sphi 0, %s485
    %s488 = sphi 0, %s487
    %s502 = sphi 0, %s488
    %s506 = sphi 0, %s506
    %s508 = sphi 0, %s506
    %s509 = sphi 0, %s508
    %s523 = sphi 0, %s509
    %s527 = sphi 0, %s527
    %s529 = sphi 0, %s527
    %s530 = sphi 0, %s529
    %s544 = sphi 0, %s530
    %s548 = sphi 0, %s548
    %s550 = sphi 0, %s548
    %s551 = sphi 0, %s550
    %s565 = sphi 0, %s551
    %s569 = sphi 0, %s569
    %s571 = sphi 0, %s569
    %s572 = sphi 0, %s571
    %s586 = sphi 0, %s572
    %s590 = sphi 0, %s590
    %s592 = sphi 0, %s590
    %s593 = sphi 0, %s592
    %s607 = sphi 0, %s593
    %s611 = sphi 0, %s611
    %s613 = sphi 0, %s611
    %s614 = sphi 0, %s613
    %s628 = sphi 0, %s614
    %s632 = sphi 0, %s632
    %s634 = sphi 0, %s632
    %s635 = sphi 0, %s634
    %s649 = sphi 0, %s635
    %s653 = sphi 0, %s653
    %s655 = sphi 0, %s653
    %s656 = sphi 0, %s655
    %s670 = sphi 0, %s656
    %s674 = sphi 0, %s674
    %s676 = sphi 0, %s674
    %s677 = sphi 0, %s676
    %s691 = sphi 0, %s677
    %s695 = sphi 0, %s695
    %s697 = sphi 0, %s695
    %s698 = sphi 0, %s697
    %s712 = sphi 0, %s698
    %s716 = sphi 0, %s716
    %s718 = sphi 0, %s716
    %s719 = sphi 0, %s718
    %s733 = sphi 0, %s719
    %s737 = sphi 0, %s737
    %s739 = sphi 0, %s737
    %s740 = sphi 0, %s739
    %s754 = sphi 0, %s740
    %s758 = sphi 0, %s758
    %s760 = sphi 0, %s758
    %s761 = sphi 0, %s760
    %s775 = sphi 0, %s761
    %s781 = sphi 0, %s783
    %s784 = sphi 0, %s781
    %s785 = sphi 0, %s784
    %s801 = sphi 0, %s785
  $region4: #{gcn_forward.1} parent=0 // loop_header_branch
    %76 = sbr.rel (%p74) target = $region8
  $region5: #{gcn_forward.1} parent=0 // loop_body
    %s78 = ssub.s32 %s73, 1
    %s79 = ssub.s32 %s73, 2
    %s80 = sadd.s32 %s73, 1
    %s81 = ssub.s32 %s73, %s80
    %p82 = scmp.eq.s32.totalorder %s81, 0
    %s84 = sadd.s32 %s83, 1
    %s85 = scalar_select %p82, %s83, %s84
    %p88 = pneg %p82
    %p89 = scmp.eq.s32.totalorder %s73, 1
    %p90 = por %p88, %p89
    %p91 = scmp.ne.s32.totalorder %s83, %s86
    %p92 = scmp.eq.s32.totalorder %s73, 0
    %p93 = por %p91, %p92
    %p94 = scmp.ne.s32.totalorder %s83, %s86
    %p95 = scmp.eq.s32.totalorder %s78, 1
    %p96 = por %p94, %p95
    %p97 = scmp.ne.s32.totalorder %s86, %s87
    %p98 = scmp.eq.s32.totalorder %s78, 0
    %p99 = por %p97, %p98
    %p100 = scmp.ne.s32.totalorder %s86, %s87
    %p101 = scmp.eq.s32.totalorder %s79, 1
    %p102 = por %p100, %p101
    %p104 = scmp.ne.s32.totalorder %s87, %s103
    %p105 = scmp.eq.s32.totalorder %s79, 0
    %p106 = por %p104, %p105
    %s108 = sadd.s32 %s107, 1
    %p111 = scmp.eq.s32.totalorder %s73, 1
    %p112 = scmp.ne.s32.totalorder %s107, %s109
    %p113 = scmp.eq.s32.totalorder %s73, 0
    %p114 = por %p112, %p113
    %p115 = scmp.ne.s32.totalorder %s107, %s109
    %p116 = scmp.eq.s32.totalorder %s78, 1
    %p117 = por %p115, %p116
    %p118 = scmp.ne.s32.totalorder %s109, %s110
    %p119 = scmp.eq.s32.totalorder %s78, 0
    %p120 = por %p118, %p119
    %p121 = scmp.ne.s32.totalorder %s109, %s110
    %p122 = scmp.eq.s32.totalorder %s79, 1
    %p123 = por %p121, %p122
    %p125 = scmp.ne.s32.totalorder %s110, %s124
    %p126 = scmp.eq.s32.totalorder %s79, 0
    %p127 = por %p125, %p126
    %s129 = sadd.s32 %s128, 1
    %p132 = scmp.eq.s32.totalorder %s73, 1
    %p133 = scmp.ne.s32.totalorder %s128, %s130
    %p134 = scmp.eq.s32.totalorder %s73, 0
    %p135 = por %p133, %p134
    %p136 = scmp.ne.s32.totalorder %s128, %s130
    %p137 = scmp.eq.s32.totalorder %s78, 1
    %p138 = por %p136, %p137
    %p139 = scmp.ne.s32.totalorder %s130, %s131
    %p140 = scmp.eq.s32.totalorder %s78, 0
    %p141 = por %p139, %p140
    %p142 = scmp.ne.s32.totalorder %s130, %s131
    %p143 = scmp.eq.s32.totalorder %s79, 1
    %p144 = por %p142, %p143
    %p146 = scmp.ne.s32.totalorder %s131, %s145
    %p147 = scmp.eq.s32.totalorder %s79, 0
    %p148 = por %p146, %p147
    %s150 = sadd.s32 %s149, 1
    %p153 = scmp.eq.s32.totalorder %s73, 1
    %p154 = scmp.ne.s32.totalorder %s149, %s151
    %p155 = scmp.eq.s32.totalorder %s73, 0
    %p156 = por %p154, %p155
    %p157 = scmp.ne.s32.totalorder %s149, %s151
    %p158 = scmp.eq.s32.totalorder %s78, 1
    %p159 = por %p157, %p158
    %p160 = scmp.ne.s32.totalorder %s151, %s152
    %p161 = scmp.eq.s32.totalorder %s78, 0
    %p162 = por %p160, %p161
    %p163 = scmp.ne.s32.totalorder %s151, %s152
    %p164 = scmp.eq.s32.totalorder %s79, 1
    %p165 = por %p163, %p164
    %p167 = scmp.ne.s32.totalorder %s152, %s166
    %p168 = scmp.eq.s32.totalorder %s79, 0
    %p169 = por %p167, %p168
    %s171 = sadd.s32 %s170, 1
    %p174 = scmp.eq.s32.totalorder %s73, 1
    %p175 = scmp.ne.s32.totalorder %s170, %s172
    %p176 = scmp.eq.s32.totalorder %s73, 0
    %p177 = por %p175, %p176
    %p178 = scmp.ne.s32.totalorder %s170, %s172
    %p179 = scmp.eq.s32.totalorder %s78, 1
    %p180 = por %p178, %p179
    %p181 = scmp.ne.s32.totalorder %s172, %s173
    %p182 = scmp.eq.s32.totalorder %s78, 0
    %p183 = por %p181, %p182
    %p184 = scmp.ne.s32.totalorder %s172, %s173
    %p185 = scmp.eq.s32.totalorder %s79, 1
    %p186 = por %p184, %p185
    %p188 = scmp.ne.s32.totalorder %s173, %s187
    %p189 = scmp.eq.s32.totalorder %s79, 0
    %p190 = por %p188, %p189
    %s192 = sadd.s32 %s191, 1
    %p195 = scmp.eq.s32.totalorder %s73, 1
    %p196 = scmp.ne.s32.totalorder %s191, %s193
    %p197 = scmp.eq.s32.totalorder %s73, 0
    %p198 = por %p196, %p197
    %p199 = scmp.ne.s32.totalorder %s191, %s193
    %p200 = scmp.eq.s32.totalorder %s78, 1
    %p201 = por %p199, %p200
    %p202 = scmp.ne.s32.totalorder %s193, %s194
    %p203 = scmp.eq.s32.totalorder %s78, 0
    %p204 = por %p202, %p203
    %p205 = scmp.ne.s32.totalorder %s193, %s194
    %p206 = scmp.eq.s32.totalorder %s79, 1
    %p207 = por %p205, %p206
    %p209 = scmp.ne.s32.totalorder %s194, %s208
    %p210 = scmp.eq.s32.totalorder %s79, 0
    %p211 = por %p209, %p210
    %s213 = sadd.s32 %s212, 1
    %p216 = scmp.eq.s32.totalorder %s73, 1
    %p217 = scmp.ne.s32.totalorder %s212, %s214
    %p218 = scmp.eq.s32.totalorder %s73, 0
    %p219 = por %p217, %p218
    %p220 = scmp.ne.s32.totalorder %s212, %s214
    %p221 = scmp.eq.s32.totalorder %s78, 1
    %p222 = por %p220, %p221
    %p223 = scmp.ne.s32.totalorder %s214, %s215
    %p224 = scmp.eq.s32.totalorder %s78, 0
    %p225 = por %p223, %p224
    %p226 = scmp.ne.s32.totalorder %s214, %s215
    %p227 = scmp.eq.s32.totalorder %s79, 1
    %p228 = por %p226, %p227
    %p230 = scmp.ne.s32.totalorder %s215, %s229
    %p231 = scmp.eq.s32.totalorder %s79, 0
    %p232 = por %p230, %p231
    %s234 = sadd.s32 %s233, 1
    %p237 = scmp.eq.s32.totalorder %s73, 1
    %p238 = scmp.ne.s32.totalorder %s233, %s235
    %p239 = scmp.eq.s32.totalorder %s73, 0
    %p240 = por %p238, %p239
    %p241 = scmp.ne.s32.totalorder %s233, %s235
    %p242 = scmp.eq.s32.totalorder %s78, 1
    %p243 = por %p241, %p242
    %p244 = scmp.ne.s32.totalorder %s235, %s236
    %p245 = scmp.eq.s32.totalorder %s78, 0
    %p246 = por %p244, %p245
    %p247 = scmp.ne.s32.totalorder %s235, %s236
    %p248 = scmp.eq.s32.totalorder %s79, 1
    %p249 = por %p247, %p248
    %p251 = scmp.ne.s32.totalorder %s236, %s250
    %p252 = scmp.eq.s32.totalorder %s79, 0
    %p253 = por %p251, %p252
    %s255 = sadd.s32 %s254, 1
    %p258 = scmp.eq.s32.totalorder %s73, 1
    %p259 = scmp.ne.s32.totalorder %s254, %s256
    %p260 = scmp.eq.s32.totalorder %s73, 0
    %p261 = por %p259, %p260
    %p262 = scmp.ne.s32.totalorder %s254, %s256
    %p263 = scmp.eq.s32.totalorder %s78, 1
    %p264 = por %p262, %p263
    %p265 = scmp.ne.s32.totalorder %s256, %s257
    %p266 = scmp.eq.s32.totalorder %s78, 0
    %p267 = por %p265, %p266
    %p268 = scmp.ne.s32.totalorder %s256, %s257
    %p269 = scmp.eq.s32.totalorder %s79, 1
    %p270 = por %p268, %p269
    %p272 = scmp.ne.s32.totalorder %s257, %s271
    %p273 = scmp.eq.s32.totalorder %s79, 0
    %p274 = por %p272, %p273
    %s276 = sadd.s32 %s275, 1
    %p279 = scmp.eq.s32.totalorder %s73, 1
    %p280 = scmp.ne.s32.totalorder %s275, %s277
    %p281 = scmp.eq.s32.totalorder %s73, 0
    %p282 = por %p280, %p281
    %p283 = scmp.ne.s32.totalorder %s275, %s277
    %p284 = scmp.eq.s32.totalorder %s78, 1
    %p285 = por %p283, %p284
    %p286 = scmp.ne.s32.totalorder %s277, %s278
    %p287 = scmp.eq.s32.totalorder %s78, 0
    %p288 = por %p286, %p287
    %p289 = scmp.ne.s32.totalorder %s277, %s278
    %p290 = scmp.eq.s32.totalorder %s79, 1
    %p291 = por %p289, %p290
    %p293 = scmp.ne.s32.totalorder %s278, %s292
    %p294 = scmp.eq.s32.totalorder %s79, 0
    %p295 = por %p293, %p294
    %s297 = sadd.s32 %s296, 1
    %p300 = scmp.eq.s32.totalorder %s73, 1
    %p301 = scmp.ne.s32.totalorder %s296, %s298
    %p302 = scmp.eq.s32.totalorder %s73, 0
    %p303 = por %p301, %p302
    %p304 = scmp.ne.s32.totalorder %s296, %s298
    %p305 = scmp.eq.s32.totalorder %s78, 1
    %p306 = por %p304, %p305
    %p307 = scmp.ne.s32.totalorder %s298, %s299
    %p308 = scmp.eq.s32.totalorder %s78, 0
    %p309 = por %p307, %p308
    %p310 = scmp.ne.s32.totalorder %s298, %s299
    %p311 = scmp.eq.s32.totalorder %s79, 1
    %p312 = por %p310, %p311
    %p314 = scmp.ne.s32.totalorder %s299, %s313
    %p315 = scmp.eq.s32.totalorder %s79, 0
    %p316 = por %p314, %p315
    %s318 = sadd.s32 %s317, 1
    %p321 = scmp.eq.s32.totalorder %s73, 1
    %p322 = scmp.ne.s32.totalorder %s317, %s319
    %p323 = scmp.eq.s32.totalorder %s73, 0
    %p324 = por %p322, %p323
    %p325 = scmp.ne.s32.totalorder %s317, %s319
    %p326 = scmp.eq.s32.totalorder %s78, 1
    %p327 = por %p325, %p326
    %p328 = scmp.ne.s32.totalorder %s319, %s320
    %p329 = scmp.eq.s32.totalorder %s78, 0
    %p330 = por %p328, %p329
    %p331 = scmp.ne.s32.totalorder %s319, %s320
    %p332 = scmp.eq.s32.totalorder %s79, 1
    %p333 = por %p331, %p332
    %p335 = scmp.ne.s32.totalorder %s320, %s334
    %p336 = scmp.eq.s32.totalorder %s79, 0
    %p337 = por %p335, %p336
    %s339 = sadd.s32 %s338, 1
    %p342 = scmp.eq.s32.totalorder %s73, 1
    %p343 = scmp.ne.s32.totalorder %s338, %s340
    %p344 = scmp.eq.s32.totalorder %s73, 0
    %p345 = por %p343, %p344
    %p346 = scmp.ne.s32.totalorder %s338, %s340
    %p347 = scmp.eq.s32.totalorder %s78, 1
    %p348 = por %p346, %p347
    %p349 = scmp.ne.s32.totalorder %s340, %s341
    %p350 = scmp.eq.s32.totalorder %s78, 0
    %p351 = por %p349, %p350
    %p352 = scmp.ne.s32.totalorder %s340, %s341
    %p353 = scmp.eq.s32.totalorder %s79, 1
    %p354 = por %p352, %p353
    %p356 = scmp.ne.s32.totalorder %s341, %s355
    %p357 = scmp.eq.s32.totalorder %s79, 0
    %p358 = por %p356, %p357
    %s360 = sadd.s32 %s359, 1
    %p363 = scmp.eq.s32.totalorder %s73, 1
    %p364 = scmp.ne.s32.totalorder %s359, %s361
    %p365 = scmp.eq.s32.totalorder %s73, 0
    %p366 = por %p364, %p365
    %p367 = scmp.ne.s32.totalorder %s359, %s361
    %p368 = scmp.eq.s32.totalorder %s78, 1
    %p369 = por %p367, %p368
    %p370 = scmp.ne.s32.totalorder %s361, %s362
    %p371 = scmp.eq.s32.totalorder %s78, 0
    %p372 = por %p370, %p371
    %p373 = scmp.ne.s32.totalorder %s361, %s362
    %p374 = scmp.eq.s32.totalorder %s79, 1
    %p375 = por %p373, %p374
    %p377 = scmp.ne.s32.totalorder %s362, %s376
    %p378 = scmp.eq.s32.totalorder %s79, 0
    %p379 = por %p377, %p378
    %s381 = sadd.s32 %s380, 1
    %p384 = scmp.eq.s32.totalorder %s73, 1
    %p385 = scmp.ne.s32.totalorder %s380, %s382
    %p386 = scmp.eq.s32.totalorder %s73, 0
    %p387 = por %p385, %p386
    %p388 = scmp.ne.s32.totalorder %s380, %s382
    %p389 = scmp.eq.s32.totalorder %s78, 1
    %p390 = por %p388, %p389
    %p391 = scmp.ne.s32.totalorder %s382, %s383
    %p392 = scmp.eq.s32.totalorder %s78, 0
    %p393 = por %p391, %p392
    %p394 = scmp.ne.s32.totalorder %s382, %s383
    %p395 = scmp.eq.s32.totalorder %s79, 1
    %p396 = por %p394, %p395
    %p398 = scmp.ne.s32.totalorder %s383, %s397
    %p399 = scmp.eq.s32.totalorder %s79, 0
    %p400 = por %p398, %p399
    %s402 = sadd.s32 %s401, 1
    %p405 = scmp.eq.s32.totalorder %s73, 1
    %p406 = scmp.ne.s32.totalorder %s401, %s403
    %p407 = scmp.eq.s32.totalorder %s73, 0
    %p408 = por %p406, %p407
    %p409 = scmp.ne.s32.totalorder %s401, %s403
    %p410 = scmp.eq.s32.totalorder %s78, 1
    %p411 = por %p409, %p410
    %p412 = scmp.ne.s32.totalorder %s403, %s404
    %p413 = scmp.eq.s32.totalorder %s78, 0
    %p414 = por %p412, %p413
    %p415 = scmp.ne.s32.totalorder %s403, %s404
    %p416 = scmp.eq.s32.totalorder %s79, 1
    %p417 = por %p415, %p416
    %p419 = scmp.ne.s32.totalorder %s404, %s418
    %p420 = scmp.eq.s32.totalorder %s79, 0
    %p421 = por %p419, %p420
    %s423 = sadd.s32 %s422, 1
    %p426 = scmp.eq.s32.totalorder %s73, 1
    %p427 = scmp.ne.s32.totalorder %s422, %s424
    %p428 = scmp.eq.s32.totalorder %s73, 0
    %p429 = por %p427, %p428
    %p430 = scmp.ne.s32.totalorder %s422, %s424
    %p431 = scmp.eq.s32.totalorder %s78, 1
    %p432 = por %p430, %p431
    %p433 = scmp.ne.s32.totalorder %s424, %s425
    %p434 = scmp.eq.s32.totalorder %s78, 0
    %p435 = por %p433, %p434
    %p436 = scmp.ne.s32.totalorder %s424, %s425
    %p437 = scmp.eq.s32.totalorder %s79, 1
    %p438 = por %p436, %p437
    %p440 = scmp.ne.s32.totalorder %s425, %s439
    %p441 = scmp.eq.s32.totalorder %s79, 0
    %p442 = por %p440, %p441
    %s444 = sadd.s32 %s443, 1
    %p447 = scmp.eq.s32.totalorder %s73, 1
    %p448 = scmp.ne.s32.totalorder %s443, %s445
    %p449 = scmp.eq.s32.totalorder %s73, 0
    %p450 = por %p448, %p449
    %p451 = scmp.ne.s32.totalorder %s443, %s445
    %p452 = scmp.eq.s32.totalorder %s78, 1
    %p453 = por %p451, %p452
    %p454 = scmp.ne.s32.totalorder %s445, %s446
    %p455 = scmp.eq.s32.totalorder %s78, 0
    %p456 = por %p454, %p455
    %p457 = scmp.ne.s32.totalorder %s445, %s446
    %p458 = scmp.eq.s32.totalorder %s79, 1
    %p459 = por %p457, %p458
    %p461 = scmp.ne.s32.totalorder %s446, %s460
    %p462 = scmp.eq.s32.totalorder %s79, 0
    %p463 = por %p461, %p462
    %s465 = sadd.s32 %s464, 1
    %p468 = scmp.eq.s32.totalorder %s73, 1
    %p469 = scmp.ne.s32.totalorder %s464, %s466
    %p470 = scmp.eq.s32.totalorder %s73, 0
    %p471 = por %p469, %p470
    %p472 = scmp.ne.s32.totalorder %s464, %s466
    %p473 = scmp.eq.s32.totalorder %s78, 1
    %p474 = por %p472, %p473
    %p475 = scmp.ne.s32.totalorder %s466, %s467
    %p476 = scmp.eq.s32.totalorder %s78, 0
    %p477 = por %p475, %p476
    %p478 = scmp.ne.s32.totalorder %s466, %s467
    %p479 = scmp.eq.s32.totalorder %s79, 1
    %p480 = por %p478, %p479
    %p482 = scmp.ne.s32.totalorder %s467, %s481
    %p483 = scmp.eq.s32.totalorder %s79, 0
    %p484 = por %p482, %p483
    %s486 = sadd.s32 %s485, 1
    %p489 = scmp.eq.s32.totalorder %s73, 1
    %p490 = scmp.ne.s32.totalorder %s485, %s487
    %p491 = scmp.eq.s32.totalorder %s73, 0
    %p492 = por %p490, %p491
    %p493 = scmp.ne.s32.totalorder %s485, %s487
    %p494 = scmp.eq.s32.totalorder %s78, 1
    %p495 = por %p493, %p494
    %p496 = scmp.ne.s32.totalorder %s487, %s488
    %p497 = scmp.eq.s32.totalorder %s78, 0
    %p498 = por %p496, %p497
    %p499 = scmp.ne.s32.totalorder %s487, %s488
    %p500 = scmp.eq.s32.totalorder %s79, 1
    %p501 = por %p499, %p500
    %p503 = scmp.ne.s32.totalorder %s488, %s502
    %p504 = scmp.eq.s32.totalorder %s79, 0
    %p505 = por %p503, %p504
    %s507 = sadd.s32 %s506, 1
    %p510 = scmp.eq.s32.totalorder %s73, 1
    %p511 = scmp.ne.s32.totalorder %s506, %s508
    %p512 = scmp.eq.s32.totalorder %s73, 0
    %p513 = por %p511, %p512
    %p514 = scmp.ne.s32.totalorder %s506, %s508
    %p515 = scmp.eq.s32.totalorder %s78, 1
    %p516 = por %p514, %p515
    %p517 = scmp.ne.s32.totalorder %s508, %s509
    %p518 = scmp.eq.s32.totalorder %s78, 0
    %p519 = por %p517, %p518
    %p520 = scmp.ne.s32.totalorder %s508, %s509
    %p521 = scmp.eq.s32.totalorder %s79, 1
    %p522 = por %p520, %p521
    %p524 = scmp.ne.s32.totalorder %s509, %s523
    %p525 = scmp.eq.s32.totalorder %s79, 0
    %p526 = por %p524, %p525
    %s528 = sadd.s32 %s527, 1
    %p531 = scmp.eq.s32.totalorder %s73, 1
    %p532 = scmp.ne.s32.totalorder %s527, %s529
    %p533 = scmp.eq.s32.totalorder %s73, 0
    %p534 = por %p532, %p533
    %p535 = scmp.ne.s32.totalorder %s527, %s529
    %p536 = scmp.eq.s32.totalorder %s78, 1
    %p537 = por %p535, %p536
    %p538 = scmp.ne.s32.totalorder %s529, %s530
    %p539 = scmp.eq.s32.totalorder %s78, 0
    %p540 = por %p538, %p539
    %p541 = scmp.ne.s32.totalorder %s529, %s530
    %p542 = scmp.eq.s32.totalorder %s79, 1
    %p543 = por %p541, %p542
    %p545 = scmp.ne.s32.totalorder %s530, %s544
    %p546 = scmp.eq.s32.totalorder %s79, 0
    %p547 = por %p545, %p546
    %s549 = sadd.s32 %s548, 1
    %p552 = scmp.eq.s32.totalorder %s73, 1
    %p553 = scmp.ne.s32.totalorder %s548, %s550
    %p554 = scmp.eq.s32.totalorder %s73, 0
    %p555 = por %p553, %p554
    %p556 = scmp.ne.s32.totalorder %s548, %s550
    %p557 = scmp.eq.s32.totalorder %s78, 1
    %p558 = por %p556, %p557
    %p559 = scmp.ne.s32.totalorder %s550, %s551
    %p560 = scmp.eq.s32.totalorder %s78, 0
    %p561 = por %p559, %p560
    %p562 = scmp.ne.s32.totalorder %s550, %s551
    %p563 = scmp.eq.s32.totalorder %s79, 1
    %p564 = por %p562, %p563
    %p566 = scmp.ne.s32.totalorder %s551, %s565
    %p567 = scmp.eq.s32.totalorder %s79, 0
    %p568 = por %p566, %p567
    %s570 = sadd.s32 %s569, 1
    %p573 = scmp.eq.s32.totalorder %s73, 1
    %p574 = scmp.ne.s32.totalorder %s569, %s571
    %p575 = scmp.eq.s32.totalorder %s73, 0
    %p576 = por %p574, %p575
    %p577 = scmp.ne.s32.totalorder %s569, %s571
    %p578 = scmp.eq.s32.totalorder %s78, 1
    %p579 = por %p577, %p578
    %p580 = scmp.ne.s32.totalorder %s571, %s572
    %p581 = scmp.eq.s32.totalorder %s78, 0
    %p582 = por %p580, %p581
    %p583 = scmp.ne.s32.totalorder %s571, %s572
    %p584 = scmp.eq.s32.totalorder %s79, 1
    %p585 = por %p583, %p584
    %p587 = scmp.ne.s32.totalorder %s572, %s586
    %p588 = scmp.eq.s32.totalorder %s79, 0
    %p589 = por %p587, %p588
    %s591 = sadd.s32 %s590, 1
    %p594 = scmp.eq.s32.totalorder %s73, 1
    %p595 = scmp.ne.s32.totalorder %s590, %s592
    %p596 = scmp.eq.s32.totalorder %s73, 0
    %p597 = por %p595, %p596
    %p598 = scmp.ne.s32.totalorder %s590, %s592
    %p599 = scmp.eq.s32.totalorder %s78, 1
    %p600 = por %p598, %p599
    %p601 = scmp.ne.s32.totalorder %s592, %s593
    %p602 = scmp.eq.s32.totalorder %s78, 0
    %p603 = por %p601, %p602
    %p604 = scmp.ne.s32.totalorder %s592, %s593
    %p605 = scmp.eq.s32.totalorder %s79, 1
    %p606 = por %p604, %p605
    %p608 = scmp.ne.s32.totalorder %s593, %s607
    %p609 = scmp.eq.s32.totalorder %s79, 0
    %p610 = por %p608, %p609
    %s612 = sadd.s32 %s611, 1
    %p615 = scmp.eq.s32.totalorder %s73, 1
    %p616 = scmp.ne.s32.totalorder %s611, %s613
    %p617 = scmp.eq.s32.totalorder %s73, 0
    %p618 = por %p616, %p617
    %p619 = scmp.ne.s32.totalorder %s611, %s613
    %p620 = scmp.eq.s32.totalorder %s78, 1
    %p621 = por %p619, %p620
    %p622 = scmp.ne.s32.totalorder %s613, %s614
    %p623 = scmp.eq.s32.totalorder %s78, 0
    %p624 = por %p622, %p623
    %p625 = scmp.ne.s32.totalorder %s613, %s614
    %p626 = scmp.eq.s32.totalorder %s79, 1
    %p627 = por %p625, %p626
    %p629 = scmp.ne.s32.totalorder %s614, %s628
    %p630 = scmp.eq.s32.totalorder %s79, 0
    %p631 = por %p629, %p630
    %s633 = sadd.s32 %s632, 1
    %p636 = scmp.eq.s32.totalorder %s73, 1
    %p637 = scmp.ne.s32.totalorder %s632, %s634
    %p638 = scmp.eq.s32.totalorder %s73, 0
    %p639 = por %p637, %p638
    %p640 = scmp.ne.s32.totalorder %s632, %s634
    %p641 = scmp.eq.s32.totalorder %s78, 1
    %p642 = por %p640, %p641
    %p643 = scmp.ne.s32.totalorder %s634, %s635
    %p644 = scmp.eq.s32.totalorder %s78, 0
    %p645 = por %p643, %p644
    %p646 = scmp.ne.s32.totalorder %s634, %s635
    %p647 = scmp.eq.s32.totalorder %s79, 1
    %p648 = por %p646, %p647
    %p650 = scmp.ne.s32.totalorder %s635, %s649
    %p651 = scmp.eq.s32.totalorder %s79, 0
    %p652 = por %p650, %p651
    %s654 = sadd.s32 %s653, 1
    %p657 = scmp.eq.s32.totalorder %s73, 1
    %p658 = scmp.ne.s32.totalorder %s653, %s655
    %p659 = scmp.eq.s32.totalorder %s73, 0
    %p660 = por %p658, %p659
    %p661 = scmp.ne.s32.totalorder %s653, %s655
    %p662 = scmp.eq.s32.totalorder %s78, 1
    %p663 = por %p661, %p662
    %p664 = scmp.ne.s32.totalorder %s655, %s656
    %p665 = scmp.eq.s32.totalorder %s78, 0
    %p666 = por %p664, %p665
    %p667 = scmp.ne.s32.totalorder %s655, %s656
    %p668 = scmp.eq.s32.totalorder %s79, 1
    %p669 = por %p667, %p668
    %p671 = scmp.ne.s32.totalorder %s656, %s670
    %p672 = scmp.eq.s32.totalorder %s79, 0
    %p673 = por %p671, %p672
    %s675 = sadd.s32 %s674, 1
    %p678 = scmp.eq.s32.totalorder %s73, 1
    %p679 = scmp.ne.s32.totalorder %s674, %s676
    %p680 = scmp.eq.s32.totalorder %s73, 0
    %p681 = por %p679, %p680
    %p682 = scmp.ne.s32.totalorder %s674, %s676
    %p683 = scmp.eq.s32.totalorder %s78, 1
    %p684 = por %p682, %p683
    %p685 = scmp.ne.s32.totalorder %s676, %s677
    %p686 = scmp.eq.s32.totalorder %s78, 0
    %p687 = por %p685, %p686
    %p688 = scmp.ne.s32.totalorder %s676, %s677
    %p689 = scmp.eq.s32.totalorder %s79, 1
    %p690 = por %p688, %p689
    %p692 = scmp.ne.s32.totalorder %s677, %s691
    %p693 = scmp.eq.s32.totalorder %s79, 0
    %p694 = por %p692, %p693
    %s696 = sadd.s32 %s695, 1
    %p699 = scmp.eq.s32.totalorder %s73, 1
    %p700 = scmp.ne.s32.totalorder %s695, %s697
    %p701 = scmp.eq.s32.totalorder %s73, 0
    %p702 = por %p700, %p701
    %p703 = scmp.ne.s32.totalorder %s695, %s697
    %p704 = scmp.eq.s32.totalorder %s78, 1
    %p705 = por %p703, %p704
    %p706 = scmp.ne.s32.totalorder %s697, %s698
    %p707 = scmp.eq.s32.totalorder %s78, 0
    %p708 = por %p706, %p707
    %p709 = scmp.ne.s32.totalorder %s697, %s698
    %p710 = scmp.eq.s32.totalorder %s79, 1
    %p711 = por %p709, %p710
    %p713 = scmp.ne.s32.totalorder %s698, %s712
    %p714 = scmp.eq.s32.totalorder %s79, 0
    %p715 = por %p713, %p714
    %s717 = sadd.s32 %s716, 1
    %p720 = scmp.eq.s32.totalorder %s73, 1
    %p721 = scmp.ne.s32.totalorder %s716, %s718
    %p722 = scmp.eq.s32.totalorder %s73, 0
    %p723 = por %p721, %p722
    %p724 = scmp.ne.s32.totalorder %s716, %s718
    %p725 = scmp.eq.s32.totalorder %s78, 1
    %p726 = por %p724, %p725
    %p727 = scmp.ne.s32.totalorder %s718, %s719
    %p728 = scmp.eq.s32.totalorder %s78, 0
    %p729 = por %p727, %p728
    %p730 = scmp.ne.s32.totalorder %s718, %s719
    %p731 = scmp.eq.s32.totalorder %s79, 1
    %p732 = por %p730, %p731
    %p734 = scmp.ne.s32.totalorder %s719, %s733
    %p735 = scmp.eq.s32.totalorder %s79, 0
    %p736 = por %p734, %p735
    %s738 = sadd.s32 %s737, 1
    %p741 = scmp.eq.s32.totalorder %s73, 1
    %p742 = scmp.ne.s32.totalorder %s737, %s739
    %p743 = scmp.eq.s32.totalorder %s73, 0
    %p744 = por %p742, %p743
    %p745 = scmp.ne.s32.totalorder %s737, %s739
    %p746 = scmp.eq.s32.totalorder %s78, 1
    %p747 = por %p745, %p746
    %p748 = scmp.ne.s32.totalorder %s739, %s740
    %p749 = scmp.eq.s32.totalorder %s78, 0
    %p750 = por %p748, %p749
    %p751 = scmp.ne.s32.totalorder %s739, %s740
    %p752 = scmp.eq.s32.totalorder %s79, 1
    %p753 = por %p751, %p752
    %p755 = scmp.ne.s32.totalorder %s740, %s754
    %p756 = scmp.eq.s32.totalorder %s79, 0
    %p757 = por %p755, %p756
    %s759 = sadd.s32 %s758, 1
    %p762 = scmp.eq.s32.totalorder %s73, 1
    %p763 = scmp.ne.s32.totalorder %s758, %s760
    %p764 = scmp.eq.s32.totalorder %s73, 0
    %p765 = por %p763, %p764
    %p766 = scmp.ne.s32.totalorder %s758, %s760
    %p767 = scmp.eq.s32.totalorder %s78, 1
    %p768 = por %p766, %p767
    %p769 = scmp.ne.s32.totalorder %s760, %s761
    %p770 = scmp.eq.s32.totalorder %s78, 0
    %p771 = por %p769, %p770
    %p772 = scmp.ne.s32.totalorder %s760, %s761
    %p773 = scmp.eq.s32.totalorder %s79, 1
    %p774 = por %p772, %p773
    %p776 = scmp.ne.s32.totalorder %s761, %s775
    %p777 = scmp.eq.s32.totalorder %s79, 0
    %p778 = por %p776, %p777
    %s779 = ssub.s32 %s73, %s80
    %p780 = scmp.eq.s32.totalorder %s779, 0
    %s782 = sadd.s32 %s781, 1
    %s783 = scalar_select %p780, %s781, %s782
    %p786 = pneg %p780
    %p787 = scmp.eq.s32.totalorder %s73, 1
    %p788 = por %p786, %p787
    %p789 = scmp.ne.s32.totalorder %s781, %s784
    %p790 = scmp.eq.s32.totalorder %s73, 0
    %p791 = por %p789, %p790
    %p792 = scmp.ne.s32.totalorder %s781, %s784
    %p793 = scmp.eq.s32.totalorder %s78, 1
    %p794 = por %p792, %p793
    %p795 = scmp.ne.s32.totalorder %s784, %s785
    %p796 = scmp.eq.s32.totalorder %s78, 0
    %p797 = por %p795, %p796
    %p798 = scmp.ne.s32.totalorder %s784, %s785
    %p799 = scmp.eq.s32.totalorder %s79, 1
    %p800 = por %p798, %p799
    %p802 = scmp.ne.s32.totalorder %s785, %s801
    %p803 = scmp.eq.s32.totalorder %s79, 0
    %p804 = por %p802, %p803
    %p805 = scmp.le.s32.totalorder 1, %s73
    %p806 = scmp.lt.s32.totalorder %s73, 3
    %p807 = pnand %p805, %p806
    %p808 = pneg %p807
    // Predicated region
    $region9: #{gcn_forward.1} parent=5 // pred_check
      _
    $region10: #{gcn_forward.1} parent=5 // pred_check_branch
      %810 = sbr.rel (%p807) target = $region12
    $region11: #{gcn_forward.1} parent=5 // pred_region
      %s811 = ssub.s32 %s73, 1
      // Predicated region
      $region13: #{gcn_forward.1} parent=11 // pred_check
        %p812 = pneg %p120
      $region14: #{gcn_forward.1} parent=11 // pred_check_branch
        %814 = sbr.rel (%p812) target = $region16
      $region15: #{gcn_forward.1} parent=11 // pred_region
        _
      $region16: #{gcn_forward.1} parent=11 // pred_fallthru
        _
      // Predicated region
      $region17: #{gcn_forward.1} parent=11 // pred_check
        %p815 = pneg %p141
      $region18: #{gcn_forward.1} parent=11 // pred_check_branch
        %817 = sbr.rel (%p815) target = $region20
      $region19: #{gcn_forward.1} parent=11 // pred_region
        _
      $region20: #{gcn_forward.1} parent=11 // pred_fallthru
        _
      // Predicated region
      $region21: #{gcn_forward.1} parent=11 // pred_check
        %p818 = pneg %p162
      $region22: #{gcn_forward.1} parent=11 // pred_check_branch
        %820 = sbr.rel (%p818) target = $region24
      $region23: #{gcn_forward.1} parent=11 // pred_region
        _
      $region24: #{gcn_forward.1} parent=11 // pred_fallthru
        _
      // Predicated region
      $region25: #{gcn_forward.1} parent=11 // pred_check
        %p821 = pneg %p183
      $region26: #{gcn_forward.1} parent=11 // pred_check_branch
        %823 = sbr.rel (%p821) target = $region28
      $region27: #{gcn_forward.1} parent=11 // pred_region
        _
      $region28: #{gcn_forward.1} parent=11 // pred_fallthru
        _
      // Predicated region
      $region29: #{gcn_forward.1} parent=11 // pred_check
        %p824 = pneg %p204
      $region30: #{gcn_forward.1} parent=11 // pred_check_branch
        %826 = sbr.rel (%p824) target = $region32
      $region31: #{gcn_forward.1} parent=11 // pred_region
        _
      $region32: #{gcn_forward.1} parent=11 // pred_fallthru
        _
      // Predicated region
      $region33: #{gcn_forward.1} parent=11 // pred_check
        %p827 = pneg %p225
      $region34: #{gcn_forward.1} parent=11 // pred_check_branch
        %829 = sbr.rel (%p827) target = $region36
      $region35: #{gcn_forward.1} parent=11 // pred_region
        _
      $region36: #{gcn_forward.1} parent=11 // pred_fallthru
        _
      // Predicated region
      $region37: #{gcn_forward.1} parent=11 // pred_check
        %p830 = pneg %p246
      $region38: #{gcn_forward.1} parent=11 // pred_check_branch
        %832 = sbr.rel (%p830) target = $region40
      $region39: #{gcn_forward.1} parent=11 // pred_region
        _
      $region40: #{gcn_forward.1} parent=11 // pred_fallthru
        _
      // Predicated region
      $region41: #{gcn_forward.1} parent=11 // pred_check
        %p833 = pneg %p267
      $region42: #{gcn_forward.1} parent=11 // pred_check_branch
        %835 = sbr.rel (%p833) target = $region44
      $region43: #{gcn_forward.1} parent=11 // pred_region
        _
      $region44: #{gcn_forward.1} parent=11 // pred_fallthru
        _
      // Predicated region
      $region45: #{gcn_forward.1} parent=11 // pred_check
        %p836 = pneg %p288
      $region46: #{gcn_forward.1} parent=11 // pred_check_branch
        %838 = sbr.rel (%p836) target = $region48
      $region47: #{gcn_forward.1} parent=11 // pred_region
        _
      $region48: #{gcn_forward.1} parent=11 // pred_fallthru
        _
      // Predicated region
      $region49: #{gcn_forward.1} parent=11 // pred_check
        %p839 = pneg %p309
      $region50: #{gcn_forward.1} parent=11 // pred_check_branch
        %841 = sbr.rel (%p839) target = $region52
      $region51: #{gcn_forward.1} parent=11 // pred_region
        _
      $region52: #{gcn_forward.1} parent=11 // pred_fallthru
        _
      // Predicated region
      $region53: #{gcn_forward.1} parent=11 // pred_check
        %p842 = pneg %p330
      $region54: #{gcn_forward.1} parent=11 // pred_check_branch
        %844 = sbr.rel (%p842) target = $region56
      $region55: #{gcn_forward.1} parent=11 // pred_region
        _
      $region56: #{gcn_forward.1} parent=11 // pred_fallthru
        _
      // Predicated region
      $region57: #{gcn_forward.1} parent=11 // pred_check
        %p845 = pneg %p351
      $region58: #{gcn_forward.1} parent=11 // pred_check_branch
        %847 = sbr.rel (%p845) target = $region60
      $region59: #{gcn_forward.1} parent=11 // pred_region
        _
      $region60: #{gcn_forward.1} parent=11 // pred_fallthru
        _
      // Predicated region
      $region61: #{gcn_forward.1} parent=11 // pred_check
        %p848 = pneg %p372
      $region62: #{gcn_forward.1} parent=11 // pred_check_branch
        %850 = sbr.rel (%p848) target = $region64
      $region63: #{gcn_forward.1} parent=11 // pred_region
        _
      $region64: #{gcn_forward.1} parent=11 // pred_fallthru
        _
      // Predicated region
      $region65: #{gcn_forward.1} parent=11 // pred_check
        %p851 = pneg %p393
      $region66: #{gcn_forward.1} parent=11 // pred_check_branch
        %853 = sbr.rel (%p851) target = $region68
      $region67: #{gcn_forward.1} parent=11 // pred_region
        _
      $region68: #{gcn_forward.1} parent=11 // pred_fallthru
        _
      // Predicated region
      $region69: #{gcn_forward.1} parent=11 // pred_check
        %p854 = pneg %p414
      $region70: #{gcn_forward.1} parent=11 // pred_check_branch
        %856 = sbr.rel (%p854) target = $region72
      $region71: #{gcn_forward.1} parent=11 // pred_region
        _
      $region72: #{gcn_forward.1} parent=11 // pred_fallthru
        _
      // Predicated region
      $region73: #{gcn_forward.1} parent=11 // pred_check
        %p857 = pneg %p435
      $region74: #{gcn_forward.1} parent=11 // pred_check_branch
        %859 = sbr.rel (%p857) target = $region76
      $region75: #{gcn_forward.1} parent=11 // pred_region
        _
      $region76: #{gcn_forward.1} parent=11 // pred_fallthru
        _
      // Predicated region
      $region77: #{gcn_forward.1} parent=11 // pred_check
        %p860 = pneg %p456
      $region78: #{gcn_forward.1} parent=11 // pred_check_branch
        %862 = sbr.rel (%p860) target = $region80
      $region79: #{gcn_forward.1} parent=11 // pred_region
        _
      $region80: #{gcn_forward.1} parent=11 // pred_fallthru
        _
      // Predicated region
      $region81: #{gcn_forward.1} parent=11 // pred_check
        %p863 = pneg %p477
      $region82: #{gcn_forward.1} parent=11 // pred_check_branch
        %865 = sbr.rel (%p863) target = $region84
      $region83: #{gcn_forward.1} parent=11 // pred_region
        _
      $region84: #{gcn_forward.1} parent=11 // pred_fallthru
        _
      // Predicated region
      $region85: #{gcn_forward.1} parent=11 // pred_check
        %p866 = pneg %p498
      $region86: #{gcn_forward.1} parent=11 // pred_check_branch
        %868 = sbr.rel (%p866) target = $region88
      $region87: #{gcn_forward.1} parent=11 // pred_region
        _
      $region88: #{gcn_forward.1} parent=11 // pred_fallthru
        _
      // Predicated region
      $region89: #{gcn_forward.1} parent=11 // pred_check
        %p869 = pneg %p519
      $region90: #{gcn_forward.1} parent=11 // pred_check_branch
        %871 = sbr.rel (%p869) target = $region92
      $region91: #{gcn_forward.1} parent=11 // pred_region
        _
      $region92: #{gcn_forward.1} parent=11 // pred_fallthru
        _
      // Predicated region
      $region93: #{gcn_forward.1} parent=11 // pred_check
        %p872 = pneg %p540
      $region94: #{gcn_forward.1} parent=11 // pred_check_branch
        %874 = sbr.rel (%p872) target = $region96
      $region95: #{gcn_forward.1} parent=11 // pred_region
        _
      $region96: #{gcn_forward.1} parent=11 // pred_fallthru
        _
      // Predicated region
      $region97: #{gcn_forward.1} parent=11 // pred_check
        %p875 = pneg %p561
      $region98: #{gcn_forward.1} parent=11 // pred_check_branch
        %877 = sbr.rel (%p875) target = $region100
      $region99: #{gcn_forward.1} parent=11 // pred_region
        _
      $region100: #{gcn_forward.1} parent=11 // pred_fallthru
        _
      // Predicated region
      $region101: #{gcn_forward.1} parent=11 // pred_check
        %p878 = pneg %p582
      $region102: #{gcn_forward.1} parent=11 // pred_check_branch
        %880 = sbr.rel (%p878) target = $region104
      $region103: #{gcn_forward.1} parent=11 // pred_region
        _
      $region104: #{gcn_forward.1} parent=11 // pred_fallthru
        _
      // Predicated region
      $region105: #{gcn_forward.1} parent=11 // pred_check
        %p881 = pneg %p603
      $region106: #{gcn_forward.1} parent=11 // pred_check_branch
        %883 = sbr.rel (%p881) target = $region108
      $region107: #{gcn_forward.1} parent=11 // pred_region
        _
      $region108: #{gcn_forward.1} parent=11 // pred_fallthru
        _
      // Predicated region
      $region109: #{gcn_forward.1} parent=11 // pred_check
        %p884 = pneg %p624
      $region110: #{gcn_forward.1} parent=11 // pred_check_branch
        %886 = sbr.rel (%p884) target = $region112
      $region111: #{gcn_forward.1} parent=11 // pred_region
        _
      $region112: #{gcn_forward.1} parent=11 // pred_fallthru
        _
      // Predicated region
      $region113: #{gcn_forward.1} parent=11 // pred_check
        %p887 = pneg %p645
      $region114: #{gcn_forward.1} parent=11 // pred_check_branch
        %889 = sbr.rel (%p887) target = $region116
      $region115: #{gcn_forward.1} parent=11 // pred_region
        _
      $region116: #{gcn_forward.1} parent=11 // pred_fallthru
        _
      // Predicated region
      $region117: #{gcn_forward.1} parent=11 // pred_check
        %p890 = pneg %p666
      $region118: #{gcn_forward.1} parent=11 // pred_check_branch
        %892 = sbr.rel (%p890) target = $region120
      $region119: #{gcn_forward.1} parent=11 // pred_region
        _
      $region120: #{gcn_forward.1} parent=11 // pred_fallthru
        _
      // Predicated region
      $region121: #{gcn_forward.1} parent=11 // pred_check
        %p893 = pneg %p687
      $region122: #{gcn_forward.1} parent=11 // pred_check_branch
        %895 = sbr.rel (%p893) target = $region124
      $region123: #{gcn_forward.1} parent=11 // pred_region
        _
      $region124: #{gcn_forward.1} parent=11 // pred_fallthru
        _
      // Predicated region
      $region125: #{gcn_forward.1} parent=11 // pred_check
        %p896 = pneg %p708
      $region126: #{gcn_forward.1} parent=11 // pred_check_branch
        %898 = sbr.rel (%p896) target = $region128
      $region127: #{gcn_forward.1} parent=11 // pred_region
        _
      $region128: #{gcn_forward.1} parent=11 // pred_fallthru
        _
      // Predicated region
      $region129: #{gcn_forward.1} parent=11 // pred_check
        %p899 = pneg %p729
      $region130: #{gcn_forward.1} parent=11 // pred_check_branch
        %901 = sbr.rel (%p899) target = $region132
      $region131: #{gcn_forward.1} parent=11 // pred_region
        _
      $region132: #{gcn_forward.1} parent=11 // pred_fallthru
        _
      // Predicated region
      $region133: #{gcn_forward.1} parent=11 // pred_check
        %p902 = pneg %p750
      $region134: #{gcn_forward.1} parent=11 // pred_check_branch
        %904 = sbr.rel (%p902) target = $region136
      $region135: #{gcn_forward.1} parent=11 // pred_region
        _
      $region136: #{gcn_forward.1} parent=11 // pred_fallthru
        _
      // Predicated region
      $region137: #{gcn_forward.1} parent=11 // pred_check
        %p905 = pneg %p771
      $region138: #{gcn_forward.1} parent=11 // pred_check_branch
        %907 = sbr.rel (%p905) target = $region140
      $region139: #{gcn_forward.1} parent=11 // pred_region
        _
      $region140: #{gcn_forward.1} parent=11 // pred_fallthru
        _
    $region12: #{gcn_forward.1} parent=5 // pred_fallthru
      _
    %p908 = scmp.lt.s32.totalorder %s73, 2
    // Predicated region
    $region141: #{gcn_forward.1} parent=5 // pred_check
      %p909 = pneg %p908
    $region142: #{gcn_forward.1} parent=5 // pred_check_branch
      %911 = sbr.rel (%p909) target = $region144
    $region143: #{gcn_forward.1} parent=5 // pred_region
      // Predicated region
      $region145: #{gcn_forward.1} parent=143 // pred_check
        %p912 = pneg %p93
      $region146: #{gcn_forward.1} parent=143 // pred_check_branch
        %914 = sbr.rel (%p912) target = $region148
      $region147: #{gcn_forward.1} parent=143 // pred_region
        %p915 = scmp.lt.s32.totalorder %s73, 1
        %s916 = scalar_select %p915, %s73, 1
        %s917 = smul.addr %s916, 7
        %s918 = smul.addr %s917, 8
        %s919 = scalar_lea.vmem %s1, %s918
      $region148: #{gcn_forward.1} parent=143 // pred_fallthru
        _
    $region144: #{gcn_forward.1} parent=5 // pred_fallthru
      _
    %p920 = scmp.le.s32.totalorder 1, %s73
    %p921 = scmp.lt.s32.totalorder %s73, 3
    %p922 = pnand %p920, %p921
    %p923 = pneg %p922
    // Predicated region
    $region149: #{gcn_forward.1} parent=5 // pred_check
      _
    $region150: #{gcn_forward.1} parent=5 // pred_check_branch
      %925 = sbr.rel (%p922) target = $region152
    $region151: #{gcn_forward.1} parent=5 // pred_region
      %s926 = ssub.s32 %s73, 1
      %p927 = scmp.lt.s32.totalorder %s78, 1
      %s928 = scalar_select %p927, %s78, 1
      %s929 = smul.addr %s928, 7
      %s930 = smul.addr %s929, 8
      %s931 = scalar_lea.vmem %s1, %s930
      %p932 = pneg %p99
      %p933 = pneg %p96
      %p934 = pneg %p120
      %p935 = pneg %p117
      %p936 = pneg %p141
      %p937 = pneg %p138
      %p938 = pneg %p162
      %p939 = pneg %p159
      %p940 = pneg %p183
      %p941 = pneg %p180
      %p942 = pneg %p204
      %p943 = pneg %p201
      %p944 = pneg %p225
      %p945 = pneg %p222
      %p946 = pneg %p246
      %p947 = pneg %p243
      %p948 = pneg %p267
      %p949 = pneg %p264
      %p950 = pneg %p288
      %p951 = pneg %p285
      %p952 = pneg %p309
      %p953 = pneg %p306
      %p954 = pneg %p330
      %p955 = pneg %p327
      %p956 = pneg %p351
      %p957 = pneg %p348
      %p958 = pneg %p372
      %p959 = pneg %p369
      %p960 = pneg %p393
      %p961 = pneg %p390
      %p962 = pneg %p414
      %p963 = pneg %p411
      %p964 = pneg %p435
      %p965 = pneg %p432
      %p966 = pneg %p456
      %p967 = pneg %p453
      %p968 = pneg %p477
      %p969 = pneg %p474
      %p970 = pneg %p498
      %p971 = pneg %p495
      %p972 = pneg %p519
      %p973 = pneg %p516
      %p974 = pneg %p540
      %p975 = pneg %p537
      %p976 = pneg %p561
      %p977 = pneg %p558
      %p978 = pneg %p582
      %p979 = pneg %p579
      %p980 = pneg %p603
      %p981 = pneg %p600
      %p982 = pneg %p624
      %p983 = pneg %p621
      %p984 = pneg %p645
      %p985 = pneg %p642
      %p986 = pneg %p666
      %p987 = pneg %p663
      %p988 = pneg %p687
      %p989 = pneg %p684
      %p990 = pneg %p708
      %p991 = pneg %p705
      %p992 = pneg %p729
      %p993 = pneg %p726
      %p994 = pneg %p750
      %p995 = pneg %p747
      %p996 = pneg %p771
      %p997 = pneg %p768
      %p998 = pneg %p797
      %p999 = pneg %p794
      %p1000 = scmp.lt.s32.totalorder %s78, 1
      %s1001 = scalar_select %p1000, %s78, 1
      %s1002 = smul.addr %s1001, 7
      %s1003 = smul.addr %s1002, 8
      %s1004 = scalar_lea.vmem %s67, %s1003
      %p1005 = scmp.lt.s32.totalorder %s78, 1
      %s1006 = scalar_select %p1005, %s78, 1
      %s1007 = smul.addr %s1006, 7
      %s1008 = smul.addr %s1007, 8
      %s1009 = scalar_lea.vmem %s1, %s1008
      %p1010 = scmp.lt.s32.totalorder %s78, 1
      %s1011 = scalar_select %p1010, %s78, 1
      %s1012 = smul.addr %s1011, 7
      %s1013 = smul.addr %s1012, 8
      %s1014 = scalar_lea.vmem %s67, %s1013
      %v1016 = vld [vmem:[%s1009] sm:$0xff]
      %v1017 = vld [vmem:[%s1009 + $0x8] sm:$0xff]
      %v1018 = vld [vmem:[%s1009 + $0x10] sm:$0xff]
      %v1019 = vld [vmem:[%s1009 + $0x18] sm:$0xff]
      %v1020 = vld [vmem:[%s1009 + $0x20] sm:$0xff]
      %v1021 = vld [vmem:[%s1009 + $0x28] sm:$0xff]
      %v1022 = vld [vmem:[%s1009 + $0x30] sm:$0x3f]
      %v1023 = vpack.c.bf16 %v1017, %v1016
      %v1024 = vpack.c.bf16 %v1019, %v1018
      %v1025 = vpack.c.bf16 %v1021, %v1020
      %v1026 = vpack.c.bf16 %v1022, %v1022
      %v1027 = vld [vmem:[%s5] sm:$0xf]
      %v1028 = vld [vmem:[%s5 + $0x4] sm:$0xf]
      %v1031 = vunpack.c.l.b16 %v1027
      %v1032 = vunpack.c.l.b16 %v1028
      %v1033 = vpack.c.b16 %v1032, %v1031
      %vm1035 = vcmask 130048
      %v1037 = vsel %vm1035, %v1023, 0
      %v1040 = vsel %vm1035, %v1024, 0
      %v1043 = vsel %vm1035, %v1025, 0
      %v1046 = vsel %vm1035, %v1026, 0
      %1048 = vmatprep.subr.bf16.mxu0 0
      %1049 = vmatpush1.bf16.msra.mxu0 %v1033
      %1050 = vmatprep.subr.bf16.mxu0 0
      %1051 = vmatpush1.bf16.msra.mxu0 0
      %1052 = vmatprep.subr.bf16.mxu0 0
      %1053 = vmatpush1.bf16.msra.mxu0 0
      %1054 = vmatprep.subr.bf16.mxu0 0
      %1055 = vmatpush1.bf16.msra.mxu0 0
      %1056 = vmatprep.subr.bf16.mxu0 0
      %1057 = vmatpush1.bf16.msra.mxu0 0
      %1058 = vmatprep.subr.bf16.mxu0 0
      %1059 = vmatpush1.bf16.msra.mxu0 0
      %1060 = vmatprep.subr.bf16.mxu0 0
      %1061 = vmatpush1.bf16.msra.mxu0 0
      %1062 = vmatprep.subr.bf16.mxu0 0
      %1063 = vmatpush1.bf16.msra.mxu0 0
      %1064 = vmatprep.subr.bf16.mxu0 0
      %1065 = vmatpush1.bf16.msra.mxu0 0
      %1066 = vmatprep.subr.bf16.mxu0 0
      %1067 = vmatpush1.bf16.msra.mxu0 0
      %1068 = vmatprep.subr.bf16.mxu0 0
      %1069 = vmatpush1.bf16.msra.mxu0 0
      %1070 = vmatprep.subr.bf16.mxu0 0
      %1071 = vmatpush1.bf16.msra.mxu0 0
      %1072 = vmatprep.subr.bf16.mxu0 0
      %1073 = vmatpush1.bf16.msra.mxu0 0
      %1074 = vmatprep.subr.bf16.mxu0 0
      %1075 = vmatpush1.bf16.msra.mxu0 0
      %1076 = vmatprep.subr.bf16.mxu0 0
      %1077 = vmatpush1.bf16.msra.mxu0 0
      %1078 = vmatprep.subr.bf16.mxu0 0
      %1079 = vmatpush1.bf16.msra.mxu0 0
      %1080 = vmatprep.mubr.bf16.mxu0 0
      %1081 = vmatmul.mubr.bf16.gmra.mrb[0].mxu0 %v1037
      %v1082 = vpop.f32.mrb[0].mxu0
      %v1083 = vadd.f32 0.0, %v1082
      %v1084 = vpop.f32.mrb[0].mxu0
      %v1085 = vpop.f32.mrb[0].mxu0
      %v1086 = vadd.f32 0.0, %v1085
      %v1087 = vpop.f32.mrb[0].mxu0
      %1088 = vmatprep.mubr.bf16.mxu0 0
      %1089 = vmatmul.mubr.bf16.gmra.mrb[0].mxu0 %v1040
      %v1090 = vpop.f32.mrb[0].mxu0
      %v1091 = vadd.f32 0.0, %v1090
      %v1092 = vpop.f32.mrb[0].mxu0
      %v1093 = vpop.f32.mrb[0].mxu0
      %v1094 = vadd.f32 0.0, %v1093
      %v1095 = vpop.f32.mrb[0].mxu0
      %1096 = vmatprep.mubr.bf16.mxu0 0
      %1097 = vmatmul.mubr.bf16.gmra.mrb[0].mxu0 %v1043
      %v1098 = vpop.f32.mrb[0].mxu0
      %v1099 = vadd.f32 0.0, %v1098
      %v1100 = vpop.f32.mrb[0].mxu0
      %v1101 = vpop.f32.mrb[0].mxu0
      %v1102 = vadd.f32 0.0, %v1101
      %v1103 = vpop.f32.mrb[0].mxu0
      %1104 = vmatprep.mubr.bf16.mxu0 0
      %1105 = vmatmul.mubr.bf16.gmra.mrb[0].mxu0 %v1046
      %v1106 = vpop.f32.mrb[0].mxu0
      %v1107 = vadd.f32 0.0, %v1106
      %v1108 = vpop.f32.mrb[0].mxu0
      %v1109 = vpop.f32.mrb[0].mxu0
      %v1110 = vpop.f32.mrb[0].mxu0
      %1111 = vdwg.mxu0
      %v1112 = vld [vmem:[%s3] sm:$0xf]
      %v1113 = vld [vmem:[%s3 + $0x4] sm:$0xf]
      %v1114 = vld [vmem:[%s3 + $0x8] sm:$0xf]
      %v1115 = vld [vmem:[%s3 + $0xc] sm:$0xf]
      %v1116 = vld [vmem:[%s3 + $0x10] sm:$0xf]
      %v1117 = vld [vmem:[%s3 + $0x14] sm:$0xf]
      %v1118 = vld [vmem:[%s3 + $0x18] sm:$0x7]
      %v1119 = vpack.c.bf16 %v1086, %v1083
      %v1120 = vpack.c.bf16 %v1094, %v1091
      %v1121 = vpack.c.bf16 %v1102, %v1099
      %v1122 = vpack.c.bf16 %v1107, %v1107
      %v1123 = vld [vmem:[%s7] sm:$0x1]
      %v1125 = vlaneseq
      %v1126 = vshrl.u32 %v1125, 7
      %v1127 = vsub.s32 0, %v1126
      %v1128 = vrot.slane %v1123, %v1127
      %v1137 = vunpack.c.l.b16 %v1112
      %v1138 = vunpack.c.l.b16 %v1113
      %v1139 = vunpack.c.l.b16 %v1114
      %v1140 = vunpack.c.l.b16 %v1115
      %v1141 = vunpack.c.l.b16 %v1116
      %v1142 = vunpack.c.l.b16 %v1117
      %v1143 = vunpack.c.l.b16 %v1118
      %v1144 = vpack.c.b16 %v1138, %v1137
      %v1145 = vpack.c.b16 %v1140, %v1139
      %v1146 = vpack.c.b16 %v1142, %v1141
      %v1147 = vpack.c.b16 %v1143, %v1143
      %vm1148 = vcmask 441344
      %v1150 = vsel %vm1148, %v1144, 0
      %v1153 = vsel %vm1148, %v1145, 0
      %v1156 = vsel %vm1148, %v1146, 0
      %v1159 = vsel %vm1148, %v1147, 0
      %vm1161 = vcmask 1042432
      %v1163 = vsel %vm1161, %v1122, 0
      %1165 = vmatprep.subr.bf16.mxu0 0
      %1166 = vmatpush1.bf16.msra.mxu0 %v1119
      %1167 = vmatprep.subr.bf16.mxu0 0
      %1168 = vmatpush1.bf16.msra.mxu0 %v1120
      %1169 = vmatprep.subr.bf16.mxu0 0
      %1170 = vmatpush1.bf16.msra.mxu0 %v1121
      %1171 = vmatprep.subr.bf16.mxu0 0
      %1172 = vmatpush1.bf16.msra.mxu0 %v1163
      %1173 = vmatprep.subr.bf16.mxu0 0
      %1174 = vmatpush1.bf16.msra.mxu0 0
      %1175 = vmatprep.subr.bf16.mxu0 0
      %1176 = vmatpush1.bf16.msra.mxu0 0
      %1177 = vmatprep.subr.bf16.mxu0 0
      %1178 = vmatpush1.bf16.msra.mxu0 0
      %1179 = vmatprep.subr.bf16.mxu0 0
      %1180 = vmatpush1.bf16.msra.mxu0 0
      %1181 = vmatprep.subr.bf16.mxu0 0
      %1182 = vmatpush1.bf16.msra.mxu0 0
      %1183 = vmatprep.subr.bf16.mxu0 0
      %1184 = vmatpush1.bf16.msra.mxu0 0
      %1185 = vmatprep.subr.bf16.mxu0 0
      %1186 = vmatpush1.bf16.msra.mxu0 0
      %1187 = vmatprep.subr.bf16.mxu0 0
      %1188 = vmatpush1.bf16.msra.mxu0 0
      %1189 = vmatprep.subr.bf16.mxu0 0
      %1190 = vmatpush1.bf16.msra.mxu0 0
      %1191 = vmatprep.subr.bf16.mxu0 0
      %1192 = vmatpush1.bf16.msra.mxu0 0
      %1193 = vmatprep.subr.bf16.mxu0 0
      %1194 = vmatpush1.bf16.msra.mxu0 0
      %1195 = vmatprep.subr.bf16.mxu0 0
      %1196 = vmatpush1.bf16.msra.mxu0 0
      %1197 = vmatprep.mubr.bf16.mxu0 0
      %1198 = vmatmul.mubr.bf16.gmra.mrb[0].mxu0 %v1150
      %v1199 = vpop.f32.mrb[0].mxu0
      %v1200 = vadd.f32 %v1128, %v1199
      %v1201 = vpop.f32.mrb[0].mxu0
      %v1202 = vpop.f32.mrb[0].mxu0
      %v1203 = vadd.f32 %v1128, %v1202
      %v1204 = vpop.f32.mrb[0].mxu0
      %1205 = vmatprep.mubr.bf16.mxu0 0
      %1206 = vmatmul.mubr.bf16.gmra.mrb[0].mxu0 %v1153
      %v1207 = vpop.f32.mrb[0].mxu0
      %v1208 = vadd.f32 %v1128, %v1207
      %v1209 = vpop.f32.mrb[0].mxu0
      %v1210 = vpop.f32.mrb[0].mxu0
      %v1211 = vadd.f32 %v1128, %v1210
      %v1212 = vpop.f32.mrb[0].mxu0
      %1213 = vmatprep.mubr.bf16.mxu0 0
      %1214 = vmatmul.mubr.bf16.gmra.mrb[0].mxu0 %v1156
      %v1215 = vpop.f32.mrb[0].mxu0
      %v1216 = vadd.f32 %v1128, %v1215
      %v1217 = vpop.f32.mrb[0].mxu0
      %v1218 = vpop.f32.mrb[0].mxu0
      %v1219 = vadd.f32 %v1128, %v1218
      %v1220 = vpop.f32.mrb[0].mxu0
      %1221 = vmatprep.mubr.bf16.mxu0 0
      %1222 = vmatmul.mubr.bf16.gmra.mrb[0].mxu0 %v1159
      %v1223 = vpop.f32.mrb[0].mxu0
      %v1224 = vadd.f32 %v1128, %v1223
      %v1225 = vpop.f32.mrb[0].mxu0
      %v1226 = vpop.f32.mrb[0].mxu0
      %v1227 = vpop.f32.mrb[0].mxu0
      %1228 = vdwg.mxu0
      %v1229 = vld [vmem:[%s9] sm:$0xff]
      %v1230 = vld [vmem:[%s9 + $0x8] sm:$0xff]
      %v1231 = vld [vmem:[%s9 + $0x10] sm:$0xff]
      %v1232 = vld [vmem:[%s9 + $0x18] sm:$0xff]
      %v1233 = vld [vmem:[%s9 + $0x20] sm:$0xff]
      %v1234 = vld [vmem:[%s9 + $0x28] sm:$0xff]
      %v1235 = vld [vmem:[%s9 + $0x30] sm:$0x3f]
      %v1236 = vmul.f32 %v1200, %v1229
      %v1237 = vmul.f32 %v1203, %v1230
      %v1238 = vmul.f32 %v1208, %v1231
      %v1239 = vmul.f32 %v1211, %v1232
      %v1240 = vmul.f32 %v1216, %v1233
      %v1241 = vmul.f32 %v1219, %v1234
      %v1242 = vmul.f32 %v1224, %v1235
      %v1243 = vld [vmem:[%s11] sm:$0xff]
      %v1244 = vld [vmem:[%s11 + $0x8] sm:$0xff]
      %v1245 = vld [vmem:[%s11 + $0x10] sm:$0xff]
      %v1246 = vld [vmem:[%s11 + $0x18] sm:$0xff]
      %v1247 = vld [vmem:[%s11 + $0x20] sm:$0xff]
      %v1248 = vld [vmem:[%s11 + $0x28] sm:$0xff]
      %v1249 = vld [vmem:[%s11 + $0x30] sm:$0x3f]
      %v1250 = vadd.f32 %v1236, %v1243
      %v1251 = vadd.f32 %v1237, %v1244
      %v1252 = vadd.f32 %v1238, %v1245
      %v1253 = vadd.f32 %v1239, %v1246
      %v1254 = vadd.f32 %v1240, %v1247
      %v1255 = vadd.f32 %v1241, %v1248
      %v1256 = vadd.f32 %v1242, %v1249
      %v1257 = vtanh.pop %v1250
      %v1258 = vtanh.pop %v1251
      %v1259 = vtanh.pop %v1252
      %v1260 = vtanh.pop %v1253
      %v1261 = vtanh.pop %v1254
      %v1262 = vtanh.pop %v1255
      %v1263 = vtanh.pop %v1256
      %v1264 = vld [vmem:[%s25] sm:$0xff]
      %v1265 = vld [vmem:[%s25 + $0x8] sm:$0xff]
      %v1266 = vld [vmem:[%s25 + $0x10] sm:$0xff]
      %v1267 = vld [vmem:[%s25 + $0x18] sm:$0xff]
      %v1268 = vld [vmem:[%s25 + $0x20] sm:$0xff]
      %v1269 = vld [vmem:[%s25 + $0x28] sm:$0xff]
      %v1270 = vld [vmem:[%s25 + $0x30] sm:$0x3f]
      %v1271 = vld [vmem:[%s27] sm:$0xff]
      %v1272 = vld [vmem:[%s27 + $0x8] sm:$0xff]
      %v1273 = vld [vmem:[%s27 + $0x10] sm:$0xff]
      %v1274 = vld [vmem:[%s27 + $0x18] sm:$0xff]
      %v1275 = vld [vmem:[%s27 + $0x20] sm:$0xff]
      %v1276 = vld [vmem:[%s27 + $0x28] sm:$0xff]
      %v1277 = vld [vmem:[%s27 + $0x30] sm:$0x3f]
      %v1278 = vpack.c.bf16 %v1258, %v1257
      %v1279 = vpack.c.bf16 %v1260, %v1259
      %v1280 = vpack.c.bf16 %v1262, %v1261
      %v1281 = vpack.c.bf16 %v1263, %v1263
      %v1282 = vld [vmem:[%s15] sm:$0xf]
      %v1283 = vld [vmem:[%s15 + $0x4] sm:$0xf]
      %v1284 = vld [vmem:[%s15 + $0x8] sm:$0xf]
      %v1285 = vld [vmem:[%s15 + $0xc] sm:$0xf]
      %v1290 = vunpack.c.l.b16 %v1282
      %v1291 = vunpack.c.l.b16 %v1283
      %v1292 = vunpack.c.l.b16 %v1284
      %v1293 = vunpack.c.l.b16 %v1285
      %v1294 = vpack.c.b16 %v1291, %v1290
      %v1295 = vpack.c.b16 %v1293, %v1292
      %vm1298 = vcmask 261120
      %v1300 = vsel %vm1298, %v1278, 0
      %v1303 = vsel %vm1298, %v1279, 0
      %v1306 = vsel %vm1298, %v1280, 0
      %v1309 = vsel %vm1298, %v1281, 0
      %1311 = vmatprep.subr.bf16.mxu0 0
      %1312 = vmatpush1.bf16.msra.mxu0 %v1294
      %1313 = vmatprep.subr.bf16.mxu0 0
      %1314 = vmatpush1.bf16.msra.mxu0 %v1295
      %1315 = vmatprep.subr.bf16.mxu0 0
      %1316 = vmatpush1.bf16.msra.mxu0 0
      %1317 = vmatprep.subr.bf16.mxu0 0
      %1318 = vmatpush1.bf16.msra.mxu0 0
      %1319 = vmatprep.subr.bf16.mxu0 0
      %1320 = vmatpush1.bf16.msra.mxu0 0
      %1321 = vmatprep.subr.bf16.mxu0 0
      %1322 = vmatpush1.bf16.msra.mxu0 0
      %1323 = vmatprep.subr.bf16.mxu0 0
      %1324 = vmatpush1.bf16.msra.mxu0 0
      %1325 = vmatprep.subr.bf16.mxu0 0
      %1326 = vmatpush1.bf16.msra.mxu0 0
      %1327 = vmatprep.subr.bf16.mxu0 0
      %1328 = vmatpush1.bf16.msra.mxu0 0
      %1329 = vmatprep.subr.bf16.mxu0 0
      %1330 = vmatpush1.bf16.msra.mxu0 0
      %1331 = vmatprep.subr.bf16.mxu0 0
      %1332 = vmatpush1.bf16.msra.mxu0 0
      %1333 = vmatprep.subr.bf16.mxu0 0
      %1334 = vmatpush1.bf16.msra.mxu0 0
      %1335 = vmatprep.subr.bf16.mxu0 0
      %1336 = vmatpush1.bf16.msra.mxu0 0
      %1337 = vmatprep.subr.bf16.mxu0 0
      %1338 = vmatpush1.bf16.msra.mxu0 0
      %1339 = vmatprep.subr.bf16.mxu0 0
      %1340 = vmatpush1.bf16.msra.mxu0 0
      %1341 = vmatprep.subr.bf16.mxu0 0
      %1342 = vmatpush1.bf16.msra.mxu0 0
      %1343 = vmatprep.mubr.bf16.mxu0 0
      %1344 = vmatmul.mubr.bf16.gmra.mrb[0].mxu0 %v1300
      %v1345 = vpop.f32.mrb[0].mxu0
      %v1346 = vadd.f32 0.0, %v1345
      %v1347 = vpop.f32.mrb[0].mxu0
      %v1348 = vpop.f32.mrb[0].mxu0
      %v1349 = vadd.f32 0.0, %v1348
      %v1350 = vpop.f32.mrb[0].mxu0
      %1351 = vmatprep.mubr.bf16.mxu0 0
      %1352 = vmatmul.mubr.bf16.gmra.mrb[0].mxu0 %v1303
      %v1353 = vpop.f32.mrb[0].mxu0
      %v1354 = vadd.f32 0.0, %v1353
      %v1355 = vpop.f32.mrb[0].mxu0
      %v1356 = vpop.f32.mrb[0].mxu0
      %v1357 = vadd.f32 0.0, %v1356
      %v1358 = vpop.f32.mrb[0].mxu0
      %1359 = vmatprep.mubr.bf16.mxu0 0
      %1360 = vmatmul.mubr.bf16.gmra.mrb[0].mxu0 %v1306
      %v1361 = vpop.f32.mrb[0].mxu0
      %v1362 = vadd.f32 0.0, %v1361
      %v1363 = vpop.f32.mrb[0].mxu0
      %v1364 = vpop.f32.mrb[0].mxu0
      %v1365 = vadd.f32 0.0, %v1364
      %v1366 = vpop.f32.mrb[0].mxu0
      %1367 = vmatprep.mubr.bf16.mxu0 0
      %1368 = vmatmul.mubr.bf16.gmra.mrb[0].mxu0 %v1309
      %v1369 = vpop.f32.mrb[0].mxu0
      %v1370 = vadd.f32 0.0, %v1369
      %v1371 = vpop.f32.mrb[0].mxu0
      %v1372 = vpop.f32.mrb[0].mxu0
      %v1373 = vpop.f32.mrb[0].mxu0
      %1374 = vdwg.mxu0
      %v1375 = vld [vmem:[%s13] sm:$0xf]
      %v1376 = vld [vmem:[%s13 + $0x4] sm:$0xf]
      %v1377 = vld [vmem:[%s13 + $0x8] sm:$0xf]
      %v1378 = vld [vmem:[%s13 + $0xc] sm:$0xf]
      %v1379 = vld [vmem:[%s13 + $0x10] sm:$0xf]
      %v1380 = vld [vmem:[%s13 + $0x14] sm:$0xf]
      %v1381 = vld [vmem:[%s13 + $0x18] sm:$0x7]
      %v1382 = vpack.c.bf16 %v1349, %v1346
      %v1383 = vpack.c.bf16 %v1357, %v1354
      %v1384 = vpack.c.bf16 %v1365, %v1362
      %v1385 = vpack.c.bf16 %v1370, %v1370
      %v1386 = vld [vmem:[%s17] sm:$0x1]
      %v1388 = vlaneseq
      %v1389 = vshrl.u32 %v1388, 7
      %v1390 = vsub.s32 0, %v1389
      %v1391 = vrot.slane %v1386, %v1390
      %v1400 = vunpack.c.l.b16 %v1375
      %v1401 = vunpack.c.l.b16 %v1376
      %v1402 = vunpack.c.l.b16 %v1377
      %v1403 = vunpack.c.l.b16 %v1378
      %v1404 = vunpack.c.l.b16 %v1379
      %v1405 = vunpack.c.l.b16 %v1380
      %v1406 = vunpack.c.l.b16 %v1381
      %v1407 = vpack.c.b16 %v1401, %v1400
      %v1408 = vpack.c.b16 %v1403, %v1402
      %v1409 = vpack.c.b16 %v1405, %v1404
      %v1410 = vpack.c.b16 %v1406, %v1406
      %v1412 = vsel %vm1148, %v1407, 0
      %v1415 = vsel %vm1148, %v1408, 0
      %v1418 = vsel %vm1148, %v1409, 0
      %v1421 = vsel %vm1148, %v1410, 0
      %v1424 = vsel %vm1161, %v1385, 0
      %1426 = vmatprep.subr.bf16.mxu0 0
      %1427 = vmatpush1.bf16.msra.mxu0 %v1382
      %1428 = vmatprep.subr.bf16.mxu0 0
      %1429 = vmatpush1.bf16.msra.mxu0 %v1383
      %1430 = vmatprep.subr.bf16.mxu0 0
      %1431 = vmatpush1.bf16.msra.mxu0 %v1384
      %1432 = vmatprep.subr.bf16.mxu0 0
      %1433 = vmatpush1.bf16.msra.mxu0 %v1424
      %1434 = vmatprep.subr.bf16.mxu0 0
      %1435 = vmatpush1.bf16.msra.mxu0 0
      %1436 = vmatprep.subr.bf16.mxu0 0
      %1437 = vmatpush1.bf16.msra.mxu0 0
      %1438 = vmatprep.subr.bf16.mxu0 0
      %1439 = vmatpush1.bf16.msra.mxu0 0
      %1440 = vmatprep.subr.bf16.mxu0 0
      %1441 = vmatpush1.bf16.msra.mxu0 0
      %1442 = vmatprep.subr.bf16.mxu0 0
      %1443 = vmatpush1.bf16.msra.mxu0 0
      %1444 = vmatprep.subr.bf16.mxu0 0
      %1445 = vmatpush1.bf16.msra.mxu0 0
      %1446 = vmatprep.subr.bf16.mxu0 0
      %1447 = vmatpush1.bf16.msra.mxu0 0
      %1448 = vmatprep.subr.bf16.mxu0 0
      %1449 = vmatpush1.bf16.msra.mxu0 0
      %1450 = vmatprep.subr.bf16.mxu0 0
      %1451 = vmatpush1.bf16.msra.mxu0 0
      %1452 = vmatprep.subr.bf16.mxu0 0
      %1453 = vmatpush1.bf16.msra.mxu0 0
      %1454 = vmatprep.subr.bf16.mxu0 0
      %1455 = vmatpush1.bf16.msra.mxu0 0
      %1456 = vmatprep.subr.bf16.mxu0 0
      %1457 = vmatpush1.bf16.msra.mxu0 0
      %1458 = vmatprep.mubr.bf16.mxu0 0
      %1459 = vmatmul.mubr.bf16.gmra.mrb[0].mxu0 %v1412
      %v1460 = vpop.f32.mrb[0].mxu0
      %v1461 = vadd.f32 %v1391, %v1460
      %v1462 = vpop.f32.mrb[0].mxu0
      %v1463 = vpop.f32.mrb[0].mxu0
      %v1464 = vadd.f32 %v1391, %v1463
      %v1465 = vpop.f32.mrb[0].mxu0
      %1466 = vmatprep.mubr.bf16.mxu0 0
      %1467 = vmatmul.mubr.bf16.gmra.mrb[0].mxu0 %v1415
      %v1468 = vpop.f32.mrb[0].mxu0
      %v1469 = vadd.f32 %v1391, %v1468
      %v1470 = vpop.f32.mrb[0].mxu0
      %v1471 = vpop.f32.mrb[0].mxu0
      %v1472 = vadd.f32 %v1391, %v1471
      %v1473 = vpop.f32.mrb[0].mxu0
      %1474 = vmatprep.mubr.bf16.mxu0 0
      %1475 = vmatmul.mubr.bf16.gmra.mrb[0].mxu0 %v1418
      %v1476 = vpop.f32.mrb[0].mxu0
      %v1477 = vadd.f32 %v1391, %v1476
      %v1478 = vpop.f32.mrb[0].mxu0
      %v1479 = vpop.f32.mrb[0].mxu0
      %v1480 = vadd.f32 %v1391, %v1479
      %v1481 = vpop.f32.mrb[0].mxu0
      %1482 = vmatprep.mubr.bf16.mxu0 0
      %1483 = vmatmul.mubr.bf16.gmra.mrb[0].mxu0 %v1421
      %v1484 = vpop.f32.mrb[0].mxu0
      %v1485 = vadd.f32 %v1391, %v1484
      %v1486 = vpop.f32.mrb[0].mxu0
      %v1487 = vpop.f32.mrb[0].mxu0
      %v1488 = vpop.f32.mrb[0].mxu0
      %1489 = vdwg.mxu0
      %v1490 = vmul.f32 %v1461, %v1264
      %v1491 = vmul.f32 %v1464, %v1265
      %v1492 = vmul.f32 %v1469, %v1266
      %v1493 = vmul.f32 %v1472, %v1267
      %v1494 = vmul.f32 %v1477, %v1268
      %v1495 = vmul.f32 %v1480, %v1269
      %v1496 = vmul.f32 %v1485, %v1270
      %v1497 = vadd.f32 %v1490, %v1271
      %v1498 = vadd.f32 %v1491, %v1272
      %v1499 = vadd.f32 %v1492, %v1273
      %v1500 = vadd.f32 %v1493, %v1274
      %v1501 = vadd.f32 %v1494, %v1275
      %v1502 = vadd.f32 %v1495, %v1276
      %v1503 = vadd.f32 %v1496, %v1277
      %v1504 = vtanh.pop %v1497
      %v1505 = vtanh.pop %v1498
      %v1506 = vtanh.pop %v1499
      %v1507 = vtanh.pop %v1500
      %v1508 = vtanh.pop %v1501
      %v1509 = vtanh.pop %v1502
      %v1510 = vtanh.pop %v1503
      %s1511 = scalar_lea.vmem %s13, 28
      %v1512 = vld [vmem:[%s1511] sm:$0xf]
      %v1513 = vld [vmem:[%s1511 + $0x4] sm:$0xf]
      %v1514 = vld [vmem:[%s1511 + $0x8] sm:$0xf]
      %v1515 = vld [vmem:[%s1511 + $0xc] sm:$0xf]
      %v1516 = vld [vmem:[%s1511 + $0x10] sm:$0xf]
      %v1517 = vld [vmem:[%s1511 + $0x14] sm:$0xf]
      %v1518 = vld [vmem:[%s1511 + $0x18] sm:$0x7]
      %s1519 = scalar_lea.vmem %s17, 1
      %v1520 = vld [vmem:[%s1519] sm:$0x1]
      %v1522 = vlaneseq
      %v1523 = vshrl.u32 %v1522, 7
      %v1524 = vsub.s32 0, %v1523
      %v1525 = vrot.slane %v1520, %v1524
      %v1534 = vunpack.c.l.b16 %v1512
      %v1535 = vunpack.c.l.b16 %v1513
      %v1536 = vunpack.c.l.b16 %v1514
      %v1537 = vunpack.c.l.b16 %v1515
      %v1538 = vunpack.c.l.b16 %v1516
      %v1539 = vunpack.c.l.b16 %v1517
      %v1540 = vunpack.c.l.b16 %v1518
      %v1541 = vpack.c.b16 %v1535, %v1534
      %v1542 = vpack.c.b16 %v1537, %v1536
      %v1543 = vpack.c.b16 %v1539, %v1538
      %v1544 = vpack.c.b16 %v1540, %v1540
      %1549 = vrot.lane.b32.xlu0 %v1382, 96
      %v1550 = vpop.permute.xlu0 %1549
      %1551 = vrot.lane.b32.xlu0 %v1383, 96
      %v1552 = vpop.permute.xlu0 %1551
      %1553 = vrot.lane.b32.xlu0 %v1384, 96
      %v1554 = vpop.permute.xlu0 %1553
      %1555 = vrot.lane.b32.xlu0 %v1385, 96
      %v1556 = vpop.permute.xlu0 %1555
      %v1561 = vsel %vm1148, %v1541, 0
      %v1564 = vsel %vm1148, %v1542, 0
      %v1567 = vsel %vm1148, %v1543, 0
      %v1570 = vsel %vm1148, %v1544, 0
      %v1573 = vsel %vm1161, %v1556, 0
      %1575 = vmatprep.subr.bf16.mxu0 0
      %1576 = vmatpush1.bf16.msra.mxu0 %v1550
      %1577 = vmatprep.subr.bf16.mxu0 0
      %1578 = vmatpush1.bf16.msra.mxu0 %v1552
      %1579 = vmatprep.subr.bf16.mxu0 0
      %1580 = vmatpush1.bf16.msra.mxu0 %v1554
      %1581 = vmatprep.subr.bf16.mxu0 0
      %1582 = vmatpush1.bf16.msra.mxu0 %v1573
      %1583 = vmatprep.subr.bf16.mxu0 0
      %1584 = vmatpush1.bf16.msra.mxu0 0
      %1585 = vmatprep.subr.bf16.mxu0 0
      %1586 = vmatpush1.bf16.msra.mxu0 0
      %1587 = vmatprep.subr.bf16.mxu0 0
      %1588 = vmatpush1.bf16.msra.mxu0 0
      %1589 = vmatprep.subr.bf16.mxu0 0
      %1590 = vmatpush1.bf16.msra.mxu0 0
      %1591 = vmatprep.subr.bf16.mxu0 0
      %1592 = vmatpush1.bf16.msra.mxu0 0
      %1593 = vmatprep.subr.bf16.mxu0 0
      %1594 = vmatpush1.bf16.msra.mxu0 0
      %1595 = vmatprep.subr.bf16.mxu0 0
      %1596 = vmatpush1.bf16.msra.mxu0 0
      %1597 = vmatprep.subr.bf16.mxu0 0
      %1598 = vmatpush1.bf16.msra.mxu0 0
      %1599 = vmatprep.subr.bf16.mxu0 0
      %1600 = vmatpush1.bf16.msra.mxu0 0
      %1601 = vmatprep.subr.bf16.mxu0 0
      %1602 = vmatpush1.bf16.msra.mxu0 0
      %1603 = vmatprep.subr.bf16.mxu0 0
      %1604 = vmatpush1.bf16.msra.mxu0 0
      %1605 = vmatprep.subr.bf16.mxu0 0
      %1606 = vmatpush1.bf16.msra.mxu0 0
      %1607 = vmatprep.mubr.bf16.mxu0 0
      %1608 = vmatmul.mubr.bf16.gmra.mrb[0].mxu0 %v1561
      %v1609 = vpop.f32.mrb[0].mxu0
      %v1610 = vadd.f32 %v1525, %v1609
      %v1611 = vpop.f32.mrb[0].mxu0
      %v1612 = vpop.f32.mrb[0].mxu0
      %v1613 = vadd.f32 %v1525, %v1612
      %v1614 = vpop.f32.mrb[0].mxu0
      %1615 = vmatprep.mubr.bf16.mxu0 0
      %1616 = vmatmul.mubr.bf16.gmra.mrb[0].mxu0 %v1564
      %v1617 = vpop.f32.mrb[0].mxu0
      %v1618 = vadd.f32 %v1525, %v1617
      %v1619 = vpop.f32.mrb[0].mxu0
      %v1620 = vpop.f32.mrb[0].mxu0
      %v1621 = vadd.f32 %v1525, %v1620
      %v1622 = vpop.f32.mrb[0].mxu0
      %1623 = vmatprep.mubr.bf16.mxu0 0
      %1624 = vmatmul.mubr.bf16.gmra.mrb[0].mxu0 %v1567
      %v1625 = vpop.f32.mrb[0].mxu0
      %v1626 = vadd.f32 %v1525, %v1625
      %v1627 = vpop.f32.mrb[0].mxu0
      %v1628 = vpop.f32.mrb[0].mxu0
      %v1629 = vadd.f32 %v1525, %v1628
      %v1630 = vpop.f32.mrb[0].mxu0
      %1631 = vmatprep.mubr.bf16.mxu0 0
      %1632 = vmatmul.mubr.bf16.gmra.mrb[0].mxu0 %v1570
      %v1633 = vpop.f32.mrb[0].mxu0
      %v1634 = vadd.f32 %v1525, %v1633
      %v1635 = vpop.f32.mrb[0].mxu0
      %v1636 = vpop.f32.mrb[0].mxu0
      %v1637 = vpop.f32.mrb[0].mxu0
      %1638 = vdwg.mxu0
      %v1639 = vmul.f32 %v1610, %v1264
      %v1640 = vmul.f32 %v1613, %v1265
      %v1641 = vmul.f32 %v1618, %v1266
      %v1642 = vmul.f32 %v1621, %v1267
      %v1643 = vmul.f32 %v1626, %v1268
      %v1644 = vmul.f32 %v1629, %v1269
      %v1645 = vmul.f32 %v1634, %v1270
      %v1646 = vadd.f32 %v1639, %v1271
      %v1647 = vadd.f32 %v1640, %v1272
      %v1648 = vadd.f32 %v1641, %v1273
      %v1649 = vadd.f32 %v1642, %v1274
      %v1650 = vadd.f32 %v1643, %v1275
      %v1651 = vadd.f32 %v1644, %v1276
      %v1652 = vadd.f32 %v1645, %v1277
      %v1653 = vtanh.pop %v1646
      %v1654 = vtanh.pop %v1647
      %v1655 = vtanh.pop %v1648
      %v1656 = vtanh.pop %v1649
      %v1657 = vtanh.pop %v1650
      %v1658 = vtanh.pop %v1651
      %v1659 = vtanh.pop %v1652
      %v1660 = vld [vmem:[%s19] sm:$0xf]
      %v1661 = vld [vmem:[%s19 + $0x4] sm:$0xf]
      %v1662 = vld [vmem:[%s19 + $0x8] sm:$0xf]
      %v1663 = vld [vmem:[%s19 + $0xc] sm:$0xf]
      %v1664 = vld [vmem:[%s19 + $0x10] sm:$0xf]
      %v1665 = vld [vmem:[%s19 + $0x14] sm:$0xf]
      %v1666 = vld [vmem:[%s19 + $0x18] sm:$0x7]
      %v1667 = vpack.c.bf16 %v1505, %v1504
      %v1668 = vpack.c.bf16 %v1507, %v1506
      %v1669 = vpack.c.bf16 %v1509, %v1508
      %v1670 = vpack.c.bf16 %v1510, %v1510
      %v1678 = vunpack.c.l.b16 %v1660
      %v1679 = vunpack.c.l.b16 %v1661
      %v1680 = vunpack.c.l.b16 %v1662
      %v1681 = vunpack.c.l.b16 %v1663
      %v1682 = vunpack.c.l.b16 %v1664
      %v1683 = vunpack.c.l.b16 %v1665
      %v1684 = vunpack.c.l.b16 %v1666
      %v1685 = vpack.c.b16 %v1679, %v1678
      %v1686 = vpack.c.b16 %v1681, %v1680
      %v1687 = vpack.c.b16 %v1683, %v1682
      %v1688 = vpack.c.b16 %v1684, %v1684
      %v1690 = vsel %vm1148, %v1685, 0
      %v1693 = vsel %vm1148, %v1686, 0
      %v1696 = vsel %vm1148, %v1687, 0
      %v1699 = vsel %vm1148, %v1688, 0
      %v1702 = vsel %vm1161, %v1670, 0
      %1704 = vmatprep.subr.bf16.mxu0 0
      %1705 = vmatpush1.bf16.msra.mxu0 %v1667
      %1706 = vmatprep.subr.bf16.mxu0 0
      %1707 = vmatpush1.bf16.msra.mxu0 %v1668
      %1708 = vmatprep.subr.bf16.mxu0 0
      %1709 = vmatpush1.bf16.msra.mxu0 %v1669
      %1710 = vmatprep.subr.bf16.mxu0 0
      %1711 = vmatpush1.bf16.msra.mxu0 %v1702
      %1712 = vmatprep.subr.bf16.mxu0 0
      %1713 = vmatpush1.bf16.msra.mxu0 0
      %1714 = vmatprep.subr.bf16.mxu0 0
      %1715 = vmatpush1.bf16.msra.mxu0 0
      %1716 = vmatprep.subr.bf16.mxu0 0
      %1717 = vmatpush1.bf16.msra.mxu0 0
      %1718 = vmatprep.subr.bf16.mxu0 0
      %1719 = vmatpush1.bf16.msra.mxu0 0
      %1720 = vmatprep.subr.bf16.mxu0 0
      %1721 = vmatpush1.bf16.msra.mxu0 0
      %1722 = vmatprep.subr.bf16.mxu0 0
      %1723 = vmatpush1.bf16.msra.mxu0 0
      %1724 = vmatprep.subr.bf16.mxu0 0
      %1725 = vmatpush1.bf16.msra.mxu0 0
      %1726 = vmatprep.subr.bf16.mxu0 0
      %1727 = vmatpush1.bf16.msra.mxu0 0
      %1728 = vmatprep.subr.bf16.mxu0 0
      %1729 = vmatpush1.bf16.msra.mxu0 0
      %1730 = vmatprep.subr.bf16.mxu0 0
      %1731 = vmatpush1.bf16.msra.mxu0 0
      %1732 = vmatprep.subr.bf16.mxu0 0
      %1733 = vmatpush1.bf16.msra.mxu0 0
      %1734 = vmatprep.subr.bf16.mxu0 0
      %1735 = vmatpush1.bf16.msra.mxu0 0
      %1736 = vmatprep.mubr.bf16.mxu0 0
      %1737 = vmatmul.mubr.bf16.gmra.mrb[0].mxu0 %v1690
      %v1738 = vpop.f32.mrb[0].mxu0
      %v1739 = vadd.f32 0.0, %v1738
      %v1740 = vpop.f32.mrb[0].mxu0
      %v1741 = vpop.f32.mrb[0].mxu0
      %v1742 = vadd.f32 0.0, %v1741
      %v1743 = vpop.f32.mrb[0].mxu0
      %1744 = vmatprep.mubr.bf16.mxu0 0
      %1745 = vmatmul.mubr.bf16.gmra.mrb[0].mxu0 %v1693
      %v1746 = vpop.f32.mrb[0].mxu0
      %v1747 = vadd.f32 0.0, %v1746
      %v1748 = vpop.f32.mrb[0].mxu0
      %v1749 = vpop.f32.mrb[0].mxu0
      %v1750 = vadd.f32 0.0, %v1749
      %v1751 = vpop.f32.mrb[0].mxu0
      %1752 = vmatprep.mubr.bf16.mxu0 0
      %1753 = vmatmul.mubr.bf16.gmra.mrb[0].mxu0 %v1696
      %v1754 = vpop.f32.mrb[0].mxu0
      %v1755 = vadd.f32 0.0, %v1754
      %v1756 = vpop.f32.mrb[0].mxu0
      %v1757 = vpop.f32.mrb[0].mxu0
      %v1758 = vadd.f32 0.0, %v1757
      %v1759 = vpop.f32.mrb[0].mxu0
      %1760 = vmatprep.mubr.bf16.mxu0 0
      %1761 = vmatmul.mubr.bf16.gmra.mrb[0].mxu0 %v1699
      %v1762 = vpop.f32.mrb[0].mxu0
      %v1763 = vadd.f32 0.0, %v1762
      %v1764 = vpop.f32.mrb[0].mxu0
      %v1765 = vpop.f32.mrb[0].mxu0
      %v1766 = vpop.f32.mrb[0].mxu0
      %1767 = vdwg.mxu0
      %v1768 = vmul.f32 %v1739, 0.8
      %v1769 = vmul.f32 %v1742, 0.8
      %v1770 = vmul.f32 %v1747, 0.8
      %v1771 = vmul.f32 %v1750, 0.8
      %v1772 = vmul.f32 %v1755, 0.8
      %v1773 = vmul.f32 %v1758, 0.8
      %v1774 = vmul.f32 %v1763, 0.8
      %v1775 = vmul.f32 %v1504, 0.2
      %v1776 = vmul.f32 %v1505, 0.2
      %v1777 = vmul.f32 %v1506, 0.2
      %v1778 = vmul.f32 %v1507, 0.2
      %v1779 = vmul.f32 %v1508, 0.2
      %v1780 = vmul.f32 %v1509, 0.2
      %v1781 = vmul.f32 %v1510, 0.2
      %v1782 = vadd.f32 %v1768, %v1775
      %v1783 = vadd.f32 %v1769, %v1776
      %v1784 = vadd.f32 %v1770, %v1777
      %v1785 = vadd.f32 %v1771, %v1778
      %v1786 = vadd.f32 %v1772, %v1779
      %v1787 = vadd.f32 %v1773, %v1780
      %v1788 = vadd.f32 %v1774, %v1781
      %v1789 = vpack.c.bf16 %v1783, %v1782
      %v1790 = vpack.c.bf16 %v1785, %v1784
      %v1791 = vpack.c.bf16 %v1787, %v1786
      %v1792 = vpack.c.bf16 %v1788, %v1788
      %v1793 = vld [vmem:[%s21] sm:$0xf]
      %v1794 = vld [vmem:[%s21 + $0x4] sm:$0xf]
      %v1795 = vld [vmem:[%s21 + $0x8] sm:$0xf]
      %v1796 = vld [vmem:[%s21 + $0xc] sm:$0xf]
      %v1797 = vld [vmem:[%s23] sm:$0x1]
      %v1799 = vlaneseq
      %v1800 = vshrl.u32 %v1799, 7
      %v1801 = vsub.s32 0, %v1800
      %v1802 = vrot.slane %v1797, %v1801
      %v1808 = vunpack.c.l.b16 %v1793
      %v1809 = vunpack.c.l.b16 %v1794
      %v1810 = vunpack.c.l.b16 %v1795
      %v1811 = vunpack.c.l.b16 %v1796
      %v1812 = vpack.c.b16 %v1809, %v1808
      %v1813 = vpack.c.b16 %v1811, %v1810
      %v1817 = vsel %vm1298, %v1789, 0
      %v1820 = vsel %vm1298, %v1790, 0
      %v1823 = vsel %vm1298, %v1791, 0
      %v1826 = vsel %vm1298, %v1792, 0
      %1828 = vmatprep.subr.bf16.mxu0 0
      %1829 = vmatpush1.bf16.msra.mxu0 %v1812
      %1830 = vmatprep.subr.bf16.mxu0 0
      %1831 = vmatpush1.bf16.msra.mxu0 %v1813
      %1832 = vmatprep.subr.bf16.mxu0 0
      %1833 = vmatpush1.bf16.msra.mxu0 0
      %1834 = vmatprep.subr.bf16.mxu0 0
      %1835 = vmatpush1.bf16.msra.mxu0 0
      %1836 = vmatprep.subr.bf16.mxu0 0
      %1837 = vmatpush1.bf16.msra.mxu0 0
      %1838 = vmatprep.subr.bf16.mxu0 0
      %1839 = vmatpush1.bf16.msra.mxu0 0
      %1840 = vmatprep.subr.bf16.mxu0 0
      %1841 = vmatpush1.bf16.msra.mxu0 0
      %1842 = vmatprep.subr.bf16.mxu0 0
      %1843 = vmatpush1.bf16.msra.mxu0 0
      %1844 = vmatprep.subr.bf16.mxu0 0
      %1845 = vmatpush1.bf16.msra.mxu0 0
      %1846 = vmatprep.subr.bf16.mxu0 0
      %1847 = vmatpush1.bf16.msra.mxu0 0
      %1848 = vmatprep.subr.bf16.mxu0 0
      %1849 = vmatpush1.bf16.msra.mxu0 0
      %1850 = vmatprep.subr.bf16.mxu0 0
      %1851 = vmatpush1.bf16.msra.mxu0 0
      %1852 = vmatprep.subr.bf16.mxu0 0
      %1853 = vmatpush1.bf16.msra.mxu0 0
      %1854 = vmatprep.subr.bf16.mxu0 0
      %1855 = vmatpush1.bf16.msra.mxu0 0
      %1856 = vmatprep.subr.bf16.mxu0 0
      %1857 = vmatpush1.bf16.msra.mxu0 0
      %1858 = vmatprep.subr.bf16.mxu0 0
      %1859 = vmatpush1.bf16.msra.mxu0 0
      %1860 = vmatprep.mubr.bf16.mxu0 0
      %1861 = vmatmul.mubr.bf16.gmra.mrb[0].mxu0 %v1817
      %v1862 = vpop.f32.mrb[0].mxu0
      %v1863 = vadd.f32 %v1802, %v1862
      %v1864 = vpop.f32.mrb[0].mxu0
      %v1865 = vpop.f32.mrb[0].mxu0
      %v1866 = vadd.f32 %v1802, %v1865
      %v1867 = vpop.f32.mrb[0].mxu0
      %1868 = vmatprep.mubr.bf16.mxu0 0
      %1869 = vmatmul.mubr.bf16.gmra.mrb[0].mxu0 %v1820
      %v1870 = vpop.f32.mrb[0].mxu0
      %v1871 = vadd.f32 %v1802, %v1870
      %v1872 = vpop.f32.mrb[0].mxu0
      %v1873 = vpop.f32.mrb[0].mxu0
      %v1874 = vadd.f32 %v1802, %v1873
      %v1875 = vpop.f32.mrb[0].mxu0
      %1876 = vmatprep.mubr.bf16.mxu0 0
      %1877 = vmatmul.mubr.bf16.gmra.mrb[0].mxu0 %v1823
      %v1878 = vpop.f32.mrb[0].mxu0
      %v1879 = vadd.f32 %v1802, %v1878
      %v1880 = vpop.f32.mrb[0].mxu0
      %v1881 = vpop.f32.mrb[0].mxu0
      %v1882 = vadd.f32 %v1802, %v1881
      %v1883 = vpop.f32.mrb[0].mxu0
      %1884 = vmatprep.mubr.bf16.mxu0 0
      %1885 = vmatmul.mubr.bf16.gmra.mrb[0].mxu0 %v1826
      %v1886 = vpop.f32.mrb[0].mxu0
      %v1887 = vadd.f32 %v1802, %v1886
      %v1888 = vpop.f32.mrb[0].mxu0
      %v1889 = vpop.f32.mrb[0].mxu0
      %v1890 = vpop.f32.mrb[0].mxu0
      %1891 = vdwg.mxu0
      %v1892 = vmul.f32 %v1863, %v1264
      %v1893 = vmul.f32 %v1866, %v1265
      %v1894 = vmul.f32 %v1871, %v1266
      %v1895 = vmul.f32 %v1874, %v1267
      %v1896 = vmul.f32 %v1879, %v1268
      %v1897 = vmul.f32 %v1882, %v1269
      %v1898 = vmul.f32 %v1887, %v1270
      %v1899 = vadd.f32 %v1892, %v1271
      %v1900 = vadd.f32 %v1893, %v1272
      %v1901 = vadd.f32 %v1894, %v1273
      %v1902 = vadd.f32 %v1895, %v1274
      %v1903 = vadd.f32 %v1896, %v1275
      %v1904 = vadd.f32 %v1897, %v1276
      %v1905 = vadd.f32 %v1898, %v1277
      %v1906 = vtanh.pop %v1899
      %v1907 = vtanh.pop %v1900
      %v1908 = vtanh.pop %v1901
      %v1909 = vtanh.pop %v1902
      %v1910 = vtanh.pop %v1903
      %v1911 = vtanh.pop %v1904
      %v1912 = vtanh.pop %v1905
      %s1913 = scalar_lea.vmem %s19, 28
      %v1914 = vld [vmem:[%s1913] sm:$0xf]
      %v1915 = vld [vmem:[%s1913 + $0x4] sm:$0xf]
      %v1916 = vld [vmem:[%s1913 + $0x8] sm:$0xf]
      %v1917 = vld [vmem:[%s1913 + $0xc] sm:$0xf]
      %v1918 = vld [vmem:[%s1913 + $0x10] sm:$0xf]
      %v1919 = vld [vmem:[%s1913 + $0x14] sm:$0xf]
      %v1920 = vld [vmem:[%s1913 + $0x18] sm:$0x7]
      %v1921 = vpack.c.bf16 %v1654, %v1653
      %v1922 = vpack.c.bf16 %v1656, %v1655
      %v1923 = vpack.c.bf16 %v1658, %v1657
      %v1924 = vpack.c.bf16 %v1659, %v1659
      %v1932 = vunpack.c.l.b16 %v1914
      %v1933 = vunpack.c.l.b16 %v1915
      %v1934 = vunpack.c.l.b16 %v1916
      %v1935 = vunpack.c.l.b16 %v1917
      %v1936 = vunpack.c.l.b16 %v1918
      %v1937 = vunpack.c.l.b16 %v1919
      %v1938 = vunpack.c.l.b16 %v1920
      %v1939 = vpack.c.b16 %v1933, %v1932
      %v1940 = vpack.c.b16 %v1935, %v1934
      %v1941 = vpack.c.b16 %v1937, %v1936
      %v1942 = vpack.c.b16 %v1938, %v1938
      %v1944 = vsel %vm1148, %v1939, 0
      %v1947 = vsel %vm1148, %v1940, 0
      %v1950 = vsel %vm1148, %v1941, 0
      %v1953 = vsel %vm1148, %v1942, 0
      %v1956 = vsel %vm1161, %v1924, 0
      %1958 = vmatprep.subr.bf16.mxu0 0
      %1959 = vmatpush1.bf16.msra.mxu0 %v1921
      %1960 = vmatprep.subr.bf16.mxu0 0
      %1961 = vmatpush1.bf16.msra.mxu0 %v1922
      %1962 = vmatprep.subr.bf16.mxu0 0
      %1963 = vmatpush1.bf16.msra.mxu0 %v1923
      %1964 = vmatprep.subr.bf16.mxu0 0
      %1965 = vmatpush1.bf16.msra.mxu0 %v1956
      %1966 = vmatprep.subr.bf16.mxu0 0
      %1967 = vmatpush1.bf16.msra.mxu0 0
      %1968 = vmatprep.subr.bf16.mxu0 0
      %1969 = vmatpush1.bf16.msra.mxu0 0
      %1970 = vmatprep.subr.bf16.mxu0 0
      %1971 = vmatpush1.bf16.msra.mxu0 0
      %1972 = vmatprep.subr.bf16.mxu0 0
      %1973 = vmatpush1.bf16.msra.mxu0 0
      %1974 = vmatprep.subr.bf16.mxu0 0
      %1975 = vmatpush1.bf16.msra.mxu0 0
      %1976 = vmatprep.subr.bf16.mxu0 0
      %1977 = vmatpush1.bf16.msra.mxu0 0
      %1978 = vmatprep.subr.bf16.mxu0 0
      %1979 = vmatpush1.bf16.msra.mxu0 0
      %1980 = vmatprep.subr.bf16.mxu0 0
      %1981 = vmatpush1.bf16.msra.mxu0 0
      %1982 = vmatprep.subr.bf16.mxu0 0
      %1983 = vmatpush1.bf16.msra.mxu0 0
      %1984 = vmatprep.subr.bf16.mxu0 0
      %1985 = vmatpush1.bf16.msra.mxu0 0
      %1986 = vmatprep.subr.bf16.mxu0 0
      %1987 = vmatpush1.bf16.msra.mxu0 0
      %1988 = vmatprep.subr.bf16.mxu0 0
      %1989 = vmatpush1.bf16.msra.mxu0 0
      %1990 = vmatprep.mubr.bf16.mxu0 0
      %1991 = vmatmul.mubr.bf16.gmra.mrb[0].mxu0 %v1944
      %v1992 = vpop.f32.mrb[0].mxu0
      %v1993 = vadd.f32 0.0, %v1992
      %v1994 = vpop.f32.mrb[0].mxu0
      %v1995 = vpop.f32.mrb[0].mxu0
      %v1996 = vadd.f32 0.0, %v1995
      %v1997 = vpop.f32.mrb[0].mxu0
      %1998 = vmatprep.mubr.bf16.mxu0 0
      %1999 = vmatmul.mubr.bf16.gmra.mrb[0].mxu0 %v1947
      %v2000 = vpop.f32.mrb[0].mxu0
      %v2001 = vadd.f32 0.0, %v2000
      %v2002 = vpop.f32.mrb[0].mxu0
      %v2003 = vpop.f32.mrb[0].mxu0
      %v2004 = vadd.f32 0.0, %v2003
      %v2005 = vpop.f32.mrb[0].mxu0
      %2006 = vmatprep.mubr.bf16.mxu0 0
      %2007 = vmatmul.mubr.bf16.gmra.mrb[0].mxu0 %v1950
      %v2008 = vpop.f32.mrb[0].mxu0
      %v2009 = vadd.f32 0.0, %v2008
      %v2010 = vpop.f32.mrb[0].mxu0
      %v2011 = vpop.f32.mrb[0].mxu0
      %v2012 = vadd.f32 0.0, %v2011
      %v2013 = vpop.f32.mrb[0].mxu0
      %2014 = vmatprep.mubr.bf16.mxu0 0
      %2015 = vmatmul.mubr.bf16.gmra.mrb[0].mxu0 %v1953
      %v2016 = vpop.f32.mrb[0].mxu0
      %v2017 = vadd.f32 0.0, %v2016
      %v2018 = vpop.f32.mrb[0].mxu0
      %v2019 = vpop.f32.mrb[0].mxu0
      %v2020 = vpop.f32.mrb[0].mxu0
      %2021 = vdwg.mxu0
      %v2022 = vmul.f32 %v1993, 0.8
      %v2023 = vmul.f32 %v1996, 0.8
      %v2024 = vmul.f32 %v2001, 0.8
      %v2025 = vmul.f32 %v2004, 0.8
      %v2026 = vmul.f32 %v2009, 0.8
      %v2027 = vmul.f32 %v2012, 0.8
      %v2028 = vmul.f32 %v2017, 0.8
      %v2029 = vmul.f32 %v1653, 0.2
      %v2030 = vmul.f32 %v1654, 0.2
      %v2031 = vmul.f32 %v1655, 0.2
      %v2032 = vmul.f32 %v1656, 0.2
      %v2033 = vmul.f32 %v1657, 0.2
      %v2034 = vmul.f32 %v1658, 0.2
      %v2035 = vmul.f32 %v1659, 0.2
      %v2036 = vadd.f32 %v2022, %v2029
      %v2037 = vadd.f32 %v2023, %v2030
      %v2038 = vadd.f32 %v2024, %v2031
      %v2039 = vadd.f32 %v2025, %v2032
      %v2040 = vadd.f32 %v2026, %v2033
      %v2041 = vadd.f32 %v2027, %v2034
      %v2042 = vadd.f32 %v2028, %v2035
      %v2043 = vpack.c.bf16 %v2037, %v2036
      %v2044 = vpack.c.bf16 %v2039, %v2038
      %v2045 = vpack.c.bf16 %v2041, %v2040
      %v2046 = vpack.c.bf16 %v2042, %v2042
      %s2047 = scalar_lea.vmem %s21, 16
      %v2048 = vld [vmem:[%s2047] sm:$0xf]
      %v2049 = vld [vmem:[%s2047 + $0x4] sm:$0xf]
      %v2050 = vld [vmem:[%s2047 + $0x8] sm:$0xf]
      %v2051 = vld [vmem:[%s2047 + $0xc] sm:$0xf]
      %s2052 = scalar_lea.vmem %s23, 1
      %v2053 = vld [vmem:[%s2052] sm:$0x1]
      %v2055 = vlaneseq
      %v2056 = vshrl.u32 %v2055, 7
      %v2057 = vsub.s32 0, %v2056
      %v2058 = vrot.slane %v2053, %v2057
      %v2064 = vunpack.c.l.b16 %v2048
      %v2065 = vunpack.c.l.b16 %v2049
      %v2066 = vunpack.c.l.b16 %v2050
      %v2067 = vunpack.c.l.b16 %v2051
      %v2068 = vpack.c.b16 %v2065, %v2064
      %v2069 = vpack.c.b16 %v2067, %v2066
      %v2073 = vsel %vm1298, %v2043, 0
      %v2076 = vsel %vm1298, %v2044, 0
      %v2079 = vsel %vm1298, %v2045, 0
      %v2082 = vsel %vm1298, %v2046, 0
      %2084 = vmatprep.subr.bf16.mxu0 0
      %2085 = vmatpush1.bf16.msra.mxu0 %v2068
      %2086 = vmatprep.subr.bf16.mxu0 0
      %2087 = vmatpush1.bf16.msra.mxu0 %v2069
      %2088 = vmatprep.subr.bf16.mxu0 0
      %2089 = vmatpush1.bf16.msra.mxu0 0
      %2090 = vmatprep.subr.bf16.mxu0 0
      %2091 = vmatpush1.bf16.msra.mxu0 0
      %2092 = vmatprep.subr.bf16.mxu0 0
      %2093 = vmatpush1.bf16.msra.mxu0 0
      %2094 = vmatprep.subr.bf16.mxu0 0
      %2095 = vmatpush1.bf16.msra.mxu0 0
      %2096 = vmatprep.subr.bf16.mxu0 0
      %2097 = vmatpush1.bf16.msra.mxu0 0
      %2098 = vmatprep.subr.bf16.mxu0 0
      %2099 = vmatpush1.bf16.msra.mxu0 0
      %2100 = vmatprep.subr.bf16.mxu0 0
      %2101 = vmatpush1.bf16.msra.mxu0 0
      %2102 = vmatprep.subr.bf16.mxu0 0
      %2103 = vmatpush1.bf16.msra.mxu0 0
      %2104 = vmatprep.subr.bf16.mxu0 0
      %2105 = vmatpush1.bf16.msra.mxu0 0
      %2106 = vmatprep.subr.bf16.mxu0 0
      %2107 = vmatpush1.bf16.msra.mxu0 0
      %2108 = vmatprep.subr.bf16.mxu0 0
      %2109 = vmatpush1.bf16.msra.mxu0 0
      %2110 = vmatprep.subr.bf16.mxu0 0
      %2111 = vmatpush1.bf16.msra.mxu0 0
      %2112 = vmatprep.subr.bf16.mxu0 0
      %2113 = vmatpush1.bf16.msra.mxu0 0
      %2114 = vmatprep.subr.bf16.mxu0 0
      %2115 = vmatpush1.bf16.msra.mxu0 0
      %2116 = vmatprep.mubr.bf16.mxu0 0
      %2117 = vmatmul.mubr.bf16.gmra.mrb[0].mxu0 %v2073
      %v2118 = vpop.f32.mrb[0].mxu0
      %v2119 = vadd.f32 %v2058, %v2118
      %v2120 = vpop.f32.mrb[0].mxu0
      %v2121 = vpop.f32.mrb[0].mxu0
      %v2122 = vadd.f32 %v2058, %v2121
      %v2123 = vpop.f32.mrb[0].mxu0
      %2124 = vmatprep.mubr.bf16.mxu0 0
      %2125 = vmatmul.mubr.bf16.gmra.mrb[0].mxu0 %v2076
      %v2126 = vpop.f32.mrb[0].mxu0
      %v2127 = vadd.f32 %v2058, %v2126
      %v2128 = vpop.f32.mrb[0].mxu0
      %v2129 = vpop.f32.mrb[0].mxu0
      %v2130 = vadd.f32 %v2058, %v2129
      %v2131 = vpop.f32.mrb[0].mxu0
      %2132 = vmatprep.mubr.bf16.mxu0 0
      %2133 = vmatmul.mubr.bf16.gmra.mrb[0].mxu0 %v2079
      %v2134 = vpop.f32.mrb[0].mxu0
      %v2135 = vadd.f32 %v2058, %v2134
      %v2136 = vpop.f32.mrb[0].mxu0
      %v2137 = vpop.f32.mrb[0].mxu0
      %v2138 = vadd.f32 %v2058, %v2137
      %v2139 = vpop.f32.mrb[0].mxu0
      %2140 = vmatprep.mubr.bf16.mxu0 0
      %2141 = vmatmul.mubr.bf16.gmra.mrb[0].mxu0 %v2082
      %v2142 = vpop.f32.mrb[0].mxu0
      %v2143 = vadd.f32 %v2058, %v2142
      %v2144 = vpop.f32.mrb[0].mxu0
      %v2145 = vpop.f32.mrb[0].mxu0
      %v2146 = vpop.f32.mrb[0].mxu0
      %2147 = vdwg.mxu0
      %v2148 = vmul.f32 %v2119, %v1264
      %v2149 = vmul.f32 %v2122, %v1265
      %v2150 = vmul.f32 %v2127, %v1266
      %v2151 = vmul.f32 %v2130, %v1267
      %v2152 = vmul.f32 %v2135, %v1268
      %v2153 = vmul.f32 %v2138, %v1269
      %v2154 = vmul.f32 %v2143, %v1270
      %v2155 = vadd.f32 %v2148, %v1271
      %v2156 = vadd.f32 %v2149, %v1272
      %v2157 = vadd.f32 %v2150, %v1273
      %v2158 = vadd.f32 %v2151, %v1274
      %v2159 = vadd.f32 %v2152, %v1275
      %v2160 = vadd.f32 %v2153, %v1276
      %v2161 = vadd.f32 %v2154, %v1277
      %v2162 = vtanh.pop %v2155
      %v2163 = vtanh.pop %v2156
      %v2164 = vtanh.pop %v2157
      %v2165 = vtanh.pop %v2158
      %v2166 = vtanh.pop %v2159
      %v2167 = vtanh.pop %v2160
      %v2168 = vtanh.pop %v2161
      %v2169 = vpack.c.bf16 %v1907, %v1906
      %v2170 = vpack.c.bf16 %v1909, %v1908
      %v2171 = vpack.c.bf16 %v1911, %v1910
      %v2172 = vpack.c.bf16 %v1912, %v1912
      %v2173 = vld [vmem:[%s29] sm:$0xf]
      %v2174 = vld [vmem:[%s29 + $0x4] sm:$0xf]
      %v2175 = vld [vmem:[%s29 + $0x8] sm:$0xf]
      %v2176 = vld [vmem:[%s29 + $0xc] sm:$0xf]
      %v2177 = vpack.c.bf16 %v2163, %v2162
      %v2178 = vpack.c.bf16 %v2165, %v2164
      %v2179 = vpack.c.bf16 %v2167, %v2166
      %v2180 = vpack.c.bf16 %v2168, %v2168
      %s2181 = scalar_lea.vmem %s29, 16
      %v2182 = vld [vmem:[%s2181] sm:$0xf]
      %v2183 = vld [vmem:[%s2181 + $0x4] sm:$0xf]
      %v2184 = vld [vmem:[%s2181 + $0x8] sm:$0xf]
      %v2185 = vld [vmem:[%s2181 + $0xc] sm:$0xf]
      %v2190 = vunpack.c.l.b16 %v2182
      %v2191 = vunpack.c.l.b16 %v2183
      %v2192 = vunpack.c.l.b16 %v2184
      %v2193 = vunpack.c.l.b16 %v2185
      %v2194 = vpack.c.b16 %v2191, %v2190
      %v2195 = vpack.c.b16 %v2193, %v2192
      %v2199 = vsel %vm1298, %v2177, 0
      %v2202 = vsel %vm1298, %v2178, 0
      %v2205 = vsel %vm1298, %v2179, 0
      %v2208 = vsel %vm1298, %v2180, 0
      %2210 = vmatprep.subr.bf16.mxu0 0
      %2211 = vmatpush1.bf16.msra.mxu0 %v2194
      %2212 = vmatprep.subr.bf16.mxu0 0
      %2213 = vmatpush1.bf16.msra.mxu0 %v2195
      %2214 = vmatprep.subr.bf16.mxu0 0
      %2215 = vmatpush1.bf16.msra.mxu0 0
      %2216 = vmatprep.subr.bf16.mxu0 0
      %2217 = vmatpush1.bf16.msra.mxu0 0
      %2218 = vmatprep.subr.bf16.mxu0 0
      %2219 = vmatpush1.bf16.msra.mxu0 0
      %2220 = vmatprep.subr.bf16.mxu0 0
      %2221 = vmatpush1.bf16.msra.mxu0 0
      %2222 = vmatprep.subr.bf16.mxu0 0
      %2223 = vmatpush1.bf16.msra.mxu0 0
      %2224 = vmatprep.subr.bf16.mxu0 0
      %2225 = vmatpush1.bf16.msra.mxu0 0
      %2226 = vmatprep.subr.bf16.mxu0 0
      %2227 = vmatpush1.bf16.msra.mxu0 0
      %2228 = vmatprep.subr.bf16.mxu0 0
      %2229 = vmatpush1.bf16.msra.mxu0 0
      %2230 = vmatprep.subr.bf16.mxu0 0
      %2231 = vmatpush1.bf16.msra.mxu0 0
      %2232 = vmatprep.subr.bf16.mxu0 0
      %2233 = vmatpush1.bf16.msra.mxu0 0
      %2234 = vmatprep.subr.bf16.mxu0 0
      %2235 = vmatpush1.bf16.msra.mxu0 0
      %2236 = vmatprep.subr.bf16.mxu0 0
      %2237 = vmatpush1.bf16.msra.mxu0 0
      %2238 = vmatprep.subr.bf16.mxu0 0
      %2239 = vmatpush1.bf16.msra.mxu0 0
      %2240 = vmatprep.subr.bf16.mxu0 0
      %2241 = vmatpush1.bf16.msra.mxu0 0
      %2242 = vmatprep.mubr.bf16.mxu0 0
      %2243 = vmatmul.mubr.bf16.gmra.mrb[0].mxu0 %v2199
      %v2244 = vpop.f32.mrb[0].mxu0
      %v2245 = vadd.f32 0.0, %v2244
      %v2246 = vpop.f32.mrb[0].mxu0
      %v2247 = vpop.f32.mrb[0].mxu0
      %v2248 = vadd.f32 0.0, %v2247
      %v2249 = vpop.f32.mrb[0].mxu0
      %2250 = vmatprep.mubr.bf16.mxu0 0
      %2251 = vmatmul.mubr.bf16.gmra.mrb[0].mxu0 %v2202
      %v2252 = vpop.f32.mrb[0].mxu0
      %v2253 = vadd.f32 0.0, %v2252
      %v2254 = vpop.f32.mrb[0].mxu0
      %v2255 = vpop.f32.mrb[0].mxu0
      %v2256 = vadd.f32 0.0, %v2255
      %v2257 = vpop.f32.mrb[0].mxu0
      %2258 = vmatprep.mubr.bf16.mxu0 0
      %2259 = vmatmul.mubr.bf16.gmra.mrb[0].mxu0 %v2205
      %v2260 = vpop.f32.mrb[0].mxu0
      %v2261 = vadd.f32 0.0, %v2260
      %v2262 = vpop.f32.mrb[0].mxu0
      %v2263 = vpop.f32.mrb[0].mxu0
      %v2264 = vadd.f32 0.0, %v2263
      %v2265 = vpop.f32.mrb[0].mxu0
      %2266 = vmatprep.mubr.bf16.mxu0 0
      %2267 = vmatmul.mubr.bf16.gmra.mrb[0].mxu0 %v2208
      %v2268 = vpop.f32.mrb[0].mxu0
      %v2269 = vadd.f32 0.0, %v2268
      %v2270 = vpop.f32.mrb[0].mxu0
      %v2271 = vpop.f32.mrb[0].mxu0
      %v2272 = vpop.f32.mrb[0].mxu0
      %2273 = vdwg.mxu0
      %v2278 = vunpack.c.l.b16 %v2173
      %v2279 = vunpack.c.l.b16 %v2174
      %v2280 = vunpack.c.l.b16 %v2175
      %v2281 = vunpack.c.l.b16 %v2176
      %v2282 = vpack.c.b16 %v2279, %v2278
      %v2283 = vpack.c.b16 %v2281, %v2280
      %v2287 = vsel %vm1298, %v2169, 0
      %v2290 = vsel %vm1298, %v2170, 0
      %v2293 = vsel %vm1298, %v2171, 0
      %v2296 = vsel %vm1298, %v2172, 0
      %2298 = vmatprep.subr.bf16.mxu0 0
      %2299 = vmatpush1.bf16.msra.mxu0 %v2282
      %2300 = vmatprep.subr.bf16.mxu0 0
      %2301 = vmatpush1.bf16.msra.mxu0 %v2283
      %2302 = vmatprep.subr.bf16.mxu0 0
      %2303 = vmatpush1.bf16.msra.mxu0 0
      %2304 = vmatprep.subr.bf16.mxu0 0
      %2305 = vmatpush1.bf16.msra.mxu0 0
      %2306 = vmatprep.subr.bf16.mxu0 0
      %2307 = vmatpush1.bf16.msra.mxu0 0
      %2308 = vmatprep.subr.bf16.mxu0 0
      %2309 = vmatpush1.bf16.msra.mxu0 0
      %2310 = vmatprep.subr.bf16.mxu0 0
      %2311 = vmatpush1.bf16.msra.mxu0 0
      %2312 = vmatprep.subr.bf16.mxu0 0
      %2313 = vmatpush1.bf16.msra.mxu0 0
      %2314 = vmatprep.subr.bf16.mxu0 0
      %2315 = vmatpush1.bf16.msra.mxu0 0
      %2316 = vmatprep.subr.bf16.mxu0 0
      %2317 = vmatpush1.bf16.msra.mxu0 0
      %2318 = vmatprep.subr.bf16.mxu0 0
      %2319 = vmatpush1.bf16.msra.mxu0 0
      %2320 = vmatprep.subr.bf16.mxu0 0
      %2321 = vmatpush1.bf16.msra.mxu0 0
      %2322 = vmatprep.subr.bf16.mxu0 0
      %2323 = vmatpush1.bf16.msra.mxu0 0
      %2324 = vmatprep.subr.bf16.mxu0 0
      %2325 = vmatpush1.bf16.msra.mxu0 0
      %2326 = vmatprep.subr.bf16.mxu0 0
      %2327 = vmatpush1.bf16.msra.mxu0 0
      %2328 = vmatprep.subr.bf16.mxu0 0
      %2329 = vmatpush1.bf16.msra.mxu0 0
      %2330 = vmatprep.mubr.bf16.mxu0 0
      %2331 = vmatmul.mubr.bf16.gmra.mrb[0].mxu0 %v2287
      %v2332 = vpop.f32.mrb[0].mxu0
      %v2333 = vadd.f32 %v2245, %v2332
      %v2334 = vpop.f32.mrb[0].mxu0
      %v2335 = vpop.f32.mrb[0].mxu0
      %v2336 = vadd.f32 %v2248, %v2335
      %v2337 = vpop.f32.mrb[0].mxu0
      %2338 = vmatprep.mubr.bf16.mxu0 0
      %2339 = vmatmul.mubr.bf16.gmra.mrb[0].mxu0 %v2290
      %v2340 = vpop.f32.mrb[0].mxu0
      %v2341 = vadd.f32 %v2253, %v2340
      %v2342 = vpop.f32.mrb[0].mxu0
      %v2343 = vpop.f32.mrb[0].mxu0
      %v2344 = vadd.f32 %v2256, %v2343
      %v2345 = vpop.f32.mrb[0].mxu0
      %2346 = vmatprep.mubr.bf16.mxu0 0
      %2347 = vmatmul.mubr.bf16.gmra.mrb[0].mxu0 %v2293
      %v2348 = vpop.f32.mrb[0].mxu0
      %v2349 = vadd.f32 %v2261, %v2348
      %v2350 = vpop.f32.mrb[0].mxu0
      %v2351 = vpop.f32.mrb[0].mxu0
      %v2352 = vadd.f32 %v2264, %v2351
      %v2353 = vpop.f32.mrb[0].mxu0
      %2354 = vmatprep.mubr.bf16.mxu0 0
      %2355 = vmatmul.mubr.bf16.gmra.mrb[0].mxu0 %v2296
      %v2356 = vpop.f32.mrb[0].mxu0
      %v2357 = vadd.f32 %v2269, %v2356
      %v2358 = vpop.f32.mrb[0].mxu0
      %v2359 = vpop.f32.mrb[0].mxu0
      %v2360 = vpop.f32.mrb[0].mxu0
      %2361 = vdwg.mxu0
      %v2362 = vld [vmem:[%s31] sm:$0x1]
      %v2364 = vlaneseq
      %v2365 = vshrl.u32 %v2364, 7
      %v2366 = vsub.s32 0, %v2365
      %v2367 = vrot.slane %v2362, %v2366
      %v2369 = vadd.f32 %v2333, %v2367
      %v2370 = vadd.f32 %v2336, %v2367
      %v2371 = vadd.f32 %v2341, %v2367
      %v2372 = vadd.f32 %v2344, %v2367
      %v2373 = vadd.f32 %v2349, %v2367
      %v2374 = vadd.f32 %v2352, %v2367
      %v2375 = vadd.f32 %v2357, %v2367
      %v2376 = vld [vmem:[%s33] sm:$0xff]
      %v2377 = vld [vmem:[%s33 + $0x8] sm:$0xff]
      %v2378 = vld [vmem:[%s33 + $0x10] sm:$0xff]
      %v2379 = vld [vmem:[%s33 + $0x18] sm:$0xff]
      %v2380 = vld [vmem:[%s33 + $0x20] sm:$0xff]
      %v2381 = vld [vmem:[%s33 + $0x28] sm:$0xff]
      %v2382 = vld [vmem:[%s33 + $0x30] sm:$0x3f]
      %v2383 = vmul.f32 %v2369, %v2376
      %v2384 = vmul.f32 %v2370, %v2377
      %v2385 = vmul.f32 %v2371, %v2378
      %v2386 = vmul.f32 %v2372, %v2379
      %v2387 = vmul.f32 %v2373, %v2380
      %v2388 = vmul.f32 %v2374, %v2381
      %v2389 = vmul.f32 %v2375, %v2382
      %v2390 = vld [vmem:[%s35] sm:$0xff]
      %v2391 = vld [vmem:[%s35 + $0x8] sm:$0xff]
      %v2392 = vld [vmem:[%s35 + $0x10] sm:$0xff]
      %v2393 = vld [vmem:[%s35 + $0x18] sm:$0xff]
      %v2394 = vld [vmem:[%s35 + $0x20] sm:$0xff]
      %v2395 = vld [vmem:[%s35 + $0x28] sm:$0xff]
      %v2396 = vld [vmem:[%s35 + $0x30] sm:$0x3f]
      %v2397 = vadd.f32 %v2383, %v2390
      %v2398 = vadd.f32 %v2384, %v2391
      %v2399 = vadd.f32 %v2385, %v2392
      %v2400 = vadd.f32 %v2386, %v2393
      %v2401 = vadd.f32 %v2387, %v2394
      %v2402 = vadd.f32 %v2388, %v2395
      %v2403 = vadd.f32 %v2389, %v2396
      %v2404 = vadd.f32 %v2397, %v1257
      %v2405 = vadd.f32 %v2398, %v1258
      %v2406 = vadd.f32 %v2399, %v1259
      %v2407 = vadd.f32 %v2400, %v1260
      %v2408 = vadd.f32 %v2401, %v1261
      %v2409 = vadd.f32 %v2402, %v1262
      %v2410 = vadd.f32 %v2403, %v1263
      %v2411 = vld [vmem:[%s49] sm:$0xff]
      %v2412 = vld [vmem:[%s49 + $0x8] sm:$0xff]
      %v2413 = vld [vmem:[%s49 + $0x10] sm:$0xff]
      %v2414 = vld [vmem:[%s49 + $0x18] sm:$0xff]
      %v2415 = vld [vmem:[%s49 + $0x20] sm:$0xff]
      %v2416 = vld [vmem:[%s49 + $0x28] sm:$0xff]
      %v2417 = vld [vmem:[%s49 + $0x30] sm:$0x3f]
      %v2418 = vld [vmem:[%s51] sm:$0xff]
      %v2419 = vld [vmem:[%s51 + $0x8] sm:$0xff]
      %v2420 = vld [vmem:[%s51 + $0x10] sm:$0xff]
      %v2421 = vld [vmem:[%s51 + $0x18] sm:$0xff]
      %v2422 = vld [vmem:[%s51 + $0x20] sm:$0xff]
      %v2423 = vld [vmem:[%s51 + $0x28] sm:$0xff]
      %v2424 = vld [vmem:[%s51 + $0x30] sm:$0x3f]
      %v2425 = vpack.c.bf16 %v2405, %v2404
      %v2426 = vpack.c.bf16 %v2407, %v2406
      %v2427 = vpack.c.bf16 %v2409, %v2408
      %v2428 = vpack.c.bf16 %v2410, %v2410
      %v2429 = vld [vmem:[%s39] sm:$0xf]
      %v2430 = vld [vmem:[%s39 + $0x4] sm:$0xf]
      %v2431 = vld [vmem:[%s39 + $0x8] sm:$0xf]
      %v2432 = vld [vmem:[%s39 + $0xc] sm:$0xf]
      %v2437 = vunpack.c.l.b16 %v2429
      %v2438 = vunpack.c.l.b16 %v2430
      %v2439 = vunpack.c.l.b16 %v2431
      %v2440 = vunpack.c.l.b16 %v2432
      %v2441 = vpack.c.b16 %v2438, %v2437
      %v2442 = vpack.c.b16 %v2440, %v2439
      %v2446 = vsel %vm1298, %v2425, 0
      %v2449 = vsel %vm1298, %v2426, 0
      %v2452 = vsel %vm1298, %v2427, 0
      %v2455 = vsel %vm1298, %v2428, 0
      %2457 = vmatprep.subr.bf16.mxu0 0
      %2458 = vmatpush1.bf16.msra.mxu0 %v2441
      %2459 = vmatprep.subr.bf16.mxu0 0
      %2460 = vmatpush1.bf16.msra.mxu0 %v2442
      %2461 = vmatprep.subr.bf16.mxu0 0
      %2462 = vmatpush1.bf16.msra.mxu0 0
      %2463 = vmatprep.subr.bf16.mxu0 0
      %2464 = vmatpush1.bf16.msra.mxu0 0
      %2465 = vmatprep.subr.bf16.mxu0 0
      %2466 = vmatpush1.bf16.msra.mxu0 0
      %2467 = vmatprep.subr.bf16.mxu0 0
      %2468 = vmatpush1.bf16.msra.mxu0 0
      %2469 = vmatprep.subr.bf16.mxu0 0
      %2470 = vmatpush1.bf16.msra.mxu0 0
      %2471 = vmatprep.subr.bf16.mxu0 0
      %2472 = vmatpush1.bf16.msra.mxu0 0
      %2473 = vmatprep.subr.bf16.mxu0 0
      %2474 = vmatpush1.bf16.msra.mxu0 0
      %2475 = vmatprep.subr.bf16.mxu0 0
      %2476 = vmatpush1.bf16.msra.mxu0 0
      %2477 = vmatprep.subr.bf16.mxu0 0
      %2478 = vmatpush1.bf16.msra.mxu0 0
      %2479 = vmatprep.subr.bf16.mxu0 0
      %2480 = vmatpush1.bf16.msra.mxu0 0
      %2481 = vmatprep.subr.bf16.mxu0 0
      %2482 = vmatpush1.bf16.msra.mxu0 0
      %2483 = vmatprep.subr.bf16.mxu0 0
      %2484 = vmatpush1.bf16.msra.mxu0 0
      %2485 = vmatprep.subr.bf16.mxu0 0
      %2486 = vmatpush1.bf16.msra.mxu0 0
      %2487 = vmatprep.subr.bf16.mxu0 0
      %2488 = vmatpush1.bf16.msra.mxu0 0
      %2489 = vmatprep.mubr.bf16.mxu0 0
      %2490 = vmatmul.mubr.bf16.gmra.mrb[0].mxu0 %v2446
      %v2491 = vpop.f32.mrb[0].mxu0
      %v2492 = vadd.f32 0.0, %v2491
      %v2493 = vpop.f32.mrb[0].mxu0
      %v2494 = vpop.f32.mrb[0].mxu0
      %v2495 = vadd.f32 0.0, %v2494
      %v2496 = vpop.f32.mrb[0].mxu0
      %2497 = vmatprep.mubr.bf16.mxu0 0
      %2498 = vmatmul.mubr.bf16.gmra.mrb[0].mxu0 %v2449
      %v2499 = vpop.f32.mrb[0].mxu0
      %v2500 = vadd.f32 0.0, %v2499
      %v2501 = vpop.f32.mrb[0].mxu0
      %v2502 = vpop.f32.mrb[0].mxu0
      %v2503 = vadd.f32 0.0, %v2502
      %v2504 = vpop.f32.mrb[0].mxu0
      %2505 = vmatprep.mubr.bf16.mxu0 0
      %2506 = vmatmul.mubr.bf16.gmra.mrb[0].mxu0 %v2452
      %v2507 = vpop.f32.mrb[0].mxu0
      %v2508 = vadd.f32 0.0, %v2507
      %v2509 = vpop.f32.mrb[0].mxu0
      %v2510 = vpop.f32.mrb[0].mxu0
      %v2511 = vadd.f32 0.0, %v2510
      %v2512 = vpop.f32.mrb[0].mxu0
      %2513 = vmatprep.mubr.bf16.mxu0 0
      %2514 = vmatmul.mubr.bf16.gmra.mrb[0].mxu0 %v2455
      %v2515 = vpop.f32.mrb[0].mxu0
      %v2516 = vadd.f32 0.0, %v2515
      %v2517 = vpop.f32.mrb[0].mxu0
      %v2518 = vpop.f32.mrb[0].mxu0
      %v2519 = vpop.f32.mrb[0].mxu0
      %2520 = vdwg.mxu0
      %v2521 = vld [vmem:[%s37] sm:$0xf]
      %v2522 = vld [vmem:[%s37 + $0x4] sm:$0xf]
      %v2523 = vld [vmem:[%s37 + $0x8] sm:$0xf]
      %v2524 = vld [vmem:[%s37 + $0xc] sm:$0xf]
      %v2525 = vld [vmem:[%s37 + $0x10] sm:$0xf]
      %v2526 = vld [vmem:[%s37 + $0x14] sm:$0xf]
      %v2527 = vld [vmem:[%s37 + $0x18] sm:$0x7]
      %v2528 = vpack.c.bf16 %v2495, %v2492
      %v2529 = vpack.c.bf16 %v2503, %v2500
      %v2530 = vpack.c.bf16 %v2511, %v2508
      %v2531 = vpack.c.bf16 %v2516, %v2516
      %v2532 = vld [vmem:[%s41] sm:$0x1]
      %v2534 = vlaneseq
      %v2535 = vshrl.u32 %v2534, 7
      %v2536 = vsub.s32 0, %v2535
      %v2537 = vrot.slane %v2532, %v2536
      %v2546 = vunpack.c.l.b16 %v2521
      %v2547 = vunpack.c.l.b16 %v2522
      %v2548 = vunpack.c.l.b16 %v2523
      %v2549 = vunpack.c.l.b16 %v2524
      %v2550 = vunpack.c.l.b16 %v2525
      %v2551 = vunpack.c.l.b16 %v2526
      %v2552 = vunpack.c.l.b16 %v2527
      %v2553 = vpack.c.b16 %v2547, %v2546
      %v2554 = vpack.c.b16 %v2549, %v2548
      %v2555 = vpack.c.b16 %v2551, %v2550
      %v2556 = vpack.c.b16 %v2552, %v2552
      %v2558 = vsel %vm1148, %v2553, 0
      %v2561 = vsel %vm1148, %v2554, 0
      %v2564 = vsel %vm1148, %v2555, 0
      %v2567 = vsel %vm1148, %v2556, 0
      %v2570 = vsel %vm1161, %v2531, 0
      %2572 = vmatprep.subr.bf16.mxu0 0
      %2573 = vmatpush1.bf16.msra.mxu0 %v2528
      %2574 = vmatprep.subr.bf16.mxu0 0
      %2575 = vmatpush1.bf16.msra.mxu0 %v2529
      %2576 = vmatprep.subr.bf16.mxu0 0
      %2577 = vmatpush1.bf16.msra.mxu0 %v2530
      %2578 = vmatprep.subr.bf16.mxu0 0
      %2579 = vmatpush1.bf16.msra.mxu0 %v2570
      %2580 = vmatprep.subr.bf16.mxu0 0
      %2581 = vmatpush1.bf16.msra.mxu0 0
      %2582 = vmatprep.subr.bf16.mxu0 0
      %2583 = vmatpush1.bf16.msra.mxu0 0
      %2584 = vmatprep.subr.bf16.mxu0 0
      %2585 = vmatpush1.bf16.msra.mxu0 0
      %2586 = vmatprep.subr.bf16.mxu0 0
      %2587 = vmatpush1.bf16.msra.mxu0 0
      %2588 = vmatprep.subr.bf16.mxu0 0
      %2589 = vmatpush1.bf16.msra.mxu0 0
      %2590 = vmatprep.subr.bf16.mxu0 0
      %2591 = vmatpush1.bf16.msra.mxu0 0
      %2592 = vmatprep.subr.bf16.mxu0 0
      %2593 = vmatpush1.bf16.msra.mxu0 0
      %2594 = vmatprep.subr.bf16.mxu0 0
      %2595 = vmatpush1.bf16.msra.mxu0 0
      %2596 = vmatprep.subr.bf16.mxu0 0
      %2597 = vmatpush1.bf16.msra.mxu0 0
      %2598 = vmatprep.subr.bf16.mxu0 0
      %2599 = vmatpush1.bf16.msra.mxu0 0
      %2600 = vmatprep.subr.bf16.mxu0 0
      %2601 = vmatpush1.bf16.msra.mxu0 0
      %2602 = vmatprep.subr.bf16.mxu0 0
      %2603 = vmatpush1.bf16.msra.mxu0 0
      %2604 = vmatprep.mubr.bf16.mxu0 0
      %2605 = vmatmul.mubr.bf16.gmra.mrb[0].mxu0 %v2558
      %v2606 = vpop.f32.mrb[0].mxu0
      %v2607 = vadd.f32 %v2537, %v2606
      %v2608 = vpop.f32.mrb[0].mxu0
      %v2609 = vpop.f32.mrb[0].mxu0
      %v2610 = vadd.f32 %v2537, %v2609
      %v2611 = vpop.f32.mrb[0].mxu0
      %2612 = vmatprep.mubr.bf16.mxu0 0
      %2613 = vmatmul.mubr.bf16.gmra.mrb[0].mxu0 %v2561
      %v2614 = vpop.f32.mrb[0].mxu0
      %v2615 = vadd.f32 %v2537, %v2614
      %v2616 = vpop.f32.mrb[0].mxu0
      %v2617 = vpop.f32.mrb[0].mxu0
      %v2618 = vadd.f32 %v2537, %v2617
      %v2619 = vpop.f32.mrb[0].mxu0
      %2620 = vmatprep.mubr.bf16.mxu0 0
      %2621 = vmatmul.mubr.bf16.gmra.mrb[0].mxu0 %v2564
      %v2622 = vpop.f32.mrb[0].mxu0
      %v2623 = vadd.f32 %v2537, %v2622
      %v2624 = vpop.f32.mrb[0].mxu0
      %v2625 = vpop.f32.mrb[0].mxu0
      %v2626 = vadd.f32 %v2537, %v2625
      %v2627 = vpop.f32.mrb[0].mxu0
      %2628 = vmatprep.mubr.bf16.mxu0 0
      %2629 = vmatmul.mubr.bf16.gmra.mrb[0].mxu0 %v2567
      %v2630 = vpop.f32.mrb[0].mxu0
      %v2631 = vadd.f32 %v2537, %v2630
      %v2632 = vpop.f32.mrb[0].mxu0
      %v2633 = vpop.f32.mrb[0].mxu0
      %v2634 = vpop.f32.mrb[0].mxu0
      %2635 = vdwg.mxu0
      %v2636 = vmul.f32 %v2607, %v2411
      %v2637 = vmul.f32 %v2610, %v2412
      %v2638 = vmul.f32 %v2615, %v2413
      %v2639 = vmul.f32 %v2618, %v2414
      %v2640 = vmul.f32 %v2623, %v2415
      %v2641 = vmul.f32 %v2626, %v2416
      %v2642 = vmul.f32 %v2631, %v2417
      %v2643 = vadd.f32 %v2636, %v2418
      %v2644 = vadd.f32 %v2637, %v2419
      %v2645 = vadd.f32 %v2638, %v2420
      %v2646 = vadd.f32 %v2639, %v2421
      %v2647 = vadd.f32 %v2640, %v2422
      %v2648 = vadd.f32 %v2641, %v2423
      %v2649 = vadd.f32 %v2642, %v2424
      %v2650 = vtanh.pop %v2643
      %v2651 = vtanh.pop %v2644
      %v2652 = vtanh.pop %v2645
      %v2653 = vtanh.pop %v2646
      %v2654 = vtanh.pop %v2647
      %v2655 = vtanh.pop %v2648
      %v2656 = vtanh.pop %v2649
      %s2657 = scalar_lea.vmem %s37, 28
      %v2658 = vld [vmem:[%s2657] sm:$0xf]
      %v2659 = vld [vmem:[%s2657 + $0x4] sm:$0xf]
      %v2660 = vld [vmem:[%s2657 + $0x8] sm:$0xf]
      %v2661 = vld [vmem:[%s2657 + $0xc] sm:$0xf]
      %v2662 = vld [vmem:[%s2657 + $0x10] sm:$0xf]
      %v2663 = vld [vmem:[%s2657 + $0x14] sm:$0xf]
      %v2664 = vld [vmem:[%s2657 + $0x18] sm:$0x7]
      %s2665 = scalar_lea.vmem %s41, 1
      %v2666 = vld [vmem:[%s2665] sm:$0x1]
      %v2668 = vlaneseq
      %v2669 = vshrl.u32 %v2668, 7
      %v2670 = vsub.s32 0, %v2669
      %v2671 = vrot.slane %v2666, %v2670
      %v2680 = vunpack.c.l.b16 %v2658
      %v2681 = vunpack.c.l.b16 %v2659
      %v2682 = vunpack.c.l.b16 %v2660
      %v2683 = vunpack.c.l.b16 %v2661
      %v2684 = vunpack.c.l.b16 %v2662
      %v2685 = vunpack.c.l.b16 %v2663
      %v2686 = vunpack.c.l.b16 %v2664
      %v2687 = vpack.c.b16 %v2681, %v2680
      %v2688 = vpack.c.b16 %v2683, %v2682
      %v2689 = vpack.c.b16 %v2685, %v2684
      %v2690 = vpack.c.b16 %v2686, %v2686
      %2695 = vrot.lane.b32.xlu0 %v2528, 96
      %v2696 = vpop.permute.xlu0 %2695
      %2697 = vrot.lane.b32.xlu0 %v2529, 96
      %v2698 = vpop.permute.xlu0 %2697
      %2699 = vrot.lane.b32.xlu0 %v2530, 96
      %v2700 = vpop.permute.xlu0 %2699
      %2701 = vrot.lane.b32.xlu0 %v2531, 96
      %v2702 = vpop.permute.xlu0 %2701
      %v2707 = vsel %vm1148, %v2687, 0
      %v2710 = vsel %vm1148, %v2688, 0
      %v2713 = vsel %vm1148, %v2689, 0
      %v2716 = vsel %vm1148, %v2690, 0
      %v2719 = vsel %vm1161, %v2702, 0
      %2721 = vmatprep.subr.bf16.mxu0 0
      %2722 = vmatpush1.bf16.msra.mxu0 %v2696
      %2723 = vmatprep.subr.bf16.mxu0 0
      %2724 = vmatpush1.bf16.msra.mxu0 %v2698
      %2725 = vmatprep.subr.bf16.mxu0 0
      %2726 = vmatpush1.bf16.msra.mxu0 %v2700
      %2727 = vmatprep.subr.bf16.mxu0 0
      %2728 = vmatpush1.bf16.msra.mxu0 %v2719
      %2729 = vmatprep.subr.bf16.mxu0 0
      %2730 = vmatpush1.bf16.msra.mxu0 0
      %2731 = vmatprep.subr.bf16.mxu0 0
      %2732 = vmatpush1.bf16.msra.mxu0 0
      %2733 = vmatprep.subr.bf16.mxu0 0
      %2734 = vmatpush1.bf16.msra.mxu0 0
      %2735 = vmatprep.subr.bf16.mxu0 0
      %2736 = vmatpush1.bf16.msra.mxu0 0
      %2737 = vmatprep.subr.bf16.mxu0 0
      %2738 = vmatpush1.bf16.msra.mxu0 0
      %2739 = vmatprep.subr.bf16.mxu0 0
      %2740 = vmatpush1.bf16.msra.mxu0 0
      %2741 = vmatprep.subr.bf16.mxu0 0
      %2742 = vmatpush1.bf16.msra.mxu0 0
      %2743 = vmatprep.subr.bf16.mxu0 0
      %2744 = vmatpush1.bf16.msra.mxu0 0
      %2745 = vmatprep.subr.bf16.mxu0 0
      %2746 = vmatpush1.bf16.msra.mxu0 0
      %2747 = vmatprep.subr.bf16.mxu0 0
      %2748 = vmatpush1.bf16.msra.mxu0 0
      %2749 = vmatprep.subr.bf16.mxu0 0
      %2750 = vmatpush1.bf16.msra.mxu0 0
      %2751 = vmatprep.subr.bf16.mxu0 0
      %2752 = vmatpush1.bf16.msra.mxu0 0
      %2753 = vmatprep.mubr.bf16.mxu0 0
      %2754 = vmatmul.mubr.bf16.gmra.mrb[0].mxu0 %v2707
      %v2755 = vpop.f32.mrb[0].mxu0
      %v2756 = vadd.f32 %v2671, %v2755
      %v2757 = vpop.f32.mrb[0].mxu0
      %v2758 = vpop.f32.mrb[0].mxu0
      %v2759 = vadd.f32 %v2671, %v2758
      %v2760 = vpop.f32.mrb[0].mxu0
      %2761 = vmatprep.mubr.bf16.mxu0 0
      %2762 = vmatmul.mubr.bf16.gmra.mrb[0].mxu0 %v2710
      %v2763 = vpop.f32.mrb[0].mxu0
      %v2764 = vadd.f32 %v2671, %v2763
      %v2765 = vpop.f32.mrb[0].mxu0
      %v2766 = vpop.f32.mrb[0].mxu0
      %v2767 = vadd.f32 %v2671, %v2766
      %v2768 = vpop.f32.mrb[0].mxu0
      %2769 = vmatprep.mubr.bf16.mxu0 0
      %2770 = vmatmul.mubr.bf16.gmra.mrb[0].mxu0 %v2713
      %v2771 = vpop.f32.mrb[0].mxu0
      %v2772 = vadd.f32 %v2671, %v2771
      %v2773 = vpop.f32.mrb[0].mxu0
      %v2774 = vpop.f32.mrb[0].mxu0
      %v2775 = vadd.f32 %v2671, %v2774
      %v2776 = vpop.f32.mrb[0].mxu0
      %2777 = vmatprep.mubr.bf16.mxu0 0
      %2778 = vmatmul.mubr.bf16.gmra.mrb[0].mxu0 %v2716
      %v2779 = vpop.f32.mrb[0].mxu0
      %v2780 = vadd.f32 %v2671, %v2779
      %v2781 = vpop.f32.mrb[0].mxu0
      %v2782 = vpop.f32.mrb[0].mxu0
      %v2783 = vpop.f32.mrb[0].mxu0
      %2784 = vdwg.mxu0
      %v2785 = vmul.f32 %v2756, %v2411
      %v2786 = vmul.f32 %v2759, %v2412
      %v2787 = vmul.f32 %v2764, %v2413
      %v2788 = vmul.f32 %v2767, %v2414
      %v2789 = vmul.f32 %v2772, %v2415
      %v2790 = vmul.f32 %v2775, %v2416
      %v2791 = vmul.f32 %v2780, %v2417
      %v2792 = vadd.f32 %v2785, %v2418
      %v2793 = vadd.f32 %v2786, %v2419
      %v2794 = vadd.f32 %v2787, %v2420
      %v2795 = vadd.f32 %v2788, %v2421
      %v2796 = vadd.f32 %v2789, %v2422
      %v2797 = vadd.f32 %v2790, %v2423
      %v2798 = vadd.f32 %v2791, %v2424
      %v2799 = vtanh.pop %v2792
      %v2800 = vtanh.pop %v2793
      %v2801 = vtanh.pop %v2794
      %v2802 = vtanh.pop %v2795
      %v2803 = vtanh.pop %v2796
      %v2804 = vtanh.pop %v2797
      %v2805 = vtanh.pop %v2798
      %v2806 = vld [vmem:[%s43] sm:$0xf]
      %v2807 = vld [vmem:[%s43 + $0x4] sm:$0xf]
      %v2808 = vld [vmem:[%s43 + $0x8] sm:$0xf]
      %v2809 = vld [vmem:[%s43 + $0xc] sm:$0xf]
      %v2810 = vld [vmem:[%s43 + $0x10] sm:$0xf]
      %v2811 = vld [vmem:[%s43 + $0x14] sm:$0xf]
      %v2812 = vld [vmem:[%s43 + $0x18] sm:$0x7]
      %v2813 = vpack.c.bf16 %v2651, %v2650
      %v2814 = vpack.c.bf16 %v2653, %v2652
      %v2815 = vpack.c.bf16 %v2655, %v2654
      %v2816 = vpack.c.bf16 %v2656, %v2656
      %v2824 = vunpack.c.l.b16 %v2806
      %v2825 = vunpack.c.l.b16 %v2807
      %v2826 = vunpack.c.l.b16 %v2808
      %v2827 = vunpack.c.l.b16 %v2809
      %v2828 = vunpack.c.l.b16 %v2810
      %v2829 = vunpack.c.l.b16 %v2811
      %v2830 = vunpack.c.l.b16 %v2812
      %v2831 = vpack.c.b16 %v2825, %v2824
      %v2832 = vpack.c.b16 %v2827, %v2826
      %v2833 = vpack.c.b16 %v2829, %v2828
      %v2834 = vpack.c.b16 %v2830, %v2830
      %v2836 = vsel %vm1148, %v2831, 0
      %v2839 = vsel %vm1148, %v2832, 0
      %v2842 = vsel %vm1148, %v2833, 0
      %v2845 = vsel %vm1148, %v2834, 0
      %v2848 = vsel %vm1161, %v2816, 0
      %2850 = vmatprep.subr.bf16.mxu0 0
      %2851 = vmatpush1.bf16.msra.mxu0 %v2813
      %2852 = vmatprep.subr.bf16.mxu0 0
      %2853 = vmatpush1.bf16.msra.mxu0 %v2814
      %2854 = vmatprep.subr.bf16.mxu0 0
      %2855 = vmatpush1.bf16.msra.mxu0 %v2815
      %2856 = vmatprep.subr.bf16.mxu0 0
      %2857 = vmatpush1.bf16.msra.mxu0 %v2848
      %2858 = vmatprep.subr.bf16.mxu0 0
      %2859 = vmatpush1.bf16.msra.mxu0 0
      %2860 = vmatprep.subr.bf16.mxu0 0
      %2861 = vmatpush1.bf16.msra.mxu0 0
      %2862 = vmatprep.subr.bf16.mxu0 0
      %2863 = vmatpush1.bf16.msra.mxu0 0
      %2864 = vmatprep.subr.bf16.mxu0 0
      %2865 = vmatpush1.bf16.msra.mxu0 0
      %2866 = vmatprep.subr.bf16.mxu0 0
      %2867 = vmatpush1.bf16.msra.mxu0 0
      %2868 = vmatprep.subr.bf16.mxu0 0
      %2869 = vmatpush1.bf16.msra.mxu0 0
      %2870 = vmatprep.subr.bf16.mxu0 0
      %2871 = vmatpush1.bf16.msra.mxu0 0
      %2872 = vmatprep.subr.bf16.mxu0 0
      %2873 = vmatpush1.bf16.msra.mxu0 0
      %2874 = vmatprep.subr.bf16.mxu0 0
      %2875 = vmatpush1.bf16.msra.mxu0 0
      %2876 = vmatprep.subr.bf16.mxu0 0
      %2877 = vmatpush1.bf16.msra.mxu0 0
      %2878 = vmatprep.subr.bf16.mxu0 0
      %2879 = vmatpush1.bf16.msra.mxu0 0
      %2880 = vmatprep.subr.bf16.mxu0 0
      %2881 = vmatpush1.bf16.msra.mxu0 0
      %2882 = vmatprep.mubr.bf16.mxu0 0
      %2883 = vmatmul.mubr.bf16.gmra.mrb[0].mxu0 %v2836
      %v2884 = vpop.f32.mrb[0].mxu0
      %v2885 = vadd.f32 0.0, %v2884
      %v2886 = vpop.f32.mrb[0].mxu0
      %v2887 = vpop.f32.mrb[0].mxu0
      %v2888 = vadd.f32 0.0, %v2887
      %v2889 = vpop.f32.mrb[0].mxu0
      %2890 = vmatprep.mubr.bf16.mxu0 0
      %2891 = vmatmul.mubr.bf16.gmra.mrb[0].mxu0 %v2839
      %v2892 = vpop.f32.mrb[0].mxu0
      %v2893 = vadd.f32 0.0, %v2892
      %v2894 = vpop.f32.mrb[0].mxu0
      %v2895 = vpop.f32.mrb[0].mxu0
      %v2896 = vadd.f32 0.0, %v2895
      %v2897 = vpop.f32.mrb[0].mxu0
      %2898 = vmatprep.mubr.bf16.mxu0 0
      %2899 = vmatmul.mubr.bf16.gmra.mrb[0].mxu0 %v2842
      %v2900 = vpop.f32.mrb[0].mxu0
      %v2901 = vadd.f32 0.0, %v2900
      %v2902 = vpop.f32.mrb[0].mxu0
      %v2903 = vpop.f32.mrb[0].mxu0
      %v2904 = vadd.f32 0.0, %v2903
      %v2905 = vpop.f32.mrb[0].mxu0
      %2906 = vmatprep.mubr.bf16.mxu0 0
      %2907 = vmatmul.mubr.bf16.gmra.mrb[0].mxu0 %v2845
      %v2908 = vpop.f32.mrb[0].mxu0
      %v2909 = vadd.f32 0.0, %v2908
      %v2910 = vpop.f32.mrb[0].mxu0
      %v2911 = vpop.f32.mrb[0].mxu0
      %v2912 = vpop.f32.mrb[0].mxu0
      %2913 = vdwg.mxu0
      %v2914 = vmul.f32 %v2885, 0.8
      %v2915 = vmul.f32 %v2888, 0.8
      %v2916 = vmul.f32 %v2893, 0.8
      %v2917 = vmul.f32 %v2896, 0.8
      %v2918 = vmul.f32 %v2901, 0.8
      %v2919 = vmul.f32 %v2904, 0.8
      %v2920 = vmul.f32 %v2909, 0.8
      %v2921 = vmul.f32 %v2650, 0.2
      %v2922 = vmul.f32 %v2651, 0.2
      %v2923 = vmul.f32 %v2652, 0.2
      %v2924 = vmul.f32 %v2653, 0.2
      %v2925 = vmul.f32 %v2654, 0.2
      %v2926 = vmul.f32 %v2655, 0.2
      %v2927 = vmul.f32 %v2656, 0.2
      %v2928 = vadd.f32 %v2914, %v2921
      %v2929 = vadd.f32 %v2915, %v2922
      %v2930 = vadd.f32 %v2916, %v2923
      %v2931 = vadd.f32 %v2917, %v2924
      %v2932 = vadd.f32 %v2918, %v2925
      %v2933 = vadd.f32 %v2919, %v2926
      %v2934 = vadd.f32 %v2920, %v2927
      %v2935 = vpack.c.bf16 %v2929, %v2928
      %v2936 = vpack.c.bf16 %v2931, %v2930
      %v2937 = vpack.c.bf16 %v2933, %v2932
      %v2938 = vpack.c.bf16 %v2934, %v2934
      %v2939 = vld [vmem:[%s45] sm:$0xf]
      %v2940 = vld [vmem:[%s45 + $0x4] sm:$0xf]
      %v2941 = vld [vmem:[%s45 + $0x8] sm:$0xf]
      %v2942 = vld [vmem:[%s45 + $0xc] sm:$0xf]
      %v2943 = vld [vmem:[%s47] sm:$0x1]
      %v2945 = vlaneseq
      %v2946 = vshrl.u32 %v2945, 7
      %v2947 = vsub.s32 0, %v2946
      %v2948 = vrot.slane %v2943, %v2947
      %v2954 = vunpack.c.l.b16 %v2939
      %v2955 = vunpack.c.l.b16 %v2940
      %v2956 = vunpack.c.l.b16 %v2941
      %v2957 = vunpack.c.l.b16 %v2942
      %v2958 = vpack.c.b16 %v2955, %v2954
      %v2959 = vpack.c.b16 %v2957, %v2956
      %v2963 = vsel %vm1298, %v2935, 0
      %v2966 = vsel %vm1298, %v2936, 0
      %v2969 = vsel %vm1298, %v2937, 0
      %v2972 = vsel %vm1298, %v2938, 0
      %2974 = vmatprep.subr.bf16.mxu0 0
      %2975 = vmatpush1.bf16.msra.mxu0 %v2958
      %2976 = vmatprep.subr.bf16.mxu0 0
      %2977 = vmatpush1.bf16.msra.mxu0 %v2959
      %2978 = vmatprep.subr.bf16.mxu0 0
      %2979 = vmatpush1.bf16.msra.mxu0 0
      %2980 = vmatprep.subr.bf16.mxu0 0
      %2981 = vmatpush1.bf16.msra.mxu0 0
      %2982 = vmatprep.subr.bf16.mxu0 0
      %2983 = vmatpush1.bf16.msra.mxu0 0
      %2984 = vmatprep.subr.bf16.mxu0 0
      %2985 = vmatpush1.bf16.msra.mxu0 0
      %2986 = vmatprep.subr.bf16.mxu0 0
      %2987 = vmatpush1.bf16.msra.mxu0 0
      %2988 = vmatprep.subr.bf16.mxu0 0
      %2989 = vmatpush1.bf16.msra.mxu0 0
      %2990 = vmatprep.subr.bf16.mxu0 0
      %2991 = vmatpush1.bf16.msra.mxu0 0
      %2992 = vmatprep.subr.bf16.mxu0 0
      %2993 = vmatpush1.bf16.msra.mxu0 0
      %2994 = vmatprep.subr.bf16.mxu0 0
      %2995 = vmatpush1.bf16.msra.mxu0 0
      %2996 = vmatprep.subr.bf16.mxu0 0
      %2997 = vmatpush1.bf16.msra.mxu0 0
      %2998 = vmatprep.subr.bf16.mxu0 0
      %2999 = vmatpush1.bf16.msra.mxu0 0
      %3000 = vmatprep.subr.bf16.mxu0 0
      %3001 = vmatpush1.bf16.msra.mxu0 0
      %3002 = vmatprep.subr.bf16.mxu0 0
      %3003 = vmatpush1.bf16.msra.mxu0 0
      %3004 = vmatprep.subr.bf16.mxu0 0
      %3005 = vmatpush1.bf16.msra.mxu0 0
      %3006 = vmatprep.mubr.bf16.mxu0 0
      %3007 = vmatmul.mubr.bf16.gmra.mrb[0].mxu0 %v2963
      %v3008 = vpop.f32.mrb[0].mxu0
      %v3009 = vadd.f32 %v2948, %v3008
      %v3010 = vpop.f32.mrb[0].mxu0
      %v3011 = vpop.f32.mrb[0].mxu0
      %v3012 = vadd.f32 %v2948, %v3011
      %v3013 = vpop.f32.mrb[0].mxu0
      %3014 = vmatprep.mubr.bf16.mxu0 0
      %3015 = vmatmul.mubr.bf16.gmra.mrb[0].mxu0 %v2966
      %v3016 = vpop.f32.mrb[0].mxu0
      %v3017 = vadd.f32 %v2948, %v3016
      %v3018 = vpop.f32.mrb[0].mxu0
      %v3019 = vpop.f32.mrb[0].mxu0
      %v3020 = vadd.f32 %v2948, %v3019
      %v3021 = vpop.f32.mrb[0].mxu0
      %3022 = vmatprep.mubr.bf16.mxu0 0
      %3023 = vmatmul.mubr.bf16.gmra.mrb[0].mxu0 %v2969
      %v3024 = vpop.f32.mrb[0].mxu0
      %v3025 = vadd.f32 %v2948, %v3024
      %v3026 = vpop.f32.mrb[0].mxu0
      %v3027 = vpop.f32.mrb[0].mxu0
      %v3028 = vadd.f32 %v2948, %v3027
      %v3029 = vpop.f32.mrb[0].mxu0
      %3030 = vmatprep.mubr.bf16.mxu0 0
      %3031 = vmatmul.mubr.bf16.gmra.mrb[0].mxu0 %v2972
      %v3032 = vpop.f32.mrb[0].mxu0
      %v3033 = vadd.f32 %v2948, %v3032
      %v3034 = vpop.f32.mrb[0].mxu0
      %v3035 = vpop.f32.mrb[0].mxu0
      %v3036 = vpop.f32.mrb[0].mxu0
      %3037 = vdwg.mxu0
      %v3038 = vmul.f32 %v3009, %v2411
      %v3039 = vmul.f32 %v3012, %v2412
      %v3040 = vmul.f32 %v3017, %v2413
      %v3041 = vmul.f32 %v3020, %v2414
      %v3042 = vmul.f32 %v3025, %v2415
      %v3043 = vmul.f32 %v3028, %v2416
      %v3044 = vmul.f32 %v3033, %v2417
      %v3045 = vadd.f32 %v3038, %v2418
      %v3046 = vadd.f32 %v3039, %v2419
      %v3047 = vadd.f32 %v3040, %v2420
      %v3048 = vadd.f32 %v3041, %v2421
      %v3049 = vadd.f32 %v3042, %v2422
      %v3050 = vadd.f32 %v3043, %v2423
      %v3051 = vadd.f32 %v3044, %v2424
      %v3052 = vtanh.pop %v3045
      %v3053 = vtanh.pop %v3046
      %v3054 = vtanh.pop %v3047
      %v3055 = vtanh.pop %v3048
      %v3056 = vtanh.pop %v3049
      %v3057 = vtanh.pop %v3050
      %v3058 = vtanh.pop %v3051
      %s3059 = scalar_lea.vmem %s43, 28
      %v3060 = vld [vmem:[%s3059] sm:$0xf]
      %v3061 = vld [vmem:[%s3059 + $0x4] sm:$0xf]
      %v3062 = vld [vmem:[%s3059 + $0x8] sm:$0xf]
      %v3063 = vld [vmem:[%s3059 + $0xc] sm:$0xf]
      %v3064 = vld [vmem:[%s3059 + $0x10] sm:$0xf]
      %v3065 = vld [vmem:[%s3059 + $0x14] sm:$0xf]
      %v3066 = vld [vmem:[%s3059 + $0x18] sm:$0x7]
      %v3067 = vpack.c.bf16 %v2800, %v2799
      %v3068 = vpack.c.bf16 %v2802, %v2801
      %v3069 = vpack.c.bf16 %v2804, %v2803
      %v3070 = vpack.c.bf16 %v2805, %v2805
      %v3078 = vunpack.c.l.b16 %v3060
      %v3079 = vunpack.c.l.b16 %v3061
      %v3080 = vunpack.c.l.b16 %v3062
      %v3081 = vunpack.c.l.b16 %v3063
      %v3082 = vunpack.c.l.b16 %v3064
      %v3083 = vunpack.c.l.b16 %v3065
      %v3084 = vunpack.c.l.b16 %v3066
      %v3085 = vpack.c.b16 %v3079, %v3078
      %v3086 = vpack.c.b16 %v3081, %v3080
      %v3087 = vpack.c.b16 %v3083, %v3082
      %v3088 = vpack.c.b16 %v3084, %v3084
      %v3090 = vsel %vm1148, %v3085, 0
      %v3093 = vsel %vm1148, %v3086, 0
      %v3096 = vsel %vm1148, %v3087, 0
      %v3099 = vsel %vm1148, %v3088, 0
      %v3102 = vsel %vm1161, %v3070, 0
      %3104 = vmatprep.subr.bf16.mxu0 0
      %3105 = vmatpush1.bf16.msra.mxu0 %v3067
      %3106 = vmatprep.subr.bf16.mxu0 0
      %3107 = vmatpush1.bf16.msra.mxu0 %v3068
      %3108 = vmatprep.subr.bf16.mxu0 0
      %3109 = vmatpush1.bf16.msra.mxu0 %v3069
      %3110 = vmatprep.subr.bf16.mxu0 0
      %3111 = vmatpush1.bf16.msra.mxu0 %v3102
      %3112 = vmatprep.subr.bf16.mxu0 0
      %3113 = vmatpush1.bf16.msra.mxu0 0
      %3114 = vmatprep.subr.bf16.mxu0 0
      %3115 = vmatpush1.bf16.msra.mxu0 0
      %3116 = vmatprep.subr.bf16.mxu0 0
      %3117 = vmatpush1.bf16.msra.mxu0 0
      %3118 = vmatprep.subr.bf16.mxu0 0
      %3119 = vmatpush1.bf16.msra.mxu0 0
      %3120 = vmatprep.subr.bf16.mxu0 0
      %3121 = vmatpush1.bf16.msra.mxu0 0
      %3122 = vmatprep.subr.bf16.mxu0 0
      %3123 = vmatpush1.bf16.msra.mxu0 0
      %3124 = vmatprep.subr.bf16.mxu0 0
      %3125 = vmatpush1.bf16.msra.mxu0 0
      %3126 = vmatprep.subr.bf16.mxu0 0
      %3127 = vmatpush1.bf16.msra.mxu0 0
      %3128 = vmatprep.subr.bf16.mxu0 0
      %3129 = vmatpush1.bf16.msra.mxu0 0
      %3130 = vmatprep.subr.bf16.mxu0 0
      %3131 = vmatpush1.bf16.msra.mxu0 0
      %3132 = vmatprep.subr.bf16.mxu0 0
      %3133 = vmatpush1.bf16.msra.mxu0 0
      %3134 = vmatprep.subr.bf16.mxu0 0
      %3135 = vmatpush1.bf16.msra.mxu0 0
      %3136 = vmatprep.mubr.bf16.mxu0 0
      %3137 = vmatmul.mubr.bf16.gmra.mrb[0].mxu0 %v3090
      %v3138 = vpop.f32.mrb[0].mxu0
      %v3139 = vadd.f32 0.0, %v3138
      %v3140 = vpop.f32.mrb[0].mxu0
      %v3141 = vpop.f32.mrb[0].mxu0
      %v3142 = vadd.f32 0.0, %v3141
      %v3143 = vpop.f32.mrb[0].mxu0
      %3144 = vmatprep.mubr.bf16.mxu0 0
      %3145 = vmatmul.mubr.bf16.gmra.mrb[0].mxu0 %v3093
      %v3146 = vpop.f32.mrb[0].mxu0
      %v3147 = vadd.f32 0.0, %v3146
      %v3148 = vpop.f32.mrb[0].mxu0
      %v3149 = vpop.f32.mrb[0].mxu0
      %v3150 = vadd.f32 0.0, %v3149
      %v3151 = vpop.f32.mrb[0].mxu0
      %3152 = vmatprep.mubr.bf16.mxu0 0
      %3153 = vmatmul.mubr.bf16.gmra.mrb[0].mxu0 %v3096
      %v3154 = vpop.f32.mrb[0].mxu0
      %v3155 = vadd.f32 0.0, %v3154
      %v3156 = vpop.f32.mrb[0].mxu0
      %v3157 = vpop.f32.mrb[0].mxu0
      %v3158 = vadd.f32 0.0, %v3157
      %v3159 = vpop.f32.mrb[0].mxu0
      %3160 = vmatprep.mubr.bf16.mxu0 0
      %3161 = vmatmul.mubr.bf16.gmra.mrb[0].mxu0 %v3099
      %v3162 = vpop.f32.mrb[0].mxu0
      %v3163 = vadd.f32 0.0, %v3162
      %v3164 = vpop.f32.mrb[0].mxu0
      %v3165 = vpop.f32.mrb[0].mxu0
      %v3166 = vpop.f32.mrb[0].mxu0
      %3167 = vdwg.mxu0
      %v3168 = vmul.f32 %v3139, 0.8
      %v3169 = vmul.f32 %v3142, 0.8
      %v3170 = vmul.f32 %v3147, 0.8
      %v3171 = vmul.f32 %v3150, 0.8
      %v3172 = vmul.f32 %v3155, 0.8
      %v3173 = vmul.f32 %v3158, 0.8
      %v3174 = vmul.f32 %v3163, 0.8
      %v3175 = vmul.f32 %v2799, 0.2
      %v3176 = vmul.f32 %v2800, 0.2
      %v3177 = vmul.f32 %v2801, 0.2
      %v3178 = vmul.f32 %v2802, 0.2
      %v3179 = vmul.f32 %v2803, 0.2
      %v3180 = vmul.f32 %v2804, 0.2
      %v3181 = vmul.f32 %v2805, 0.2
      %v3182 = vadd.f32 %v3168, %v3175
      %v3183 = vadd.f32 %v3169, %v3176
      %v3184 = vadd.f32 %v3170, %v3177
      %v3185 = vadd.f32 %v3171, %v3178
      %v3186 = vadd.f32 %v3172, %v3179
      %v3187 = vadd.f32 %v3173, %v3180
      %v3188 = vadd.f32 %v3174, %v3181
      %v3189 = vpack.c.bf16 %v3183, %v3182
      %v3190 = vpack.c.bf16 %v3185, %v3184
      %v3191 = vpack.c.bf16 %v3187, %v3186
      %v3192 = vpack.c.bf16 %v3188, %v3188
      %s3193 = scalar_lea.vmem %s45, 16
      %v3194 = vld [vmem:[%s3193] sm:$0xf]
      %v3195 = vld [vmem:[%s3193 + $0x4] sm:$0xf]
      %v3196 = vld [vmem:[%s3193 + $0x8] sm:$0xf]
      %v3197 = vld [vmem:[%s3193 + $0xc] sm:$0xf]
      %s3198 = scalar_lea.vmem %s47, 1
      %v3199 = vld [vmem:[%s3198] sm:$0x1]
      %v3201 = vlaneseq
      %v3202 = vshrl.u32 %v3201, 7
      %v3203 = vsub.s32 0, %v3202
      %v3204 = vrot.slane %v3199, %v3203
      %v3210 = vunpack.c.l.b16 %v3194
      %v3211 = vunpack.c.l.b16 %v3195
      %v3212 = vunpack.c.l.b16 %v3196
      %v3213 = vunpack.c.l.b16 %v3197
      %v3214 = vpack.c.b16 %v3211, %v3210
      %v3215 = vpack.c.b16 %v3213, %v3212
      %v3219 = vsel %vm1298, %v3189, 0
      %v3222 = vsel %vm1298, %v3190, 0
      %v3225 = vsel %vm1298, %v3191, 0
      %v3228 = vsel %vm1298, %v3192, 0
      %3230 = vmatprep.subr.bf16.mxu0 0
      %3231 = vmatpush1.bf16.msra.mxu0 %v3214
      %3232 = vmatprep.subr.bf16.mxu0 0
      %3233 = vmatpush1.bf16.msra.mxu0 %v3215
      %3234 = vmatprep.subr.bf16.mxu0 0
      %3235 = vmatpush1.bf16.msra.mxu0 0
      %3236 = vmatprep.subr.bf16.mxu0 0
      %3237 = vmatpush1.bf16.msra.mxu0 0
      %3238 = vmatprep.subr.bf16.mxu0 0
      %3239 = vmatpush1.bf16.msra.mxu0 0
      %3240 = vmatprep.subr.bf16.mxu0 0
      %3241 = vmatpush1.bf16.msra.mxu0 0
      %3242 = vmatprep.subr.bf16.mxu0 0
      %3243 = vmatpush1.bf16.msra.mxu0 0
      %3244 = vmatprep.subr.bf16.mxu0 0
      %3245 = vmatpush1.bf16.msra.mxu0 0
      %3246 = vmatprep.subr.bf16.mxu0 0
      %3247 = vmatpush1.bf16.msra.mxu0 0
      %3248 = vmatprep.subr.bf16.mxu0 0
      %3249 = vmatpush1.bf16.msra.mxu0 0
      %3250 = vmatprep.subr.bf16.mxu0 0
      %3251 = vmatpush1.bf16.msra.mxu0 0
      %3252 = vmatprep.subr.bf16.mxu0 0
      %3253 = vmatpush1.bf16.msra.mxu0 0
      %3254 = vmatprep.subr.bf16.mxu0 0
      %3255 = vmatpush1.bf16.msra.mxu0 0
      %3256 = vmatprep.subr.bf16.mxu0 0
      %3257 = vmatpush1.bf16.msra.mxu0 0
      %3258 = vmatprep.subr.bf16.mxu0 0
      %3259 = vmatpush1.bf16.msra.mxu0 0
      %3260 = vmatprep.subr.bf16.mxu0 0
      %3261 = vmatpush1.bf16.msra.mxu0 0
      %3262 = vmatprep.mubr.bf16.mxu0 0
      %3263 = vmatmul.mubr.bf16.gmra.mrb[0].mxu0 %v3219
      %v3264 = vpop.f32.mrb[0].mxu0
      %v3265 = vadd.f32 %v3204, %v3264
      %v3266 = vpop.f32.mrb[0].mxu0
      %v3267 = vpop.f32.mrb[0].mxu0
      %v3268 = vadd.f32 %v3204, %v3267
      %v3269 = vpop.f32.mrb[0].mxu0
      %3270 = vmatprep.mubr.bf16.mxu0 0
      %3271 = vmatmul.mubr.bf16.gmra.mrb[0].mxu0 %v3222
      %v3272 = vpop.f32.mrb[0].mxu0
      %v3273 = vadd.f32 %v3204, %v3272
      %v3274 = vpop.f32.mrb[0].mxu0
      %v3275 = vpop.f32.mrb[0].mxu0
      %v3276 = vadd.f32 %v3204, %v3275
      %v3277 = vpop.f32.mrb[0].mxu0
      %3278 = vmatprep.mubr.bf16.mxu0 0
      %3279 = vmatmul.mubr.bf16.gmra.mrb[0].mxu0 %v3225
      %v3280 = vpop.f32.mrb[0].mxu0
      %v3281 = vadd.f32 %v3204, %v3280
      %v3282 = vpop.f32.mrb[0].mxu0
      %v3283 = vpop.f32.mrb[0].mxu0
      %v3284 = vadd.f32 %v3204, %v3283
      %v3285 = vpop.f32.mrb[0].mxu0
      %3286 = vmatprep.mubr.bf16.mxu0 0
      %3287 = vmatmul.mubr.bf16.gmra.mrb[0].mxu0 %v3228
      %v3288 = vpop.f32.mrb[0].mxu0
      %v3289 = vadd.f32 %v3204, %v3288
      %v3290 = vpop.f32.mrb[0].mxu0
      %v3291 = vpop.f32.mrb[0].mxu0
      %v3292 = vpop.f32.mrb[0].mxu0
      %3293 = vdwg.mxu0
      %v3294 = vmul.f32 %v3265, %v2411
      %v3295 = vmul.f32 %v3268, %v2412
      %v3296 = vmul.f32 %v3273, %v2413
      %v3297 = vmul.f32 %v3276, %v2414
      %v3298 = vmul.f32 %v3281, %v2415
      %v3299 = vmul.f32 %v3284, %v2416
      %v3300 = vmul.f32 %v3289, %v2417
      %v3301 = vadd.f32 %v3294, %v2418
      %v3302 = vadd.f32 %v3295, %v2419
      %v3303 = vadd.f32 %v3296, %v2420
      %v3304 = vadd.f32 %v3297, %v2421
      %v3305 = vadd.f32 %v3298, %v2422
      %v3306 = vadd.f32 %v3299, %v2423
      %v3307 = vadd.f32 %v3300, %v2424
      %v3308 = vtanh.pop %v3301
      %v3309 = vtanh.pop %v3302
      %v3310 = vtanh.pop %v3303
      %v3311 = vtanh.pop %v3304
      %v3312 = vtanh.pop %v3305
      %v3313 = vtanh.pop %v3306
      %v3314 = vtanh.pop %v3307
      %v3315 = vpack.c.bf16 %v3053, %v3052
      %v3316 = vpack.c.bf16 %v3055, %v3054
      %v3317 = vpack.c.bf16 %v3057, %v3056
      %v3318 = vpack.c.bf16 %v3058, %v3058
      %v3319 = vld [vmem:[%s53] sm:$0xf]
      %v3320 = vld [vmem:[%s53 + $0x4] sm:$0xf]
      %v3321 = vld [vmem:[%s53 + $0x8] sm:$0xf]
      %v3322 = vld [vmem:[%s53 + $0xc] sm:$0xf]
      %v3323 = vpack.c.bf16 %v3309, %v3308
      %v3324 = vpack.c.bf16 %v3311, %v3310
      %v3325 = vpack.c.bf16 %v3313, %v3312
      %v3326 = vpack.c.bf16 %v3314, %v3314
      %s3327 = scalar_lea.vmem %s53, 16
      %v3328 = vld [vmem:[%s3327] sm:$0xf]
      %v3329 = vld [vmem:[%s3327 + $0x4] sm:$0xf]
      %v3330 = vld [vmem:[%s3327 + $0x8] sm:$0xf]
      %v3331 = vld [vmem:[%s3327 + $0xc] sm:$0xf]
      %v3336 = vunpack.c.l.b16 %v3328
      %v3337 = vunpack.c.l.b16 %v3329
      %v3338 = vunpack.c.l.b16 %v3330
      %v3339 = vunpack.c.l.b16 %v3331
      %v3340 = vpack.c.b16 %v3337, %v3336
      %v3341 = vpack.c.b16 %v3339, %v3338
      %v3345 = vsel %vm1298, %v3323, 0
      %v3348 = vsel %vm1298, %v3324, 0
      %v3351 = vsel %vm1298, %v3325, 0
      %v3354 = vsel %vm1298, %v3326, 0
      %3356 = vmatprep.subr.bf16.mxu0 0
      %3357 = vmatpush1.bf16.msra.mxu0 %v3340
      %3358 = vmatprep.subr.bf16.mxu0 0
      %3359 = vmatpush1.bf16.msra.mxu0 %v3341
      %3360 = vmatprep.subr.bf16.mxu0 0
      %3361 = vmatpush1.bf16.msra.mxu0 0
      %3362 = vmatprep.subr.bf16.mxu0 0
      %3363 = vmatpush1.bf16.msra.mxu0 0
      %3364 = vmatprep.subr.bf16.mxu0 0
      %3365 = vmatpush1.bf16.msra.mxu0 0
      %3366 = vmatprep.subr.bf16.mxu0 0
      %3367 = vmatpush1.bf16.msra.mxu0 0
      %3368 = vmatprep.subr.bf16.mxu0 0
      %3369 = vmatpush1.bf16.msra.mxu0 0
      %3370 = vmatprep.subr.bf16.mxu0 0
      %3371 = vmatpush1.bf16.msra.mxu0 0
      %3372 = vmatprep.subr.bf16.mxu0 0
      %3373 = vmatpush1.bf16.msra.mxu0 0
      %3374 = vmatprep.subr.bf16.mxu0 0
      %3375 = vmatpush1.bf16.msra.mxu0 0
      %3376 = vmatprep.subr.bf16.mxu0 0
      %3377 = vmatpush1.bf16.msra.mxu0 0
      %3378 = vmatprep.subr.bf16.mxu0 0
      %3379 = vmatpush1.bf16.msra.mxu0 0
      %3380 = vmatprep.subr.bf16.mxu0 0
      %3381 = vmatpush1.bf16.msra.mxu0 0
      %3382 = vmatprep.subr.bf16.mxu0 0
      %3383 = vmatpush1.bf16.msra.mxu0 0
      %3384 = vmatprep.subr.bf16.mxu0 0
      %3385 = vmatpush1.bf16.msra.mxu0 0
      %3386 = vmatprep.subr.bf16.mxu0 0
      %3387 = vmatpush1.bf16.msra.mxu0 0
      %3388 = vmatprep.mubr.bf16.mxu0 0
      %3389 = vmatmul.mubr.bf16.gmra.mrb[0].mxu0 %v3345
      %v3390 = vpop.f32.mrb[0].mxu0
      %v3391 = vadd.f32 0.0, %v3390
      %v3392 = vpop.f32.mrb[0].mxu0
      %v3393 = vpop.f32.mrb[0].mxu0
      %v3394 = vadd.f32 0.0, %v3393
      %v3395 = vpop.f32.mrb[0].mxu0
      %3396 = vmatprep.mubr.bf16.mxu0 0
      %3397 = vmatmul.mubr.bf16.gmra.mrb[0].mxu0 %v3348
      %v3398 = vpop.f32.mrb[0].mxu0
      %v3399 = vadd.f32 0.0, %v3398
      %v3400 = vpop.f32.mrb[0].mxu0
      %v3401 = vpop.f32.mrb[0].mxu0
      %v3402 = vadd.f32 0.0, %v3401
      %v3403 = vpop.f32.mrb[0].mxu0
      %3404 = vmatprep.mubr.bf16.mxu0 0
      %3405 = vmatmul.mubr.bf16.gmra.mrb[0].mxu0 %v3351
      %v3406 = vpop.f32.mrb[0].mxu0
      %v3407 = vadd.f32 0.0, %v3406
      %v3408 = vpop.f32.mrb[0].mxu0
      %v3409 = vpop.f32.mrb[0].mxu0
      %v3410 = vadd.f32 0.0, %v3409
      %v3411 = vpop.f32.mrb[0].mxu0
      %3412 = vmatprep.mubr.bf16.mxu0 0
      %3413 = vmatmul.mubr.bf16.gmra.mrb[0].mxu0 %v3354
      %v3414 = vpop.f32.mrb[0].mxu0
      %v3415 = vadd.f32 0.0, %v3414
      %v3416 = vpop.f32.mrb[0].mxu0
      %v3417 = vpop.f32.mrb[0].mxu0
      %v3418 = vpop.f32.mrb[0].mxu0
      %3419 = vdwg.mxu0
      %v3424 = vunpack.c.l.b16 %v3319
      %v3425 = vunpack.c.l.b16 %v3320
      %v3426 = vunpack.c.l.b16 %v3321
      %v3427 = vunpack.c.l.b16 %v3322
      %v3428 = vpack.c.b16 %v3425, %v3424
      %v3429 = vpack.c.b16 %v3427, %v3426
      %v3433 = vsel %vm1298, %v3315, 0
      %v3436 = vsel %vm1298, %v3316, 0
      %v3439 = vsel %vm1298, %v3317, 0
      %v3442 = vsel %vm1298, %v3318, 0
      %3444 = vmatprep.subr.bf16.mxu0 0
      %3445 = vmatpush1.bf16.msra.mxu0 %v3428
      %3446 = vmatprep.subr.bf16.mxu0 0
      %3447 = vmatpush1.bf16.msra.mxu0 %v3429
      %3448 = vmatprep.subr.bf16.mxu0 0
      %3449 = vmatpush1.bf16.msra.mxu0 0
      %3450 = vmatprep.subr.bf16.mxu0 0
      %3451 = vmatpush1.bf16.msra.mxu0 0
      %3452 = vmatprep.subr.bf16.mxu0 0
      %3453 = vmatpush1.bf16.msra.mxu0 0
      %3454 = vmatprep.subr.bf16.mxu0 0
      %3455 = vmatpush1.bf16.msra.mxu0 0
      %3456 = vmatprep.subr.bf16.mxu0 0
      %3457 = vmatpush1.bf16.msra.mxu0 0
      %3458 = vmatprep.subr.bf16.mxu0 0
      %3459 = vmatpush1.bf16.msra.mxu0 0
      %3460 = vmatprep.subr.bf16.mxu0 0
      %3461 = vmatpush1.bf16.msra.mxu0 0
      %3462 = vmatprep.subr.bf16.mxu0 0
      %3463 = vmatpush1.bf16.msra.mxu0 0
      %3464 = vmatprep.subr.bf16.mxu0 0
      %3465 = vmatpush1.bf16.msra.mxu0 0
      %3466 = vmatprep.subr.bf16.mxu0 0
      %3467 = vmatpush1.bf16.msra.mxu0 0
      %3468 = vmatprep.subr.bf16.mxu0 0
      %3469 = vmatpush1.bf16.msra.mxu0 0
      %3470 = vmatprep.subr.bf16.mxu0 0
      %3471 = vmatpush1.bf16.msra.mxu0 0
      %3472 = vmatprep.subr.bf16.mxu0 0
      %3473 = vmatpush1.bf16.msra.mxu0 0
      %3474 = vmatprep.subr.bf16.mxu0 0
      %3475 = vmatpush1.bf16.msra.mxu0 0
      %3476 = vmatprep.mubr.bf16.mxu0 0
      %3477 = vmatmul.mubr.bf16.gmra.mrb[0].mxu0 %v3433
      %v3478 = vpop.f32.mrb[0].mxu0
      %v3479 = vadd.f32 %v3391, %v3478
      %v3480 = vpop.f32.mrb[0].mxu0
      %v3481 = vpop.f32.mrb[0].mxu0
      %v3482 = vadd.f32 %v3394, %v3481
      %v3483 = vpop.f32.mrb[0].mxu0
      %3484 = vmatprep.mubr.bf16.mxu0 0
      %3485 = vmatmul.mubr.bf16.gmra.mrb[0].mxu0 %v3436
      %v3486 = vpop.f32.mrb[0].mxu0
      %v3487 = vadd.f32 %v3399, %v3486
      %v3488 = vpop.f32.mrb[0].mxu0
      %v3489 = vpop.f32.mrb[0].mxu0
      %v3490 = vadd.f32 %v3402, %v3489
      %v3491 = vpop.f32.mrb[0].mxu0
      %3492 = vmatprep.mubr.bf16.mxu0 0
      %3493 = vmatmul.mubr.bf16.gmra.mrb[0].mxu0 %v3439
      %v3494 = vpop.f32.mrb[0].mxu0
      %v3495 = vadd.f32 %v3407, %v3494
      %v3496 = vpop.f32.mrb[0].mxu0
      %v3497 = vpop.f32.mrb[0].mxu0
      %v3498 = vadd.f32 %v3410, %v3497
      %v3499 = vpop.f32.mrb[0].mxu0
      %3500 = vmatprep.mubr.bf16.mxu0 0
      %3501 = vmatmul.mubr.bf16.gmra.mrb[0].mxu0 %v3442
      %v3502 = vpop.f32.mrb[0].mxu0
      %v3503 = vadd.f32 %v3415, %v3502
      %v3504 = vpop.f32.mrb[0].mxu0
      %v3505 = vpop.f32.mrb[0].mxu0
      %v3506 = vpop.f32.mrb[0].mxu0
      %3507 = vdwg.mxu0
      %v3508 = vld [vmem:[%s55] sm:$0x1]
      %v3510 = vlaneseq
      %v3511 = vshrl.u32 %v3510, 7
      %v3512 = vsub.s32 0, %v3511
      %v3513 = vrot.slane %v3508, %v3512
      %v3515 = vadd.f32 %v3479, %v3513
      %v3516 = vadd.f32 %v3482, %v3513
      %v3517 = vadd.f32 %v3487, %v3513
      %v3518 = vadd.f32 %v3490, %v3513
      %v3519 = vadd.f32 %v3495, %v3513
      %v3520 = vadd.f32 %v3498, %v3513
      %v3521 = vadd.f32 %v3503, %v3513
      %v3522 = vld [vmem:[%s57] sm:$0xff]
      %v3523 = vld [vmem:[%s57 + $0x8] sm:$0xff]
      %v3524 = vld [vmem:[%s57 + $0x10] sm:$0xff]
      %v3525 = vld [vmem:[%s57 + $0x18] sm:$0xff]
      %v3526 = vld [vmem:[%s57 + $0x20] sm:$0xff]
      %v3527 = vld [vmem:[%s57 + $0x28] sm:$0xff]
      %v3528 = vld [vmem:[%s57 + $0x30] sm:$0x3f]
      %v3529 = vmul.f32 %v3515, %v3522
      %v3530 = vmul.f32 %v3516, %v3523
      %v3531 = vmul.f32 %v3517, %v3524
      %v3532 = vmul.f32 %v3518, %v3525
      %v3533 = vmul.f32 %v3519, %v3526
      %v3534 = vmul.f32 %v3520, %v3527
      %v3535 = vmul.f32 %v3521, %v3528
      %v3536 = vld [vmem:[%s59] sm:$0xff]
      %v3537 = vld [vmem:[%s59 + $0x8] sm:$0xff]
      %v3538 = vld [vmem:[%s59 + $0x10] sm:$0xff]
      %v3539 = vld [vmem:[%s59 + $0x18] sm:$0xff]
      %v3540 = vld [vmem:[%s59 + $0x20] sm:$0xff]
      %v3541 = vld [vmem:[%s59 + $0x28] sm:$0xff]
      %v3542 = vld [vmem:[%s59 + $0x30] sm:$0x3f]
      %v3543 = vadd.f32 %v3529, %v3536
      %v3544 = vadd.f32 %v3530, %v3537
      %v3545 = vadd.f32 %v3531, %v3538
      %v3546 = vadd.f32 %v3532, %v3539
      %v3547 = vadd.f32 %v3533, %v3540
      %v3548 = vadd.f32 %v3534, %v3541
      %v3549 = vadd.f32 %v3535, %v3542
      %v3550 = vadd.f32 %v3543, %v2404
      %v3551 = vadd.f32 %v3544, %v2405
      %v3552 = vadd.f32 %v3545, %v2406
      %v3553 = vadd.f32 %v3546, %v2407
      %v3554 = vadd.f32 %v3547, %v2408
      %v3555 = vadd.f32 %v3548, %v2409
      %v3556 = vadd.f32 %v3549, %v2410
      %v3557 = vpack.c.bf16 %v3551, %v3550
      %v3558 = vpack.c.bf16 %v3553, %v3552
      %v3559 = vpack.c.bf16 %v3555, %v3554
      %v3560 = vpack.c.bf16 %v3556, %v3556
      %v3561 = vld [vmem:[%s63] sm:$0xf]
      %v3562 = vld [vmem:[%s63 + $0x4] sm:$0xf]
      %v3563 = vld [vmem:[%s63 + $0x8] sm:$0xf]
      %v3564 = vld [vmem:[%s63 + $0xc] sm:$0xf]
      %v3569 = vunpack.c.l.b16 %v3561
      %v3570 = vunpack.c.l.b16 %v3562
      %v3571 = vunpack.c.l.b16 %v3563
      %v3572 = vunpack.c.l.b16 %v3564
      %v3573 = vpack.c.b16 %v3570, %v3569
      %v3574 = vpack.c.b16 %v3572, %v3571
      %v3578 = vsel %vm1298, %v3557, 0
      %v3581 = vsel %vm1298, %v3558, 0
      %v3584 = vsel %vm1298, %v3559, 0
      %v3587 = vsel %vm1298, %v3560, 0
      %3589 = vmatprep.subr.bf16.mxu0 0
      %3590 = vmatpush1.bf16.msra.mxu0 %v3573
      %3591 = vmatprep.subr.bf16.mxu0 0
      %3592 = vmatpush1.bf16.msra.mxu0 %v3574
      %3593 = vmatprep.subr.bf16.mxu0 0
      %3594 = vmatpush1.bf16.msra.mxu0 0
      %3595 = vmatprep.subr.bf16.mxu0 0
      %3596 = vmatpush1.bf16.msra.mxu0 0
      %3597 = vmatprep.subr.bf16.mxu0 0
      %3598 = vmatpush1.bf16.msra.mxu0 0
      %3599 = vmatprep.subr.bf16.mxu0 0
      %3600 = vmatpush1.bf16.msra.mxu0 0
      %3601 = vmatprep.subr.bf16.mxu0 0
      %3602 = vmatpush1.bf16.msra.mxu0 0
      %3603 = vmatprep.subr.bf16.mxu0 0
      %3604 = vmatpush1.bf16.msra.mxu0 0
      %3605 = vmatprep.subr.bf16.mxu0 0
      %3606 = vmatpush1.bf16.msra.mxu0 0
      %3607 = vmatprep.subr.bf16.mxu0 0
      %3608 = vmatpush1.bf16.msra.mxu0 0
      %3609 = vmatprep.subr.bf16.mxu0 0
      %3610 = vmatpush1.bf16.msra.mxu0 0
      %3611 = vmatprep.subr.bf16.mxu0 0
      %3612 = vmatpush1.bf16.msra.mxu0 0
      %3613 = vmatprep.subr.bf16.mxu0 0
      %3614 = vmatpush1.bf16.msra.mxu0 0
      %3615 = vmatprep.subr.bf16.mxu0 0
      %3616 = vmatpush1.bf16.msra.mxu0 0
      %3617 = vmatprep.subr.bf16.mxu0 0
      %3618 = vmatpush1.bf16.msra.mxu0 0
      %3619 = vmatprep.subr.bf16.mxu0 0
      %3620 = vmatpush1.bf16.msra.mxu0 0
      %3621 = vmatprep.mubr.bf16.mxu0 0
      %3622 = vmatmul.mubr.bf16.gmra.mrb[0].mxu0 %v3578
      %v3623 = vpop.f32.mrb[0].mxu0
      %v3624 = vadd.f32 0.0, %v3623
      %v3625 = vpop.f32.mrb[0].mxu0
      %v3626 = vpop.f32.mrb[0].mxu0
      %v3627 = vadd.f32 0.0, %v3626
      %v3628 = vpop.f32.mrb[0].mxu0
      %3629 = vmatprep.mubr.bf16.mxu0 0
      %3630 = vmatmul.mubr.bf16.gmra.mrb[0].mxu0 %v3581
      %v3631 = vpop.f32.mrb[0].mxu0
      %v3632 = vadd.f32 0.0, %v3631
      %v3633 = vpop.f32.mrb[0].mxu0
      %v3634 = vpop.f32.mrb[0].mxu0
      %v3635 = vadd.f32 0.0, %v3634
      %v3636 = vpop.f32.mrb[0].mxu0
      %3637 = vmatprep.mubr.bf16.mxu0 0
      %3638 = vmatmul.mubr.bf16.gmra.mrb[0].mxu0 %v3584
      %v3639 = vpop.f32.mrb[0].mxu0
      %v3640 = vadd.f32 0.0, %v3639
      %v3641 = vpop.f32.mrb[0].mxu0
      %v3642 = vpop.f32.mrb[0].mxu0
      %v3643 = vadd.f32 0.0, %v3642
      %v3644 = vpop.f32.mrb[0].mxu0
      %3645 = vmatprep.mubr.bf16.mxu0 0
      %3646 = vmatmul.mubr.bf16.gmra.mrb[0].mxu0 %v3587
      %v3647 = vpop.f32.mrb[0].mxu0
      %v3648 = vadd.f32 0.0, %v3647
      %v3649 = vpop.f32.mrb[0].mxu0
      %v3650 = vpop.f32.mrb[0].mxu0
      %v3651 = vpop.f32.mrb[0].mxu0
      %3652 = vdwg.mxu0
      %v3653 = vld [vmem:[%s61] sm:$0xf]
      %v3654 = vld [vmem:[%s61 + $0x4] sm:$0xf]
      %v3655 = vld [vmem:[%s61 + $0x8] sm:$0xf]
      %v3656 = vld [vmem:[%s61 + $0xc] sm:$0xf]
      %v3657 = vld [vmem:[%s61 + $0x10] sm:$0xf]
      %v3658 = vld [vmem:[%s61 + $0x14] sm:$0xf]
      %v3659 = vld [vmem:[%s61 + $0x18] sm:$0x7]
      %v3660 = vpack.c.bf16 %v3627, %v3624
      %v3661 = vpack.c.bf16 %v3635, %v3632
      %v3662 = vpack.c.bf16 %v3643, %v3640
      %v3663 = vpack.c.bf16 %v3648, %v3648
      %v3664 = vld [vmem:[%s65] sm:$0x1]
      %v3666 = vlaneseq
      %v3667 = vshrl.u32 %v3666, 7
      %v3668 = vsub.s32 0, %v3667
      %v3669 = vrot.slane %v3664, %v3668
      %v3678 = vunpack.c.l.b16 %v3653
      %v3679 = vunpack.c.l.b16 %v3654
      %v3680 = vunpack.c.l.b16 %v3655
      %v3681 = vunpack.c.l.b16 %v3656
      %v3682 = vunpack.c.l.b16 %v3657
      %v3683 = vunpack.c.l.b16 %v3658
      %v3684 = vunpack.c.l.b16 %v3659
      %v3685 = vpack.c.b16 %v3679, %v3678
      %v3686 = vpack.c.b16 %v3681, %v3680
      %v3687 = vpack.c.b16 %v3683, %v3682
      %v3688 = vpack.c.b16 %v3684, %v3684
      %v3690 = vsel %vm1148, %v3685, 0
      %v3693 = vsel %vm1148, %v3686, 0
      %v3696 = vsel %vm1148, %v3687, 0
      %v3699 = vsel %vm1148, %v3688, 0
      %v3702 = vsel %vm1161, %v3663, 0
      %3704 = vmatprep.subr.bf16.mxu0 0
      %3705 = vmatpush1.bf16.msra.mxu0 %v3660
      %3706 = vmatprep.subr.bf16.mxu0 0
      %3707 = vmatpush1.bf16.msra.mxu0 %v3661
      %3708 = vmatprep.subr.bf16.mxu0 0
      %3709 = vmatpush1.bf16.msra.mxu0 %v3662
      %3710 = vmatprep.subr.bf16.mxu0 0
      %3711 = vmatpush1.bf16.msra.mxu0 %v3702
      %3712 = vmatprep.subr.bf16.mxu0 0
      %3713 = vmatpush1.bf16.msra.mxu0 0
      %3714 = vmatprep.subr.bf16.mxu0 0
      %3715 = vmatpush1.bf16.msra.mxu0 0
      %3716 = vmatprep.subr.bf16.mxu0 0
      %3717 = vmatpush1.bf16.msra.mxu0 0
      %3718 = vmatprep.subr.bf16.mxu0 0
      %3719 = vmatpush1.bf16.msra.mxu0 0
      %3720 = vmatprep.subr.bf16.mxu0 0
      %3721 = vmatpush1.bf16.msra.mxu0 0
      %3722 = vmatprep.subr.bf16.mxu0 0
      %3723 = vmatpush1.bf16.msra.mxu0 0
      %3724 = vmatprep.subr.bf16.mxu0 0
      %3725 = vmatpush1.bf16.msra.mxu0 0
      %3726 = vmatprep.subr.bf16.mxu0 0
      %3727 = vmatpush1.bf16.msra.mxu0 0
      %3728 = vmatprep.subr.bf16.mxu0 0
      %3729 = vmatpush1.bf16.msra.mxu0 0
      %3730 = vmatprep.subr.bf16.mxu0 0
      %3731 = vmatpush1.bf16.msra.mxu0 0
      %3732 = vmatprep.subr.bf16.mxu0 0
      %3733 = vmatpush1.bf16.msra.mxu0 0
      %3734 = vmatprep.subr.bf16.mxu0 0
      %3735 = vmatpush1.bf16.msra.mxu0 0
      %3736 = vmatprep.mubr.bf16.mxu0 0
      %3737 = vmatmul.mubr.bf16.gmra.mrb[0].mxu0 %v3690
      %v3738 = vpop.f32.mrb[0].mxu0
      %v3739 = vadd.f32 %v3669, %v3738
      %v3740 = vpop.f32.mrb[0].mxu0
      %v3741 = vpop.f32.mrb[0].mxu0
      %v3742 = vadd.f32 %v3669, %v3741
      %v3743 = vpop.f32.mrb[0].mxu0
      %3744 = vmatprep.mubr.bf16.mxu0 0
      %3745 = vmatmul.mubr.bf16.gmra.mrb[0].mxu0 %v3693
      %v3746 = vpop.f32.mrb[0].mxu0
      %v3747 = vadd.f32 %v3669, %v3746
      %v3748 = vpop.f32.mrb[0].mxu0
      %v3749 = vpop.f32.mrb[0].mxu0
      %v3750 = vadd.f32 %v3669, %v3749
      %v3751 = vpop.f32.mrb[0].mxu0
      %3752 = vmatprep.mubr.bf16.mxu0 0
      %3753 = vmatmul.mubr.bf16.gmra.mrb[0].mxu0 %v3696
      %v3754 = vpop.f32.mrb[0].mxu0
      %v3755 = vadd.f32 %v3669, %v3754
      %v3756 = vpop.f32.mrb[0].mxu0
      %v3757 = vpop.f32.mrb[0].mxu0
      %v3758 = vadd.f32 %v3669, %v3757
      %v3759 = vpop.f32.mrb[0].mxu0
      %3760 = vmatprep.mubr.bf16.mxu0 0
      %3761 = vmatmul.mubr.bf16.gmra.mrb[0].mxu0 %v3699
      %v3762 = vpop.f32.mrb[0].mxu0
      %v3763 = vadd.f32 %v3669, %v3762
      %v3764 = vpop.f32.mrb[0].mxu0
      %v3765 = vpop.f32.mrb[0].mxu0
      %v3766 = vpop.f32.mrb[0].mxu0
      %3767 = vdwg.mxu0
      %v3768 = vadd.f32 %v3739, %v1016
      %v3769 = vadd.f32 %v3742, %v1017
      %v3770 = vadd.f32 %v3747, %v1018
      %v3771 = vadd.f32 %v3750, %v1019
      %v3772 = vadd.f32 %v3755, %v1020
      %v3773 = vadd.f32 %v3758, %v1021
      %v3774 = vadd.f32 %v3763, %v1022
      %3775 = vst.msk [vmem:[%s1014] sm:$0xff] %vm1035, %v3768
      %3776 = vst.msk [vmem:[%s1014 + $0x8] sm:$0xff] %vm1035, %v3769
      %3777 = vst.msk [vmem:[%s1014 + $0x10] sm:$0xff] %vm1035, %v3770
      %3778 = vst.msk [vmem:[%s1014 + $0x18] sm:$0xff] %vm1035, %v3771
      %3779 = vst.msk [vmem:[%s1014 + $0x20] sm:$0xff] %vm1035, %v3772
      %3780 = vst.msk [vmem:[%s1014 + $0x28] sm:$0xff] %vm1035, %v3773
      %vm3781 = vcmask 128000
      %3782 = vst.msk [vmem:[%s1014 + $0x30] sm:$0x3f] %vm3781, %v3774
      %p3783 = scmp.lt.s32.totalorder %s78, 1
      %s3784 = scalar_select %p3783, %s78, 1
      %s3785 = smul.addr %s3784, 7
      %s3786 = smul.addr %s3785, 8
      %s3787 = scalar_lea.vmem %s67, %s3786
      // Predicated region
      $region153: #{gcn_forward.1} parent=151 // pred_check
        %p3788 = pneg %p794
      $region154: #{gcn_forward.1} parent=151 // pred_check_branch
        %3790 = sbr.rel (%p3788) target = $region156
      $region155: #{gcn_forward.1} parent=151 // pred_region
        _
      $region156: #{gcn_forward.1} parent=151 // pred_fallthru
        _
    $region152: #{gcn_forward.1} parent=5 // pred_fallthru
      _
    %p3791 = scmp.le.s32.totalorder 2, %s73
    // Predicated region
    $region157: #{gcn_forward.1} parent=5 // pred_check
      %p3792 = pneg %p3791
    $region158: #{gcn_forward.1} parent=5 // pred_check_branch
      %3794 = sbr.rel (%p3792) target = $region160
    $region159: #{gcn_forward.1} parent=5 // pred_region
      %s3795 = ssub.s32 %s73, 2
      // Predicated region
      $region161: #{gcn_forward.1} parent=159 // pred_check
        %p3796 = pneg %p800
      $region162: #{gcn_forward.1} parent=159 // pred_check_branch
        %3798 = sbr.rel (%p3796) target = $region164
      $region163: #{gcn_forward.1} parent=159 // pred_region
        %p3799 = scmp.lt.s32.totalorder %s79, 1
        %s3800 = scalar_select %p3799, %s79, 1
        %s3801 = smul.addr %s3800, 7
        %s3802 = smul.addr %s3801, 8
        %s3803 = scalar_lea.vmem %s67, %s3802
      $region164: #{gcn_forward.1} parent=159 // pred_fallthru
        _
    $region160: #{gcn_forward.1} parent=5 // pred_fallthru
      _
  $region6: #{gcn_forward.1} parent=0 // loop_footer
    %s77 = sadd.s32 1, %s73
  $region7: #{gcn_forward.1} parent=0 // loop_footer_branch
    %72 = sbr.rel target = $region3
  $region8: #{gcn_forward.1} parent=0 // loop_exit
    _

</llo_original>
